<compile_context>
chip_gen: v7x
topology: tpu7x:2x2x1
jax: 0.10.0
libtpu: 0.0.40
codegen_flags: <defaults>
</compile_context>

<pallas_src>
import jax
import jax.numpy as jnp
from jax.experimental import pallas as pl
from jax.experimental.pallas import tpu as pltpu

TAG_MAP = {'B': 0, 'I': 1, 'E': 2, 'O': 3, 'START': 4, 'STOP': 5}
TAG_SIZE = len(TAG_MAP)
K_PAD = 128          # destination-tag axis padded to a full lane width
KI = 8               # source-tag axis padded to one sublane group (Viterbi reduce)
H_PAD = 128          # per-direction hidden padded to a lane width
G = 4 * H_PAD        # per-direction fused gate width (i,f,g,o lane-aligned)
NEG = -1e30          # score of padded tags / padded logit columns


# ---------------------------------------------------------------------------
# Fused kernel: BiLSTM (1 layer) + hidden2tag + Viterbi trellis forward pass
# ---------------------------------------------------------------------------
def bilstm_crf_kernel(emb_ref, w_ih_ref, b_in_ref, w_hh_f_ref, w_hh_b_ref,
                      h0_ref, c0_ref, w_out_f_ref, w_out_b_ref, b_out_ref,
                      trans_ref,
                      last_ref, bp_ref,
                      gates_ref, hsf_ref, hsb_ref, logits_ref, bpi_ref):
    BB, T, E = emb_ref.shape

    # ---- 1. hoisted input projection: one (BB*T, E) @ (E, 2*G) MXU call ----
    x = emb_ref[...].reshape(BB * T, E)                               # bf16
    gates_ref[...] = (jnp.dot(x, w_ih_ref[...],
                              preferred_element_type=jnp.float32)
                      + b_in_ref[...]).reshape(BB, T, 2 * G)          # f32 scratch

    w_hh_f = w_hh_f_ref[...]                                          # bf16 (H_PAD, G)
    w_hh_b = w_hh_b_ref[...]

    def gate_math(g, c):
        # every gate block starts on a 128-lane boundary -> full-vreg slices
        i = jax.nn.sigmoid(g[:, 0 * H_PAD:1 * H_PAD])
        f = jax.nn.sigmoid(g[:, 1 * H_PAD:2 * H_PAD])
        gg = jnp.tanh(g[:, 2 * H_PAD:3 * H_PAD])
        o = jax.nn.sigmoid(g[:, 3 * H_PAD:4 * H_PAD])
        c_new = f * c + i * gg
        return o * jnp.tanh(c_new), c_new

    h_f, c_f = h0_ref[:, 0, :], c0_ref[:, 0, :]                       # (BB, H_PAD) f32
    h_b, c_b = h0_ref[:, 1, :], c0_ref[:, 1, :]

    # ---- 2. recurrence: T small & static -> fully unrolled; forward step t
    # and backward step T-1-t share an iteration so their chains overlap. ----
    for t in range(T):
        gf = gates_ref[:, t, 0:G] + jnp.dot(
            h_f.astype(jnp.bfloat16), w_hh_f, preferred_element_type=jnp.float32)
        gb = gates_ref[:, T - 1 - t, G:2 * G] + jnp.dot(
            h_b.astype(jnp.bfloat16), w_hh_b, preferred_element_type=jnp.float32)
        h_f, c_f = gate_math(gf, c_f)
        h_b, c_b = gate_math(gb, c_b)
        hsf_ref[:, t, :] = h_f
        hsb_ref[:, T - 1 - t, :] = h_b

    # ---- 3. hidden2tag, hoisted: two (BB*T, H_PAD) @ (H_PAD, K_PAD) dots ----
    hf = hsf_ref[...].reshape(BB * T, H_PAD).astype(jnp.bfloat16)
    hb = hsb_ref[...].reshape(BB * T, H_PAD).astype(jnp.bfloat16)
    logits = (jnp.dot(hf, w_out_f_ref[...], preferred_element_type=jnp.float32)
              + jnp.dot(hb, w_out_b_ref[...], preferred_element_type=jnp.float32)
              + b_out_ref[...])                                        # (BB*T, K_PAD)
    logits_ref[...] = logits.reshape(BB, T, K_PAD)

    # ---- 4. Viterbi trellis, fused (logits never leave VMEM) ----------------
    trans8 = trans_ref[...]                              # (KI, K_PAD); rows >= K are NEG
    iota_i = jax.lax.broadcasted_iota(jnp.int32, (1, KI, K_PAD), 1)
    iota_j = jax.lax.broadcasted_iota(jnp.int32, (1, KI, K_PAD), 2)
    diag = iota_i == iota_j                              # (1, KI, K_PAD) selector

    prev = logits_ref[:, 0, :]                           # trellis row, (BB, K_PAD)
    bpi_ref[:, 0, :] = jnp.zeros((BB, K_PAD), jnp.int32)
    for t in range(1, T):
        # transpose prev's first KI lanes into an (BB, KI, 1) sublane column
        prev_col = jnp.max(jnp.where(diag, prev[:, None, :], NEG),
                           axis=2, keepdims=True)        # (BB, KI, 1)
        v = prev_col + trans8[None, :, :]                # v[b,i,j] = prev[b,i]+trans[i,j]
        vmax = jnp.max(v, axis=1, keepdims=True)         # (BB, 1, K_PAD)
        amax = jnp.min(jnp.where(v == vmax, iota_i, KI), axis=1)   # first argmax
        prev = logits_ref[:, t, :] + vmax[:, 0, :]
        bpi_ref[:, t, :] = amax
    last_ref[...] = prev
    bp_ref[...] = bpi_ref[...].astype(jnp.int8)          # one dense int8 slab store


def bilstm_viterbi(emb, w_ih, b_in, w_hh_f, w_hh_b, h0, c0,
                   w_out_f, w_out_b, b_out, trans8, batch_block):
    B, T, E = emb.shape
    assert B % batch_block == 0
    blk3 = lambda b: (b, 0, 0)
    blk2 = lambda b: (b, 0)
    const2 = lambda b: (0, 0)
    # TODO(synk): at production T the gates/logits scratch should additionally
    # be tiled over T (streamed) and batch_block re-derived for v7x's 64 MiB VMEM.
    return pl.pallas_call(
        bilstm_crf_kernel,
        grid=(B // batch_block,),
        in_specs=[
            pl.BlockSpec((batch_block, T, E), blk3),
            pl.BlockSpec((E, 2 * G), const2),
            pl.BlockSpec((1, 2 * G), const2),
            pl.BlockSpec((H_PAD, G), const2),
            pl.BlockSpec((H_PAD, G), const2),
            pl.BlockSpec((batch_block, 2, H_PAD), blk3),
            pl.BlockSpec((batch_block, 2, H_PAD), blk3),
            pl.BlockSpec((H_PAD, K_PAD), const2),
            pl.BlockSpec((H_PAD, K_PAD), const2),
            pl.BlockSpec((1, K_PAD), const2),
            pl.BlockSpec((KI, K_PAD), const2),
        ],
        out_specs=(pl.BlockSpec((batch_block, K_PAD), blk2),
                   pl.BlockSpec((batch_block, T, K_PAD), blk3)),
        out_shape=(jax.ShapeDtypeStruct((B, K_PAD), jnp.float32),
                   jax.ShapeDtypeStruct((B, T, K_PAD), jnp.int8)),
        scratch_shapes=[
            pltpu.VMEM((batch_block, T, 2 * G), jnp.float32),   # gates (item 7)
            pltpu.VMEM((batch_block, T, H_PAD), jnp.float32),   # fwd hidden states
            pltpu.VMEM((batch_block, T, H_PAD), jnp.float32),   # bwd hidden states
            pltpu.VMEM((batch_block, T, K_PAD), jnp.float32),   # logits (kept in VMEM)
            pltpu.VMEM((batch_block, T, K_PAD), jnp.int32),     # backpointer staging
        ],
        compiler_params=pltpu.CompilerParams(
            dimension_semantics=("parallel",),
            vmem_limit_bytes=32 * 1024 * 1024),
    )(emb, w_ih, b_in, w_hh_f, w_hh_b, h0, c0, w_out_f, w_out_b, b_out, trans8)


# ---------------------------------------------------------------------------
# Glue: Viterbi backtracking (scalar index chasing, plain JAX)
# ---------------------------------------------------------------------------
def viterbi_backtrack(trellis_last, bp):
    # trellis_last: (K_PAD,), bp: (T, K_PAD) int8; padded tags are ~-1e30 so
    # the argmax / backpointer chain only ever visits real tags (< TAG_SIZE).
    last = jnp.argmax(trellis_last).astype(jnp.int32)
    score = jnp.max(trellis_last)

    def step(carry, bp_t):
        nxt = bp_t[carry].astype(jnp.int32)
        return nxt, nxt

    _, rev = jax.lax.scan(step, last, bp[1:][::-1])
    path = jnp.concatenate([rev[::-1], last[None]])
    return score, path


# ---------------------------------------------------------------------------
# Parameter packing helpers (lane-aligned gate layout, zero padding)
# ---------------------------------------------------------------------------
def _pad_gate_cols(w, hh):
    # (rows, 4*hh) -> (rows, 4*H_PAD); gate k starts at column k*H_PAD.
    out = jnp.zeros((w.shape[0], G), w.dtype)
    for k in range(4):
        out = out.at[:, k * H_PAD:k * H_PAD + hh].set(w[:, k * hh:(k + 1) * hh])
    return out


def _pad_rows(w, rows):
    out = jnp.zeros((rows,) + w.shape[1:], w.dtype)
    return out.at[:w.shape[0]].set(w)


def _pick_batch_block(b):
    # Largest block (cap 64) that divides B and is either == B or a multiple
    # of 8 (keeps every output block tile-legal).  Small blocks are only
    # useful on v7x (2 TCs); on v5e/v6e one big block minimizes grid overhead.
    if b <= 8:
        return b
    for cand in (64, 32, 16, 8):
        if b % cand == 0:
            return cand
    return b


@jax.jit
def forward(sentences, emb_table, params, transitions):
    # TODO(synk): the original forward also calls self.bert(...) on undefined
    # globals (input_ids / attention_mask) and only prints the shape; the BERT
    # output is never used downstream, so it is skipped here.
    # TODO(synk): per-sequence `lengths` default to the full T (as in the
    # original when `lengths` is falsy); variable lengths are not modeled.
    B, T = sentences.shape
    Hh = params['w_hh_f'].shape[0]
    K = transitions.shape[0]

    emb = emb_table[sentences].astype(jnp.bfloat16)                   # (B, T, E)

    # Fused / transposed / zero-padded weights; padded rows & columns are zero
    # so they never change the real math; padded logit columns get bias NEG.
    w_ih = jnp.concatenate(
        [_pad_gate_cols(params['w_ih_f'], Hh), _pad_gate_cols(params['w_ih_b'], Hh)],
        axis=1).astype(jnp.bfloat16)                                  # (E, 2*G)
    b_in = jnp.concatenate(
        [_pad_gate_cols(params['b_f'], Hh), _pad_gate_cols(params['b_b'], Hh)],
        axis=1)                                                       # (1, 2*G) f32
    w_hh_f = _pad_rows(_pad_gate_cols(params['w_hh_f'], Hh), H_PAD).astype(jnp.bfloat16)
    w_hh_b = _pad_rows(_pad_gate_cols(params['w_hh_b'], Hh), H_PAD).astype(jnp.bfloat16)
    h0 = jnp.zeros((B, 2, H_PAD), jnp.float32).at[:, :, :Hh].set(
        jnp.transpose(params['h0'], (1, 0, 2)))
    c0 = jnp.zeros((B, 2, H_PAD), jnp.float32).at[:, :, :Hh].set(
        jnp.transpose(params['c0'], (1, 0, 2)))
    w_out_f = jnp.zeros((H_PAD, K_PAD), jnp.bfloat16).at[:Hh, :K].set(
        params['w_out'][:Hh].astype(jnp.bfloat16))
    w_out_b = jnp.zeros((H_PAD, K_PAD), jnp.bfloat16).at[:Hh, :K].set(
        params['w_out'][Hh:].astype(jnp.bfloat16))
    b_out = jnp.full((1, K_PAD), NEG, jnp.float32).at[:, :K].set(params['b_out'])

    # trans8[i, j] = transitions[i, j]; padded source rows (i >= K) are NEG so
    # they never win the Viterbi max; padded dest columns are 0 (their logits
    # are already ~NEG).  Matches the module's v = trellis[t-1].unsqueeze(1)+T.
    trans8 = jnp.full((KI, K_PAD), NEG, jnp.float32)
    trans8 = trans8.at[:K, :].set(0.0).at[:K, :K].set(transitions)

    batch_block = _pick_batch_block(B)
    trellis_last, bp = bilstm_viterbi(emb, w_ih, b_in, w_hh_f, w_hh_b, h0, c0,
                                      w_out_f, w_out_b, b_out, trans8,
                                      batch_block)

    scores, paths = jax.vmap(viterbi_backtrack)(trellis_last, bp)
    return scores, paths


if __name__ == "__main__":
    key = jax.random.PRNGKey(0)
    B, T = 2, 8          # batch, sequence length
    E = 3                # embedding_dim (as in the module)
    HIDDEN = 32          # hidden_dim (scaled down from 128)
    Hh = HIDDEN // 2     # per-direction LSTM hidden size
    VOCAB = 16           # vocab_size
    K = TAG_SIZE

    ks = jax.random.split(key, 16)

    def uni(k, shape, fan):
        bound = 1.0 / jnp.sqrt(jnp.float32(fan))
        return jax.random.uniform(k, shape, jnp.float32, -bound, bound)

    emb_table = jax.random.normal(ks[0], (VOCAB, E), jnp.float32)

    params = {
        # LSTM weights pre-transposed to (in, 4*Hh); PyTorch gate order i,f,g,o.
        'w_ih_f': uni(ks[1], (E, 4 * Hh), Hh),
        'w_hh_f': uni(ks[2], (Hh, 4 * Hh), Hh),
        'b_f': uni(ks[3], (1, 4 * Hh), Hh) + uni(ks[4], (1, 4 * Hh), Hh),
        'w_ih_b': uni(ks[5], (E, 4 * Hh), Hh),
        'w_hh_b': uni(ks[6], (Hh, 4 * Hh), Hh),
        'b_b': uni(ks[7], (1, 4 * Hh), Hh) + uni(ks[8], (1, 4 * Hh), Hh),
        # init_hidden(): random initial (h0, c0), deterministic here
        # (intentionally mirrors the module's torch.randn init_hidden).
        'h0': jax.random.normal(ks[9], (2, B, Hh), jnp.float32),
        'c0': jax.random.normal(ks[10], (2, B, Hh), jnp.float32),
        # hidden2tag Linear, stored transposed (HIDDEN, K).
        'w_out': uni(ks[11], (HIDDEN, K), HIDDEN),
        'b_out': uni(ks[12], (1, K), HIDDEN),
    }

    transitions = jax.random.normal(ks[13], (K, K), jnp.float32)
    transitions = transitions.at[:, TAG_MAP['START']].set(-1000.0)
    transitions = transitions.at[TAG_MAP['STOP'], :].set(-1000.0)

    sentences = jax.random.randint(ks[14], (B, T), 0, VOCAB, dtype=jnp.int32)

    scores, paths = forward(sentences, emb_table, params, transitions)
    jax.block_until_ready((scores, paths))
    assert scores.shape == (B,)
    assert paths.shape == (B, T)
    assert bool(jnp.all(jnp.isfinite(scores)))
    assert bool(jnp.all((paths >= 0) & (paths < TAG_SIZE)))
    print("KERNEL_OK")
</pallas_src>

<mosaic_0001>
module attributes {stable_mosaic.version = 11 : i64} {
  func.func @bilstm_crf_kernel(%arg0: i32, %arg1: memref<2x8x3xbf16, #tpu.memory_space<vmem>>, %arg2: memref<3x1024xbf16, #tpu.memory_space<vmem>>, %arg3: memref<1x1024xf32, #tpu.memory_space<vmem>>, %arg4: memref<128x512xbf16, #tpu.memory_space<vmem>>, %arg5: memref<128x512xbf16, #tpu.memory_space<vmem>>, %arg6: memref<2x2x128xf32, #tpu.memory_space<vmem>>, %arg7: memref<2x2x128xf32, #tpu.memory_space<vmem>>, %arg8: memref<128x128xbf16, #tpu.memory_space<vmem>>, %arg9: memref<128x128xbf16, #tpu.memory_space<vmem>>, %arg10: memref<1x128xf32, #tpu.memory_space<vmem>>, %arg11: memref<8x128xf32, #tpu.memory_space<vmem>>, %arg12: memref<2x128xf32, #tpu.memory_space<vmem>>, %arg13: memref<2x8x128xi8, #tpu.memory_space<vmem>>, %arg14: memref<2x8x1024xf32, #tpu.memory_space<vmem>>, %arg15: memref<2x8x128xf32, #tpu.memory_space<vmem>>, %arg16: memref<2x8x128xf32, #tpu.memory_space<vmem>>, %arg17: memref<2x8x128xf32, #tpu.memory_space<vmem>>, %arg18: memref<2x8x128xi32, #tpu.memory_space<vmem>>) attributes {dimension_semantics = [#tpu.dimension_semantics<parallel>], iteration_bounds = array<i64: 1>, scalar_prefetch = 0 : i64, scratch_operands = 5 : i64, tpu.core_type = #tpu.core_type<tc>, window_params = [{transform_indices = @transform_0, window_bounds = array<i64: 2, 8, 3>}, {pipeline_mode = #tpu.pipeline_mode<synchronous>, transform_indices = @transform_1, window_bounds = array<i64: 3, 1024>}, {pipeline_mode = #tpu.pipeline_mode<synchronous>, transform_indices = @transform_2, window_bounds = array<i64: 1, 1024>}, {pipeline_mode = #tpu.pipeline_mode<synchronous>, transform_indices = @transform_3, window_bounds = array<i64: 128, 512>}, {pipeline_mode = #tpu.pipeline_mode<synchronous>, transform_indices = @transform_4, window_bounds = array<i64: 128, 512>}, {transform_indices = @transform_5, window_bounds = array<i64: 2, 2, 128>}, {transform_indices = @transform_6, window_bounds = array<i64: 2, 2, 128>}, {pipeline_mode = #tpu.pipeline_mode<synchronous>, transform_indices = @transform_7, window_bounds = array<i64: 128, 128>}, {pipeline_mode = #tpu.pipeline_mode<synchronous>, transform_indices = @transform_8, window_bounds = array<i64: 128, 128>}, {pipeline_mode = #tpu.pipeline_mode<synchronous>, transform_indices = @transform_9, window_bounds = array<i64: 1, 128>}, {pipeline_mode = #tpu.pipeline_mode<synchronous>, transform_indices = @transform_10, window_bounds = array<i64: 8, 128>}, {transform_indices = @transform_11, window_bounds = array<i64: 2, 128>}, {transform_indices = @transform_12, window_bounds = array<i64: 2, 8, 128>}]} {
    %c0 = arith.constant 0 : index
    %c0_0 = arith.constant 0 : index
    %c0_1 = arith.constant 0 : index
    %0 = vector.load %arg1[%c0, %c0_0, %c0_1] : memref<2x8x3xbf16, #tpu.memory_space<vmem>>, vector<2x8x3xbf16>
    %1 = vector.shape_cast %0 : vector<2x8x3xbf16> to vector<16x3xbf16>
    %c0_2 = arith.constant 0 : index
    %c0_3 = arith.constant 0 : index
    %2 = vector.load %arg2[%c0_2, %c0_3] : memref<3x1024xbf16, #tpu.memory_space<vmem>>, vector<3x1024xbf16>
    %cst = arith.constant dense<0.000000e+00> : vector<16x1024xf32>
    %3 = tpu.matmul %1, %2, %cst {dimension_numbers = #tpu.dot_dimension_numbers<[1], [0], [0], [1], [0, 0, 1, 1], [], []>} : vector<16x3xbf16>, vector<3x1024xbf16>, vector<16x1024xf32> -> vector<16x1024xf32>
    %c0_4 = arith.constant 0 : index
    %c0_5 = arith.constant 0 : index
    %4 = vector.load %arg3[%c0_4, %c0_5] : memref<1x1024xf32, #tpu.memory_space<vmem>>, vector<1x1024xf32>
    %5 = vector.broadcast %4 : vector<1x1024xf32> to vector<16x1024xf32>
    %6 = arith.addf %3, %5 : vector<16x1024xf32>
    %7 = vector.shape_cast %6 : vector<16x1024xf32> to vector<2x8x1024xf32>
    %c0_6 = arith.constant 0 : index
    %c0_7 = arith.constant 0 : index
    %c0_8 = arith.constant 0 : index
    %8 = vector.load %arg14[%c0_6, %c0_7, %c0_8] : memref<2x8x1024xf32, #tpu.memory_space<vmem>>, vector<2x8x1024xf32>
    tpu.vector_store %arg14[%c0_6, %c0_7, %c0_8], %7 {strides = array<i32>} : memref<2x8x1024xf32, #tpu.memory_space<vmem>>, vector<2x8x1024xf32>,
    %c0_9 = arith.constant 0 : index
    %c0_10 = arith.constant 0 : index
    %9 = vector.load %arg4[%c0_9, %c0_10] : memref<128x512xbf16, #tpu.memory_space<vmem>>, vector<128x512xbf16>
    %c0_11 = arith.constant 0 : index
    %c0_12 = arith.constant 0 : index
    %10 = vector.load %arg5[%c0_11, %c0_12] : memref<128x512xbf16, #tpu.memory_space<vmem>>, vector<128x512xbf16>
    %c0_13 = arith.constant 0 : index
    %c0_14 = arith.constant 0 : index
    %c0_15 = arith.constant 0 : index
    %11 = vector.load %arg6[%c0_13, %c0_14, %c0_15] : memref<2x2x128xf32, #tpu.memory_space<vmem>>, vector<2x1x128xf32>
    %12 = vector.shape_cast %11 : vector<2x1x128xf32> to vector<2x128xf32>
    %c0_16 = arith.constant 0 : index
    %c0_17 = arith.constant 0 : index
    %c0_18 = arith.constant 0 : index
    %13 = vector.load %arg7[%c0_16, %c0_17, %c0_18] : memref<2x2x128xf32, #tpu.memory_space<vmem>>, vector<2x1x128xf32>
    %14 = vector.shape_cast %13 : vector<2x1x128xf32> to vector<2x128xf32>
    %c0_19 = arith.constant 0 : index
    %c1 = arith.constant 1 : index
    %c0_20 = arith.constant 0 : index
    %15 = vector.load %arg6[%c0_19, %c1, %c0_20] : memref<2x2x128xf32, #tpu.memory_space<vmem>>, vector<2x1x128xf32>
    %16 = vector.shape_cast %15 : vector<2x1x128xf32> to vector<2x128xf32>
    %c0_21 = arith.constant 0 : index
    %c1_22 = arith.constant 1 : index
    %c0_23 = arith.constant 0 : index
    %17 = vector.load %arg7[%c0_21, %c1_22, %c0_23] : memref<2x2x128xf32, #tpu.memory_space<vmem>>, vector<2x1x128xf32>
    %18 = vector.shape_cast %17 : vector<2x1x128xf32> to vector<2x128xf32>
    %c0_24 = arith.constant 0 : index
    %c0_25 = arith.constant 0 : index
    %c0_26 = arith.constant 0 : index
    %19 = vector.load %arg14[%c0_24, %c0_25, %c0_26] : memref<2x8x1024xf32, #tpu.memory_space<vmem>>, vector<2x1x512xf32>
    %20 = vector.shape_cast %19 : vector<2x1x512xf32> to vector<2x512xf32>
    %21 = arith.truncf %12 : vector<2x128xf32> to vector<2x128xbf16>
    %cst_27 = arith.constant dense<0.000000e+00> : vector<2x512xf32>
    %22 = tpu.matmul %21, %9, %cst_27 {dimension_numbers = #tpu.dot_dimension_numbers<[1], [0], [0], [1], [0, 0, 1, 1], [], []>} : vector<2x128xbf16>, vector<128x512xbf16>, vector<2x512xf32> -> vector<2x512xf32>
    %23 = arith.addf %20, %22 : vector<2x512xf32>
    %c0_28 = arith.constant 0 : index
    %c7 = arith.constant 7 : index
    %c512 = arith.constant 512 : index
    %24 = vector.load %arg14[%c0_28, %c7, %c512] : memref<2x8x1024xf32, #tpu.memory_space<vmem>>, vector<2x1x512xf32>
    %25 = vector.shape_cast %24 : vector<2x1x512xf32> to vector<2x512xf32>
    %26 = arith.truncf %16 : vector<2x128xf32> to vector<2x128xbf16>
    %cst_29 = arith.constant dense<0.000000e+00> : vector<2x512xf32>
    %27 = tpu.matmul %26, %10, %cst_29 {dimension_numbers = #tpu.dot_dimension_numbers<[1], [0], [0], [1], [0, 0, 1, 1], [], []>} : vector<2x128xbf16>, vector<128x512xbf16>, vector<2x512xf32> -> vector<2x512xf32>
    %28 = arith.addf %25, %27 : vector<2x512xf32>
    %29 = vector.extract_strided_slice %23 {offsets = [0, 0], sizes = [2, 128], strides = [1, 1]} : vector<2x512xf32> to vector<2x128xf32>
    %30 = arith.negf %29 : vector<2x128xf32>
    %31 = math.exp %30 : vector<2x128xf32>
    %cst_30 = arith.constant 1.000000e+00 : f32
    %32 = vector.broadcast %cst_30 : f32 to vector<2x128xf32>
    %33 = arith.addf %32, %31 : vector<2x128xf32>
    %34 = arith.divf %32, %33 : vector<2x128xf32>
    %35 = vector.extract_strided_slice %23 {offsets = [0, 128], sizes = [2, 128], strides = [1, 1]} : vector<2x512xf32> to vector<2x128xf32>
    %36 = arith.negf %35 : vector<2x128xf32>
    %37 = math.exp %36 : vector<2x128xf32>
    %cst_31 = arith.constant 1.000000e+00 : f32
    %38 = vector.broadcast %cst_31 : f32 to vector<2x128xf32>
    %39 = arith.addf %38, %37 : vector<2x128xf32>
    %40 = arith.divf %38, %39 : vector<2x128xf32>
    %41 = vector.extract_strided_slice %23 {offsets = [0, 256], sizes = [2, 128], strides = [1, 1]} : vector<2x512xf32> to vector<2x128xf32>
    %42 = math.tanh %41 : vector<2x128xf32>
    %43 = vector.extract_strided_slice %23 {offsets = [0, 384], sizes = [2, 128], strides = [1, 1]} : vector<2x512xf32> to vector<2x128xf32>
    %44 = arith.negf %43 : vector<2x128xf32>
    %45 = math.exp %44 : vector<2x128xf32>
    %cst_32 = arith.constant 1.000000e+00 : f32
    %46 = vector.broadcast %cst_32 : f32 to vector<2x128xf32>
    %47 = arith.addf %46, %45 : vector<2x128xf32>
    %48 = arith.divf %46, %47 : vector<2x128xf32>
    %49 = arith.mulf %40, %14 : vector<2x128xf32>
    %50 = arith.mulf %34, %42 : vector<2x128xf32>
    %51 = arith.addf %49, %50 : vector<2x128xf32>
    %52 = math.tanh %51 : vector<2x128xf32>
    %53 = arith.mulf %48, %52 : vector<2x128xf32>
    %54 = vector.extract_strided_slice %28 {offsets = [0, 0], sizes = [2, 128], strides = [1, 1]} : vector<2x512xf32> to vector<2x128xf32>
    %55 = arith.negf %54 : vector<2x128xf32>
    %56 = math.exp %55 : vector<2x128xf32>
    %cst_33 = arith.constant 1.000000e+00 : f32
    %57 = vector.broadcast %cst_33 : f32 to vector<2x128xf32>
    %58 = arith.addf %57, %56 : vector<2x128xf32>
    %59 = arith.divf %57, %58 : vector<2x128xf32>
    %60 = vector.extract_strided_slice %28 {offsets = [0, 128], sizes = [2, 128], strides = [1, 1]} : vector<2x512xf32> to vector<2x128xf32>
    %61 = arith.negf %60 : vector<2x128xf32>
    %62 = math.exp %61 : vector<2x128xf32>
    %cst_34 = arith.constant 1.000000e+00 : f32
    %63 = vector.broadcast %cst_34 : f32 to vector<2x128xf32>
    %64 = arith.addf %63, %62 : vector<2x128xf32>
    %65 = arith.divf %63, %64 : vector<2x128xf32>
    %66 = vector.extract_strided_slice %28 {offsets = [0, 256], sizes = [2, 128], strides = [1, 1]} : vector<2x512xf32> to vector<2x128xf32>
    %67 = math.tanh %66 : vector<2x128xf32>
    %68 = vector.extract_strided_slice %28 {offsets = [0, 384], sizes = [2, 128], strides = [1, 1]} : vector<2x512xf32> to vector<2x128xf32>
    %69 = arith.negf %68 : vector<2x128xf32>
    %70 = math.exp %69 : vector<2x128xf32>
    %cst_35 = arith.constant 1.000000e+00 : f32
    %71 = vector.broadcast %cst_35 : f32 to vector<2x128xf32>
    %72 = arith.addf %71, %70 : vector<2x128xf32>
    %73 = arith.divf %71, %72 : vector<2x128xf32>
    %74 = arith.mulf %65, %18 : vector<2x128xf32>
    %75 = arith.mulf %59, %67 : vector<2x128xf32>
    %76 = arith.addf %74, %75 : vector<2x128xf32>
    %77 = math.tanh %76 : vector<2x128xf32>
    %78 = arith.mulf %73, %77 : vector<2x128xf32>
    %c0_36 = arith.constant 0 : index
    %c0_37 = arith.constant 0 : index
    %c0_38 = arith.constant 0 : index
    %79 = vector.load %arg15[%c0_36, %c0_37, %c0_38] : memref<2x8x128xf32, #tpu.memory_space<vmem>>, vector<2x1x128xf32>
    %80 = vector.shape_cast %79 : vector<2x1x128xf32> to vector<2x128xf32>
    %81 = vector.shape_cast %53 : vector<2x128xf32> to vector<2x1x128xf32>
    tpu.vector_store %arg15[%c0_36, %c0_37, %c0_38], %81 {strides = array<i32>} : memref<2x8x128xf32, #tpu.memory_space<vmem>>, vector<2x1x128xf32>,
    %c0_39 = arith.constant 0 : index
    %c7_40 = arith.constant 7 : index
    %c0_41 = arith.constant 0 : index
    %82 = vector.load %arg16[%c0_39, %c7_40, %c0_41] : memref<2x8x128xf32, #tpu.memory_space<vmem>>, vector<2x1x128xf32>
    %83 = vector.shape_cast %82 : vector<2x1x128xf32> to vector<2x128xf32>
    %84 = vector.shape_cast %78 : vector<2x128xf32> to vector<2x1x128xf32>
    tpu.vector_store %arg16[%c0_39, %c7_40, %c0_41], %84 {strides = array<i32>} : memref<2x8x128xf32, #tpu.memory_space<vmem>>, vector<2x1x128xf32>,
    %c0_42 = arith.constant 0 : index
    %c1_43 = arith.constant 1 : index
    %c0_44 = arith.constant 0 : index
    %85 = vector.load %arg14[%c0_42, %c1_43, %c0_44] : memref<2x8x1024xf32, #tpu.memory_space<vmem>>, vector<2x1x512xf32>
    %86 = vector.shape_cast %85 : vector<2x1x512xf32> to vector<2x512xf32>
    %87 = arith.truncf %53 : vector<2x128xf32> to vector<2x128xbf16>
    %cst_45 = arith.constant dense<0.000000e+00> : vector<2x512xf32>
    %88 = tpu.matmul %87, %9, %cst_45 {dimension_numbers = #tpu.dot_dimension_numbers<[1], [0], [0], [1], [0, 0, 1, 1], [], []>} : vector<2x128xbf16>, vector<128x512xbf16>, vector<2x512xf32> -> vector<2x512xf32>
    %89 = arith.addf %86, %88 : vector<2x512xf32>
    %c0_46 = arith.constant 0 : index
    %c6 = arith.constant 6 : index
    %c512_47 = arith.constant 512 : index
    %90 = vector.load %arg14[%c0_46, %c6, %c512_47] : memref<2x8x1024xf32, #tpu.memory_space<vmem>>, vector<2x1x512xf32>
    %91 = vector.shape_cast %90 : vector<2x1x512xf32> to vector<2x512xf32>
    %92 = arith.truncf %78 : vector<2x128xf32> to vector<2x128xbf16>
    %cst_48 = arith.constant dense<0.000000e+00> : vector<2x512xf32>
    %93 = tpu.matmul %92, %10, %cst_48 {dimension_numbers = #tpu.dot_dimension_numbers<[1], [0], [0], [1], [0, 0, 1, 1], [], []>} : vector<2x128xbf16>, vector<128x512xbf16>, vector<2x512xf32> -> vector<2x512xf32>
    %94 = arith.addf %91, %93 : vector<2x512xf32>
    %95 = vector.extract_strided_slice %89 {offsets = [0, 0], sizes = [2, 128], strides = [1, 1]} : vector<2x512xf32> to vector<2x128xf32>
    %96 = arith.negf %95 : vector<2x128xf32>
    %97 = math.exp %96 : vector<2x128xf32>
    %cst_49 = arith.constant 1.000000e+00 : f32
    %98 = vector.broadcast %cst_49 : f32 to vector<2x128xf32>
    %99 = arith.addf %98, %97 : vector<2x128xf32>
    %100 = arith.divf %98, %99 : vector<2x128xf32>
    %101 = vector.extract_strided_slice %89 {offsets = [0, 128], sizes = [2, 128], strides = [1, 1]} : vector<2x512xf32> to vector<2x128xf32>
    %102 = arith.negf %101 : vector<2x128xf32>
    %103 = math.exp %102 : vector<2x128xf32>
    %cst_50 = arith.constant 1.000000e+00 : f32
    %104 = vector.broadcast %cst_50 : f32 to vector<2x128xf32>
    %105 = arith.addf %104, %103 : vector<2x128xf32>
    %106 = arith.divf %104, %105 : vector<2x128xf32>
    %107 = vector.extract_strided_slice %89 {offsets = [0, 256], sizes = [2, 128], strides = [1, 1]} : vector<2x512xf32> to vector<2x128xf32>
    %108 = math.tanh %107 : vector<2x128xf32>
    %109 = vector.extract_strided_slice %89 {offsets = [0, 384], sizes = [2, 128], strides = [1, 1]} : vector<2x512xf32> to vector<2x128xf32>
    %110 = arith.negf %109 : vector<2x128xf32>
    %111 = math.exp %110 : vector<2x128xf32>
    %cst_51 = arith.constant 1.000000e+00 : f32
    %112 = vector.broadcast %cst_51 : f32 to vector<2x128xf32>
    %113 = arith.addf %112, %111 : vector<2x128xf32>
    %114 = arith.divf %112, %113 : vector<2x128xf32>
    %115 = arith.mulf %106, %51 : vector<2x128xf32>
    %116 = arith.mulf %100, %108 : vector<2x128xf32>
    %117 = arith.addf %115, %116 : vector<2x128xf32>
    %118 = math.tanh %117 : vector<2x128xf32>
    %119 = arith.mulf %114, %118 : vector<2x128xf32>
    %120 = vector.extract_strided_slice %94 {offsets = [0, 0], sizes = [2, 128], strides = [1, 1]} : vector<2x512xf32> to vector<2x128xf32>
    %121 = arith.negf %120 : vector<2x128xf32>
    %122 = math.exp %121 : vector<2x128xf32>
    %cst_52 = arith.constant 1.000000e+00 : f32
    %123 = vector.broadcast %cst_52 : f32 to vector<2x128xf32>
    %124 = arith.addf %123, %122 : vector<2x128xf32>
    %125 = arith.divf %123, %124 : vector<2x128xf32>
    %126 = vector.extract_strided_slice %94 {offsets = [0, 128], sizes = [2, 128], strides = [1, 1]} : vector<2x512xf32> to vector<2x128xf32>
    %127 = arith.negf %126 : vector<2x128xf32>
    %128 = math.exp %127 : vector<2x128xf32>
    %cst_53 = arith.constant 1.000000e+00 : f32
    %129 = vector.broadcast %cst_53 : f32 to vector<2x128xf32>
    %130 = arith.addf %129, %128 : vector<2x128xf32>
    %131 = arith.divf %129, %130 : vector<2x128xf32>
    %132 = vector.extract_strided_slice %94 {offsets = [0, 256], sizes = [2, 128], strides = [1, 1]} : vector<2x512xf32> to vector<2x128xf32>
    %133 = math.tanh %132 : vector<2x128xf32>
    %134 = vector.extract_strided_slice %94 {offsets = [0, 384], sizes = [2, 128], strides = [1, 1]} : vector<2x512xf32> to vector<2x128xf32>
    %135 = arith.negf %134 : vector<2x128xf32>
    %136 = math.exp %135 : vector<2x128xf32>
    %cst_54 = arith.constant 1.000000e+00 : f32
    %137 = vector.broadcast %cst_54 : f32 to vector<2x128xf32>
    %138 = arith.addf %137, %136 : vector<2x128xf32>
    %139 = arith.divf %137, %138 : vector<2x128xf32>
    %140 = arith.mulf %131, %76 : vector<2x128xf32>
    %141 = arith.mulf %125, %133 : vector<2x128xf32>
    %142 = arith.addf %140, %141 : vector<2x128xf32>
    %143 = math.tanh %142 : vector<2x128xf32>
    %144 = arith.mulf %139, %143 : vector<2x128xf32>
    %c0_55 = arith.constant 0 : index
    %c1_56 = arith.constant 1 : index
    %c0_57 = arith.constant 0 : index
    %145 = vector.load %arg15[%c0_55, %c1_56, %c0_57] : memref<2x8x128xf32, #tpu.memory_space<vmem>>, vector<2x1x128xf32>
    %146 = vector.shape_cast %145 : vector<2x1x128xf32> to vector<2x128xf32>
    %147 = vector.shape_cast %119 : vector<2x128xf32> to vector<2x1x128xf32>
    tpu.vector_store %arg15[%c0_55, %c1_56, %c0_57], %147 {strides = array<i32>} : memref<2x8x128xf32, #tpu.memory_space<vmem>>, vector<2x1x128xf32>,
    %c0_58 = arith.constant 0 : index
    %c6_59 = arith.constant 6 : index
    %c0_60 = arith.constant 0 : index
    %148 = vector.load %arg16[%c0_58, %c6_59, %c0_60] : memref<2x8x128xf32, #tpu.memory_space<vmem>>, vector<2x1x128xf32>
    %149 = vector.shape_cast %148 : vector<2x1x128xf32> to vector<2x128xf32>
    %150 = vector.shape_cast %144 : vector<2x128xf32> to vector<2x1x128xf32>
    tpu.vector_store %arg16[%c0_58, %c6_59, %c0_60], %150 {strides = array<i32>} : memref<2x8x128xf32, #tpu.memory_space<vmem>>, vector<2x1x128xf32>,
    %c0_61 = arith.constant 0 : index
    %c2 = arith.constant 2 : index
    %c0_62 = arith.constant 0 : index
    %151 = vector.load %arg14[%c0_61, %c2, %c0_62] : memref<2x8x1024xf32, #tpu.memory_space<vmem>>, vector<2x1x512xf32>
    %152 = vector.shape_cast %151 : vector<2x1x512xf32> to vector<2x512xf32>
    %153 = arith.truncf %119 : vector<2x128xf32> to vector<2x128xbf16>
    %cst_63 = arith.constant dense<0.000000e+00> : vector<2x512xf32>
    %154 = tpu.matmul %153, %9, %cst_63 {dimension_numbers = #tpu.dot_dimension_numbers<[1], [0], [0], [1], [0, 0, 1, 1], [], []>} : vector<2x128xbf16>, vector<128x512xbf16>, vector<2x512xf32> -> vector<2x512xf32>
    %155 = arith.addf %152, %154 : vector<2x512xf32>
    %c0_64 = arith.constant 0 : index
    %c5 = arith.constant 5 : index
    %c512_65 = arith.constant 512 : index
    %156 = vector.load %arg14[%c0_64, %c5, %c512_65] : memref<2x8x1024xf32, #tpu.memory_space<vmem>>, vector<2x1x512xf32>
    %157 = vector.shape_cast %156 : vector<2x1x512xf32> to vector<2x512xf32>
    %158 = arith.truncf %144 : vector<2x128xf32> to vector<2x128xbf16>
    %cst_66 = arith.constant dense<0.000000e+00> : vector<2x512xf32>
    %159 = tpu.matmul %158, %10, %cst_66 {dimension_numbers = #tpu.dot_dimension_numbers<[1], [0], [0], [1], [0, 0, 1, 1], [], []>} : vector<2x128xbf16>, vector<128x512xbf16>, vector<2x512xf32> -> vector<2x512xf32>
    %160 = arith.addf %157, %159 : vector<2x512xf32>
    %161 = vector.extract_strided_slice %155 {offsets = [0, 0], sizes = [2, 128], strides = [1, 1]} : vector<2x512xf32> to vector<2x128xf32>
    %162 = arith.negf %161 : vector<2x128xf32>
    %163 = math.exp %162 : vector<2x128xf32>
    %cst_67 = arith.constant 1.000000e+00 : f32
    %164 = vector.broadcast %cst_67 : f32 to vector<2x128xf32>
    %165 = arith.addf %164, %163 : vector<2x128xf32>
    %166 = arith.divf %164, %165 : vector<2x128xf32>
    %167 = vector.extract_strided_slice %155 {offsets = [0, 128], sizes = [2, 128], strides = [1, 1]} : vector<2x512xf32> to vector<2x128xf32>
    %168 = arith.negf %167 : vector<2x128xf32>
    %169 = math.exp %168 : vector<2x128xf32>
    %cst_68 = arith.constant 1.000000e+00 : f32
    %170 = vector.broadcast %cst_68 : f32 to vector<2x128xf32>
    %171 = arith.addf %170, %169 : vector<2x128xf32>
    %172 = arith.divf %170, %171 : vector<2x128xf32>
    %173 = vector.extract_strided_slice %155 {offsets = [0, 256], sizes = [2, 128], strides = [1, 1]} : vector<2x512xf32> to vector<2x128xf32>
    %174 = math.tanh %173 : vector<2x128xf32>
    %175 = vector.extract_strided_slice %155 {offsets = [0, 384], sizes = [2, 128], strides = [1, 1]} : vector<2x512xf32> to vector<2x128xf32>
    %176 = arith.negf %175 : vector<2x128xf32>
    %177 = math.exp %176 : vector<2x128xf32>
    %cst_69 = arith.constant 1.000000e+00 : f32
    %178 = vector.broadcast %cst_69 : f32 to vector<2x128xf32>
    %179 = arith.addf %178, %177 : vector<2x128xf32>
    %180 = arith.divf %178, %179 : vector<2x128xf32>
    %181 = arith.mulf %172, %117 : vector<2x128xf32>
    %182 = arith.mulf %166, %174 : vector<2x128xf32>
    %183 = arith.addf %181, %182 : vector<2x128xf32>
    %184 = math.tanh %183 : vector<2x128xf32>
    %185 = arith.mulf %180, %184 : vector<2x128xf32>
    %186 = vector.extract_strided_slice %160 {offsets = [0, 0], sizes = [2, 128], strides = [1, 1]} : vector<2x512xf32> to vector<2x128xf32>
    %187 = arith.negf %186 : vector<2x128xf32>
    %188 = math.exp %187 : vector<2x128xf32>
    %cst_70 = arith.constant 1.000000e+00 : f32
    %189 = vector.broadcast %cst_70 : f32 to vector<2x128xf32>
    %190 = arith.addf %189, %188 : vector<2x128xf32>
    %191 = arith.divf %189, %190 : vector<2x128xf32>
    %192 = vector.extract_strided_slice %160 {offsets = [0, 128], sizes = [2, 128], strides = [1, 1]} : vector<2x512xf32> to vector<2x128xf32>
    %193 = arith.negf %192 : vector<2x128xf32>
    %194 = math.exp %193 : vector<2x128xf32>
    %cst_71 = arith.constant 1.000000e+00 : f32
    %195 = vector.broadcast %cst_71 : f32 to vector<2x128xf32>
    %196 = arith.addf %195, %194 : vector<2x128xf32>
    %197 = arith.divf %195, %196 : vector<2x128xf32>
    %198 = vector.extract_strided_slice %160 {offsets = [0, 256], sizes = [2, 128], strides = [1, 1]} : vector<2x512xf32> to vector<2x128xf32>
    %199 = math.tanh %198 : vector<2x128xf32>
    %200 = vector.extract_strided_slice %160 {offsets = [0, 384], sizes = [2, 128], strides = [1, 1]} : vector<2x512xf32> to vector<2x128xf32>
    %201 = arith.negf %200 : vector<2x128xf32>
    %202 = math.exp %201 : vector<2x128xf32>
    %cst_72 = arith.constant 1.000000e+00 : f32
    %203 = vector.broadcast %cst_72 : f32 to vector<2x128xf32>
    %204 = arith.addf %203, %202 : vector<2x128xf32>
    %205 = arith.divf %203, %204 : vector<2x128xf32>
    %206 = arith.mulf %197, %142 : vector<2x128xf32>
    %207 = arith.mulf %191, %199 : vector<2x128xf32>
    %208 = arith.addf %206, %207 : vector<2x128xf32>
    %209 = math.tanh %208 : vector<2x128xf32>
    %210 = arith.mulf %205, %209 : vector<2x128xf32>
    %c0_73 = arith.constant 0 : index
    %c2_74 = arith.constant 2 : index
    %c0_75 = arith.constant 0 : index
    %211 = vector.load %arg15[%c0_73, %c2_74, %c0_75] : memref<2x8x128xf32, #tpu.memory_space<vmem>>, vector<2x1x128xf32>
    %212 = vector.shape_cast %211 : vector<2x1x128xf32> to vector<2x128xf32>
    %213 = vector.shape_cast %185 : vector<2x128xf32> to vector<2x1x128xf32>
    tpu.vector_store %arg15[%c0_73, %c2_74, %c0_75], %213 {strides = array<i32>} : memref<2x8x128xf32, #tpu.memory_space<vmem>>, vector<2x1x128xf32>,
    %c0_76 = arith.constant 0 : index
    %c5_77 = arith.constant 5 : index
    %c0_78 = arith.constant 0 : index
    %214 = vector.load %arg16[%c0_76, %c5_77, %c0_78] : memref<2x8x128xf32, #tpu.memory_space<vmem>>, vector<2x1x128xf32>
    %215 = vector.shape_cast %214 : vector<2x1x128xf32> to vector<2x128xf32>
    %216 = vector.shape_cast %210 : vector<2x128xf32> to vector<2x1x128xf32>
    tpu.vector_store %arg16[%c0_76, %c5_77, %c0_78], %216 {strides = array<i32>} : memref<2x8x128xf32, #tpu.memory_space<vmem>>, vector<2x1x128xf32>,
    %c0_79 = arith.constant 0 : index
    %c3 = arith.constant 3 : index
    %c0_80 = arith.constant 0 : index
    %217 = vector.load %arg14[%c0_79, %c3, %c0_80] : memref<2x8x1024xf32, #tpu.memory_space<vmem>>, vector<2x1x512xf32>
    %218 = vector.shape_cast %217 : vector<2x1x512xf32> to vector<2x512xf32>
    %219 = arith.truncf %185 : vector<2x128xf32> to vector<2x128xbf16>
    %cst_81 = arith.constant dense<0.000000e+00> : vector<2x512xf32>
    %220 = tpu.matmul %219, %9, %cst_81 {dimension_numbers = #tpu.dot_dimension_numbers<[1], [0], [0], [1], [0, 0, 1, 1], [], []>} : vector<2x128xbf16>, vector<128x512xbf16>, vector<2x512xf32> -> vector<2x512xf32>
    %221 = arith.addf %218, %220 : vector<2x512xf32>
    %c0_82 = arith.constant 0 : index
    %c4 = arith.constant 4 : index
    %c512_83 = arith.constant 512 : index
    %222 = vector.load %arg14[%c0_82, %c4, %c512_83] : memref<2x8x1024xf32, #tpu.memory_space<vmem>>, vector<2x1x512xf32>
    %223 = vector.shape_cast %222 : vector<2x1x512xf32> to vector<2x512xf32>
    %224 = arith.truncf %210 : vector<2x128xf32> to vector<2x128xbf16>
    %cst_84 = arith.constant dense<0.000000e+00> : vector<2x512xf32>
    %225 = tpu.matmul %224, %10, %cst_84 {dimension_numbers = #tpu.dot_dimension_numbers<[1], [0], [0], [1], [0, 0, 1, 1], [], []>} : vector<2x128xbf16>, vector<128x512xbf16>, vector<2x512xf32> -> vector<2x512xf32>
    %226 = arith.addf %223, %225 : vector<2x512xf32>
    %227 = vector.extract_strided_slice %221 {offsets = [0, 0], sizes = [2, 128], strides = [1, 1]} : vector<2x512xf32> to vector<2x128xf32>
    %228 = arith.negf %227 : vector<2x128xf32>
    %229 = math.exp %228 : vector<2x128xf32>
    %cst_85 = arith.constant 1.000000e+00 : f32
    %230 = vector.broadcast %cst_85 : f32 to vector<2x128xf32>
    %231 = arith.addf %230, %229 : vector<2x128xf32>
    %232 = arith.divf %230, %231 : vector<2x128xf32>
    %233 = vector.extract_strided_slice %221 {offsets = [0, 128], sizes = [2, 128], strides = [1, 1]} : vector<2x512xf32> to vector<2x128xf32>
    %234 = arith.negf %233 : vector<2x128xf32>
    %235 = math.exp %234 : vector<2x128xf32>
    %cst_86 = arith.constant 1.000000e+00 : f32
    %236 = vector.broadcast %cst_86 : f32 to vector<2x128xf32>
    %237 = arith.addf %236, %235 : vector<2x128xf32>
    %238 = arith.divf %236, %237 : vector<2x128xf32>
    %239 = vector.extract_strided_slice %221 {offsets = [0, 256], sizes = [2, 128], strides = [1, 1]} : vector<2x512xf32> to vector<2x128xf32>
    %240 = math.tanh %239 : vector<2x128xf32>
    %241 = vector.extract_strided_slice %221 {offsets = [0, 384], sizes = [2, 128], strides = [1, 1]} : vector<2x512xf32> to vector<2x128xf32>
    %242 = arith.negf %241 : vector<2x128xf32>
    %243 = math.exp %242 : vector<2x128xf32>
    %cst_87 = arith.constant 1.000000e+00 : f32
    %244 = vector.broadcast %cst_87 : f32 to vector<2x128xf32>
    %245 = arith.addf %244, %243 : vector<2x128xf32>
    %246 = arith.divf %244, %245 : vector<2x128xf32>
    %247 = arith.mulf %238, %183 : vector<2x128xf32>
    %248 = arith.mulf %232, %240 : vector<2x128xf32>
    %249 = arith.addf %247, %248 : vector<2x128xf32>
    %250 = math.tanh %249 : vector<2x128xf32>
    %251 = arith.mulf %246, %250 : vector<2x128xf32>
    %252 = vector.extract_strided_slice %226 {offsets = [0, 0], sizes = [2, 128], strides = [1, 1]} : vector<2x512xf32> to vector<2x128xf32>
    %253 = arith.negf %252 : vector<2x128xf32>
    %254 = math.exp %253 : vector<2x128xf32>
    %cst_88 = arith.constant 1.000000e+00 : f32
    %255 = vector.broadcast %cst_88 : f32 to vector<2x128xf32>
    %256 = arith.addf %255, %254 : vector<2x128xf32>
    %257 = arith.divf %255, %256 : vector<2x128xf32>
    %258 = vector.extract_strided_slice %226 {offsets = [0, 128], sizes = [2, 128], strides = [1, 1]} : vector<2x512xf32> to vector<2x128xf32>
    %259 = arith.negf %258 : vector<2x128xf32>
    %260 = math.exp %259 : vector<2x128xf32>
    %cst_89 = arith.constant 1.000000e+00 : f32
    %261 = vector.broadcast %cst_89 : f32 to vector<2x128xf32>
    %262 = arith.addf %261, %260 : vector<2x128xf32>
    %263 = arith.divf %261, %262 : vector<2x128xf32>
    %264 = vector.extract_strided_slice %226 {offsets = [0, 256], sizes = [2, 128], strides = [1, 1]} : vector<2x512xf32> to vector<2x128xf32>
    %265 = math.tanh %264 : vector<2x128xf32>
    %266 = vector.extract_strided_slice %226 {offsets = [0, 384], sizes = [2, 128], strides = [1, 1]} : vector<2x512xf32> to vector<2x128xf32>
    %267 = arith.negf %266 : vector<2x128xf32>
    %268 = math.exp %267 : vector<2x128xf32>
    %cst_90 = arith.constant 1.000000e+00 : f32
    %269 = vector.broadcast %cst_90 : f32 to vector<2x128xf32>
    %270 = arith.addf %269, %268 : vector<2x128xf32>
    %271 = arith.divf %269, %270 : vector<2x128xf32>
    %272 = arith.mulf %263, %208 : vector<2x128xf32>
    %273 = arith.mulf %257, %265 : vector<2x128xf32>
    %274 = arith.addf %272, %273 : vector<2x128xf32>
    %275 = math.tanh %274 : vector<2x128xf32>
    %276 = arith.mulf %271, %275 : vector<2x128xf32>
    %c0_91 = arith.constant 0 : index
    %c3_92 = arith.constant 3 : index
    %c0_93 = arith.constant 0 : index
    %277 = vector.load %arg15[%c0_91, %c3_92, %c0_93] : memref<2x8x128xf32, #tpu.memory_space<vmem>>, vector<2x1x128xf32>
    %278 = vector.shape_cast %277 : vector<2x1x128xf32> to vector<2x128xf32>
    %279 = vector.shape_cast %251 : vector<2x128xf32> to vector<2x1x128xf32>
    tpu.vector_store %arg15[%c0_91, %c3_92, %c0_93], %279 {strides = array<i32>} : memref<2x8x128xf32, #tpu.memory_space<vmem>>, vector<2x1x128xf32>,
    %c0_94 = arith.constant 0 : index
    %c4_95 = arith.constant 4 : index
    %c0_96 = arith.constant 0 : index
    %280 = vector.load %arg16[%c0_94, %c4_95, %c0_96] : memref<2x8x128xf32, #tpu.memory_space<vmem>>, vector<2x1x128xf32>
    %281 = vector.shape_cast %280 : vector<2x1x128xf32> to vector<2x128xf32>
    %282 = vector.shape_cast %276 : vector<2x128xf32> to vector<2x1x128xf32>
    tpu.vector_store %arg16[%c0_94, %c4_95, %c0_96], %282 {strides = array<i32>} : memref<2x8x128xf32, #tpu.memory_space<vmem>>, vector<2x1x128xf32>,
    %c0_97 = arith.constant 0 : index
    %c4_98 = arith.constant 4 : index
    %c0_99 = arith.constant 0 : index
    %283 = vector.load %arg14[%c0_97, %c4_98, %c0_99] : memref<2x8x1024xf32, #tpu.memory_space<vmem>>, vector<2x1x512xf32>
    %284 = vector.shape_cast %283 : vector<2x1x512xf32> to vector<2x512xf32>
    %285 = arith.truncf %251 : vector<2x128xf32> to vector<2x128xbf16>
    %cst_100 = arith.constant dense<0.000000e+00> : vector<2x512xf32>
    %286 = tpu.matmul %285, %9, %cst_100 {dimension_numbers = #tpu.dot_dimension_numbers<[1], [0], [0], [1], [0, 0, 1, 1], [], []>} : vector<2x128xbf16>, vector<128x512xbf16>, vector<2x512xf32> -> vector<2x512xf32>
    %287 = arith.addf %284, %286 : vector<2x512xf32>
    %c0_101 = arith.constant 0 : index
    %c3_102 = arith.constant 3 : index
    %c512_103 = arith.constant 512 : index
    %288 = vector.load %arg14[%c0_101, %c3_102, %c512_103] : memref<2x8x1024xf32, #tpu.memory_space<vmem>>, vector<2x1x512xf32>
    %289 = vector.shape_cast %288 : vector<2x1x512xf32> to vector<2x512xf32>
    %290 = arith.truncf %276 : vector<2x128xf32> to vector<2x128xbf16>
    %cst_104 = arith.constant dense<0.000000e+00> : vector<2x512xf32>
    %291 = tpu.matmul %290, %10, %cst_104 {dimension_numbers = #tpu.dot_dimension_numbers<[1], [0], [0], [1], [0, 0, 1, 1], [], []>} : vector<2x128xbf16>, vector<128x512xbf16>, vector<2x512xf32> -> vector<2x512xf32>
    %292 = arith.addf %289, %291 : vector<2x512xf32>
    %293 = vector.extract_strided_slice %287 {offsets = [0, 0], sizes = [2, 128], strides = [1, 1]} : vector<2x512xf32> to vector<2x128xf32>
    %294 = arith.negf %293 : vector<2x128xf32>
    %295 = math.exp %294 : vector<2x128xf32>
    %cst_105 = arith.constant 1.000000e+00 : f32
    %296 = vector.broadcast %cst_105 : f32 to vector<2x128xf32>
    %297 = arith.addf %296, %295 : vector<2x128xf32>
    %298 = arith.divf %296, %297 : vector<2x128xf32>
    %299 = vector.extract_strided_slice %287 {offsets = [0, 128], sizes = [2, 128], strides = [1, 1]} : vector<2x512xf32> to vector<2x128xf32>
    %300 = arith.negf %299 : vector<2x128xf32>
    %301 = math.exp %300 : vector<2x128xf32>
    %cst_106 = arith.constant 1.000000e+00 : f32
    %302 = vector.broadcast %cst_106 : f32 to vector<2x128xf32>
    %303 = arith.addf %302, %301 : vector<2x128xf32>
    %304 = arith.divf %302, %303 : vector<2x128xf32>
    %305 = vector.extract_strided_slice %287 {offsets = [0, 256], sizes = [2, 128], strides = [1, 1]} : vector<2x512xf32> to vector<2x128xf32>
    %306 = math.tanh %305 : vector<2x128xf32>
    %307 = vector.extract_strided_slice %287 {offsets = [0, 384], sizes = [2, 128], strides = [1, 1]} : vector<2x512xf32> to vector<2x128xf32>
    %308 = arith.negf %307 : vector<2x128xf32>
    %309 = math.exp %308 : vector<2x128xf32>
    %cst_107 = arith.constant 1.000000e+00 : f32
    %310 = vector.broadcast %cst_107 : f32 to vector<2x128xf32>
    %311 = arith.addf %310, %309 : vector<2x128xf32>
    %312 = arith.divf %310, %311 : vector<2x128xf32>
    %313 = arith.mulf %304, %249 : vector<2x128xf32>
    %314 = arith.mulf %298, %306 : vector<2x128xf32>
    %315 = arith.addf %313, %314 : vector<2x128xf32>
    %316 = math.tanh %315 : vector<2x128xf32>
    %317 = arith.mulf %312, %316 : vector<2x128xf32>
    %318 = vector.extract_strided_slice %292 {offsets = [0, 0], sizes = [2, 128], strides = [1, 1]} : vector<2x512xf32> to vector<2x128xf32>
    %319 = arith.negf %318 : vector<2x128xf32>
    %320 = math.exp %319 : vector<2x128xf32>
    %cst_108 = arith.constant 1.000000e+00 : f32
    %321 = vector.broadcast %cst_108 : f32 to vector<2x128xf32>
    %322 = arith.addf %321, %320 : vector<2x128xf32>
    %323 = arith.divf %321, %322 : vector<2x128xf32>
    %324 = vector.extract_strided_slice %292 {offsets = [0, 128], sizes = [2, 128], strides = [1, 1]} : vector<2x512xf32> to vector<2x128xf32>
    %325 = arith.negf %324 : vector<2x128xf32>
    %326 = math.exp %325 : vector<2x128xf32>
    %cst_109 = arith.constant 1.000000e+00 : f32
    %327 = vector.broadcast %cst_109 : f32 to vector<2x128xf32>
    %328 = arith.addf %327, %326 : vector<2x128xf32>
    %329 = arith.divf %327, %328 : vector<2x128xf32>
    %330 = vector.extract_strided_slice %292 {offsets = [0, 256], sizes = [2, 128], strides = [1, 1]} : vector<2x512xf32> to vector<2x128xf32>
    %331 = math.tanh %330 : vector<2x128xf32>
    %332 = vector.extract_strided_slice %292 {offsets = [0, 384], sizes = [2, 128], strides = [1, 1]} : vector<2x512xf32> to vector<2x128xf32>
    %333 = arith.negf %332 : vector<2x128xf32>
    %334 = math.exp %333 : vector<2x128xf32>
    %cst_110 = arith.constant 1.000000e+00 : f32
    %335 = vector.broadcast %cst_110 : f32 to vector<2x128xf32>
    %336 = arith.addf %335, %334 : vector<2x128xf32>
    %337 = arith.divf %335, %336 : vector<2x128xf32>
    %338 = arith.mulf %329, %274 : vector<2x128xf32>
    %339 = arith.mulf %323, %331 : vector<2x128xf32>
    %340 = arith.addf %338, %339 : vector<2x128xf32>
    %341 = math.tanh %340 : vector<2x128xf32>
    %342 = arith.mulf %337, %341 : vector<2x128xf32>
    %c0_111 = arith.constant 0 : index
    %c4_112 = arith.constant 4 : index
    %c0_113 = arith.constant 0 : index
    %343 = vector.load %arg15[%c0_111, %c4_112, %c0_113] : memref<2x8x128xf32, #tpu.memory_space<vmem>>, vector<2x1x128xf32>
    %344 = vector.shape_cast %343 : vector<2x1x128xf32> to vector<2x128xf32>
    %345 = vector.shape_cast %317 : vector<2x128xf32> to vector<2x1x128xf32>
    tpu.vector_store %arg15[%c0_111, %c4_112, %c0_113], %345 {strides = array<i32>} : memref<2x8x128xf32, #tpu.memory_space<vmem>>, vector<2x1x128xf32>,
    %c0_114 = arith.constant 0 : index
    %c3_115 = arith.constant 3 : index
    %c0_116 = arith.constant 0 : index
    %346 = vector.load %arg16[%c0_114, %c3_115, %c0_116] : memref<2x8x128xf32, #tpu.memory_space<vmem>>, vector<2x1x128xf32>
    %347 = vector.shape_cast %346 : vector<2x1x128xf32> to vector<2x128xf32>
    %348 = vector.shape_cast %342 : vector<2x128xf32> to vector<2x1x128xf32>
    tpu.vector_store %arg16[%c0_114, %c3_115, %c0_116], %348 {strides = array<i32>} : memref<2x8x128xf32, #tpu.memory_space<vmem>>, vector<2x1x128xf32>,
    %c0_117 = arith.constant 0 : index
    %c5_118 = arith.constant 5 : index
    %c0_119 = arith.constant 0 : index
    %349 = vector.load %arg14[%c0_117, %c5_118, %c0_119] : memref<2x8x1024xf32, #tpu.memory_space<vmem>>, vector<2x1x512xf32>
    %350 = vector.shape_cast %349 : vector<2x1x512xf32> to vector<2x512xf32>
    %351 = arith.truncf %317 : vector<2x128xf32> to vector<2x128xbf16>
    %cst_120 = arith.constant dense<0.000000e+00> : vector<2x512xf32>
    %352 = tpu.matmul %351, %9, %cst_120 {dimension_numbers = #tpu.dot_dimension_numbers<[1], [0], [0], [1], [0, 0, 1, 1], [], []>} : vector<2x128xbf16>, vector<128x512xbf16>, vector<2x512xf32> -> vector<2x512xf32>
    %353 = arith.addf %350, %352 : vector<2x512xf32>
    %c0_121 = arith.constant 0 : index
    %c2_122 = arith.constant 2 : index
    %c512_123 = arith.constant 512 : index
    %354 = vector.load %arg14[%c0_121, %c2_122, %c512_123] : memref<2x8x1024xf32, #tpu.memory_space<vmem>>, vector<2x1x512xf32>
    %355 = vector.shape_cast %354 : vector<2x1x512xf32> to vector<2x512xf32>
    %356 = arith.truncf %342 : vector<2x128xf32> to vector<2x128xbf16>
    %cst_124 = arith.constant dense<0.000000e+00> : vector<2x512xf32>
    %357 = tpu.matmul %356, %10, %cst_124 {dimension_numbers = #tpu.dot_dimension_numbers<[1], [0], [0], [1], [0, 0, 1, 1], [], []>} : vector<2x128xbf16>, vector<128x512xbf16>, vector<2x512xf32> -> vector<2x512xf32>
    %358 = arith.addf %355, %357 : vector<2x512xf32>
    %359 = vector.extract_strided_slice %353 {offsets = [0, 0], sizes = [2, 128], strides = [1, 1]} : vector<2x512xf32> to vector<2x128xf32>
    %360 = arith.negf %359 : vector<2x128xf32>
    %361 = math.exp %360 : vector<2x128xf32>
    %cst_125 = arith.constant 1.000000e+00 : f32
    %362 = vector.broadcast %cst_125 : f32 to vector<2x128xf32>
    %363 = arith.addf %362, %361 : vector<2x128xf32>
    %364 = arith.divf %362, %363 : vector<2x128xf32>
    %365 = vector.extract_strided_slice %353 {offsets = [0, 128], sizes = [2, 128], strides = [1, 1]} : vector<2x512xf32> to vector<2x128xf32>
    %366 = arith.negf %365 : vector<2x128xf32>
    %367 = math.exp %366 : vector<2x128xf32>
    %cst_126 = arith.constant 1.000000e+00 : f32
    %368 = vector.broadcast %cst_126 : f32 to vector<2x128xf32>
    %369 = arith.addf %368, %367 : vector<2x128xf32>
    %370 = arith.divf %368, %369 : vector<2x128xf32>
    %371 = vector.extract_strided_slice %353 {offsets = [0, 256], sizes = [2, 128], strides = [1, 1]} : vector<2x512xf32> to vector<2x128xf32>
    %372 = math.tanh %371 : vector<2x128xf32>
    %373 = vector.extract_strided_slice %353 {offsets = [0, 384], sizes = [2, 128], strides = [1, 1]} : vector<2x512xf32> to vector<2x128xf32>
    %374 = arith.negf %373 : vector<2x128xf32>
    %375 = math.exp %374 : vector<2x128xf32>
    %cst_127 = arith.constant 1.000000e+00 : f32
    %376 = vector.broadcast %cst_127 : f32 to vector<2x128xf32>
    %377 = arith.addf %376, %375 : vector<2x128xf32>
    %378 = arith.divf %376, %377 : vector<2x128xf32>
    %379 = arith.mulf %370, %315 : vector<2x128xf32>
    %380 = arith.mulf %364, %372 : vector<2x128xf32>
    %381 = arith.addf %379, %380 : vector<2x128xf32>
    %382 = math.tanh %381 : vector<2x128xf32>
    %383 = arith.mulf %378, %382 : vector<2x128xf32>
    %384 = vector.extract_strided_slice %358 {offsets = [0, 0], sizes = [2, 128], strides = [1, 1]} : vector<2x512xf32> to vector<2x128xf32>
    %385 = arith.negf %384 : vector<2x128xf32>
    %386 = math.exp %385 : vector<2x128xf32>
    %cst_128 = arith.constant 1.000000e+00 : f32
    %387 = vector.broadcast %cst_128 : f32 to vector<2x128xf32>
    %388 = arith.addf %387, %386 : vector<2x128xf32>
    %389 = arith.divf %387, %388 : vector<2x128xf32>
    %390 = vector.extract_strided_slice %358 {offsets = [0, 128], sizes = [2, 128], strides = [1, 1]} : vector<2x512xf32> to vector<2x128xf32>
    %391 = arith.negf %390 : vector<2x128xf32>
    %392 = math.exp %391 : vector<2x128xf32>
    %cst_129 = arith.constant 1.000000e+00 : f32
    %393 = vector.broadcast %cst_129 : f32 to vector<2x128xf32>
    %394 = arith.addf %393, %392 : vector<2x128xf32>
    %395 = arith.divf %393, %394 : vector<2x128xf32>
    %396 = vector.extract_strided_slice %358 {offsets = [0, 256], sizes = [2, 128], strides = [1, 1]} : vector<2x512xf32> to vector<2x128xf32>
    %397 = math.tanh %396 : vector<2x128xf32>
    %398 = vector.extract_strided_slice %358 {offsets = [0, 384], sizes = [2, 128], strides = [1, 1]} : vector<2x512xf32> to vector<2x128xf32>
    %399 = arith.negf %398 : vector<2x128xf32>
    %400 = math.exp %399 : vector<2x128xf32>
    %cst_130 = arith.constant 1.000000e+00 : f32
    %401 = vector.broadcast %cst_130 : f32 to vector<2x128xf32>
    %402 = arith.addf %401, %400 : vector<2x128xf32>
    %403 = arith.divf %401, %402 : vector<2x128xf32>
    %404 = arith.mulf %395, %340 : vector<2x128xf32>
    %405 = arith.mulf %389, %397 : vector<2x128xf32>
    %406 = arith.addf %404, %405 : vector<2x128xf32>
    %407 = math.tanh %406 : vector<2x128xf32>
    %408 = arith.mulf %403, %407 : vector<2x128xf32>
    %c0_131 = arith.constant 0 : index
    %c5_132 = arith.constant 5 : index
    %c0_133 = arith.constant 0 : index
    %409 = vector.load %arg15[%c0_131, %c5_132, %c0_133] : memref<2x8x128xf32, #tpu.memory_space<vmem>>, vector<2x1x128xf32>
    %410 = vector.shape_cast %409 : vector<2x1x128xf32> to vector<2x128xf32>
    %411 = vector.shape_cast %383 : vector<2x128xf32> to vector<2x1x128xf32>
    tpu.vector_store %arg15[%c0_131, %c5_132, %c0_133], %411 {strides = array<i32>} : memref<2x8x128xf32, #tpu.memory_space<vmem>>, vector<2x1x128xf32>,
    %c0_134 = arith.constant 0 : index
    %c2_135 = arith.constant 2 : index
    %c0_136 = arith.constant 0 : index
    %412 = vector.load %arg16[%c0_134, %c2_135, %c0_136] : memref<2x8x128xf32, #tpu.memory_space<vmem>>, vector<2x1x128xf32>
    %413 = vector.shape_cast %412 : vector<2x1x128xf32> to vector<2x128xf32>
    %414 = vector.shape_cast %408 : vector<2x128xf32> to vector<2x1x128xf32>
    tpu.vector_store %arg16[%c0_134, %c2_135, %c0_136], %414 {strides = array<i32>} : memref<2x8x128xf32, #tpu.memory_space<vmem>>, vector<2x1x128xf32>,
    %c0_137 = arith.constant 0 : index
    %c6_138 = arith.constant 6 : index
    %c0_139 = arith.constant 0 : index
    %415 = vector.load %arg14[%c0_137, %c6_138, %c0_139] : memref<2x8x1024xf32, #tpu.memory_space<vmem>>, vector<2x1x512xf32>
    %416 = vector.shape_cast %415 : vector<2x1x512xf32> to vector<2x512xf32>
    %417 = arith.truncf %383 : vector<2x128xf32> to vector<2x128xbf16>
    %cst_140 = arith.constant dense<0.000000e+00> : vector<2x512xf32>
    %418 = tpu.matmul %417, %9, %cst_140 {dimension_numbers = #tpu.dot_dimension_numbers<[1], [0], [0], [1], [0, 0, 1, 1], [], []>} : vector<2x128xbf16>, vector<128x512xbf16>, vector<2x512xf32> -> vector<2x512xf32>
    %419 = arith.addf %416, %418 : vector<2x512xf32>
    %c0_141 = arith.constant 0 : index
    %c1_142 = arith.constant 1 : index
    %c512_143 = arith.constant 512 : index
    %420 = vector.load %arg14[%c0_141, %c1_142, %c512_143] : memref<2x8x1024xf32, #tpu.memory_space<vmem>>, vector<2x1x512xf32>
    %421 = vector.shape_cast %420 : vector<2x1x512xf32> to vector<2x512xf32>
    %422 = arith.truncf %408 : vector<2x128xf32> to vector<2x128xbf16>
    %cst_144 = arith.constant dense<0.000000e+00> : vector<2x512xf32>
    %423 = tpu.matmul %422, %10, %cst_144 {dimension_numbers = #tpu.dot_dimension_numbers<[1], [0], [0], [1], [0, 0, 1, 1], [], []>} : vector<2x128xbf16>, vector<128x512xbf16>, vector<2x512xf32> -> vector<2x512xf32>
    %424 = arith.addf %421, %423 : vector<2x512xf32>
    %425 = vector.extract_strided_slice %419 {offsets = [0, 0], sizes = [2, 128], strides = [1, 1]} : vector<2x512xf32> to vector<2x128xf32>
    %426 = arith.negf %425 : vector<2x128xf32>
    %427 = math.exp %426 : vector<2x128xf32>
    %cst_145 = arith.constant 1.000000e+00 : f32
    %428 = vector.broadcast %cst_145 : f32 to vector<2x128xf32>
    %429 = arith.addf %428, %427 : vector<2x128xf32>
    %430 = arith.divf %428, %429 : vector<2x128xf32>
    %431 = vector.extract_strided_slice %419 {offsets = [0, 128], sizes = [2, 128], strides = [1, 1]} : vector<2x512xf32> to vector<2x128xf32>
    %432 = arith.negf %431 : vector<2x128xf32>
    %433 = math.exp %432 : vector<2x128xf32>
    %cst_146 = arith.constant 1.000000e+00 : f32
    %434 = vector.broadcast %cst_146 : f32 to vector<2x128xf32>
    %435 = arith.addf %434, %433 : vector<2x128xf32>
    %436 = arith.divf %434, %435 : vector<2x128xf32>
    %437 = vector.extract_strided_slice %419 {offsets = [0, 256], sizes = [2, 128], strides = [1, 1]} : vector<2x512xf32> to vector<2x128xf32>
    %438 = math.tanh %437 : vector<2x128xf32>
    %439 = vector.extract_strided_slice %419 {offsets = [0, 384], sizes = [2, 128], strides = [1, 1]} : vector<2x512xf32> to vector<2x128xf32>
    %440 = arith.negf %439 : vector<2x128xf32>
    %441 = math.exp %440 : vector<2x128xf32>
    %cst_147 = arith.constant 1.000000e+00 : f32
    %442 = vector.broadcast %cst_147 : f32 to vector<2x128xf32>
    %443 = arith.addf %442, %441 : vector<2x128xf32>
    %444 = arith.divf %442, %443 : vector<2x128xf32>
    %445 = arith.mulf %436, %381 : vector<2x128xf32>
    %446 = arith.mulf %430, %438 : vector<2x128xf32>
    %447 = arith.addf %445, %446 : vector<2x128xf32>
    %448 = math.tanh %447 : vector<2x128xf32>
    %449 = arith.mulf %444, %448 : vector<2x128xf32>
    %450 = vector.extract_strided_slice %424 {offsets = [0, 0], sizes = [2, 128], strides = [1, 1]} : vector<2x512xf32> to vector<2x128xf32>
    %451 = arith.negf %450 : vector<2x128xf32>
    %452 = math.exp %451 : vector<2x128xf32>
    %cst_148 = arith.constant 1.000000e+00 : f32
    %453 = vector.broadcast %cst_148 : f32 to vector<2x128xf32>
    %454 = arith.addf %453, %452 : vector<2x128xf32>
    %455 = arith.divf %453, %454 : vector<2x128xf32>
    %456 = vector.extract_strided_slice %424 {offsets = [0, 128], sizes = [2, 128], strides = [1, 1]} : vector<2x512xf32> to vector<2x128xf32>
    %457 = arith.negf %456 : vector<2x128xf32>
    %458 = math.exp %457 : vector<2x128xf32>
    %cst_149 = arith.constant 1.000000e+00 : f32
    %459 = vector.broadcast %cst_149 : f32 to vector<2x128xf32>
    %460 = arith.addf %459, %458 : vector<2x128xf32>
    %461 = arith.divf %459, %460 : vector<2x128xf32>
    %462 = vector.extract_strided_slice %424 {offsets = [0, 256], sizes = [2, 128], strides = [1, 1]} : vector<2x512xf32> to vector<2x128xf32>
    %463 = math.tanh %462 : vector<2x128xf32>
    %464 = vector.extract_strided_slice %424 {offsets = [0, 384], sizes = [2, 128], strides = [1, 1]} : vector<2x512xf32> to vector<2x128xf32>
    %465 = arith.negf %464 : vector<2x128xf32>
    %466 = math.exp %465 : vector<2x128xf32>
    %cst_150 = arith.constant 1.000000e+00 : f32
    %467 = vector.broadcast %cst_150 : f32 to vector<2x128xf32>
    %468 = arith.addf %467, %466 : vector<2x128xf32>
    %469 = arith.divf %467, %468 : vector<2x128xf32>
    %470 = arith.mulf %461, %406 : vector<2x128xf32>
    %471 = arith.mulf %455, %463 : vector<2x128xf32>
    %472 = arith.addf %470, %471 : vector<2x128xf32>
    %473 = math.tanh %472 : vector<2x128xf32>
    %474 = arith.mulf %469, %473 : vector<2x128xf32>
    %c0_151 = arith.constant 0 : index
    %c6_152 = arith.constant 6 : index
    %c0_153 = arith.constant 0 : index
    %475 = vector.load %arg15[%c0_151, %c6_152, %c0_153] : memref<2x8x128xf32, #tpu.memory_space<vmem>>, vector<2x1x128xf32>
    %476 = vector.shape_cast %475 : vector<2x1x128xf32> to vector<2x128xf32>
    %477 = vector.shape_cast %449 : vector<2x128xf32> to vector<2x1x128xf32>
    tpu.vector_store %arg15[%c0_151, %c6_152, %c0_153], %477 {strides = array<i32>} : memref<2x8x128xf32, #tpu.memory_space<vmem>>, vector<2x1x128xf32>,
    %c0_154 = arith.constant 0 : index
    %c1_155 = arith.constant 1 : index
    %c0_156 = arith.constant 0 : index
    %478 = vector.load %arg16[%c0_154, %c1_155, %c0_156] : memref<2x8x128xf32, #tpu.memory_space<vmem>>, vector<2x1x128xf32>
    %479 = vector.shape_cast %478 : vector<2x1x128xf32> to vector<2x128xf32>
    %480 = vector.shape_cast %474 : vector<2x128xf32> to vector<2x1x128xf32>
    tpu.vector_store %arg16[%c0_154, %c1_155, %c0_156], %480 {strides = array<i32>} : memref<2x8x128xf32, #tpu.memory_space<vmem>>, vector<2x1x128xf32>,
    %c0_157 = arith.constant 0 : index
    %c7_158 = arith.constant 7 : index
    %c0_159 = arith.constant 0 : index
    %481 = vector.load %arg14[%c0_157, %c7_158, %c0_159] : memref<2x8x1024xf32, #tpu.memory_space<vmem>>, vector<2x1x512xf32>
    %482 = vector.shape_cast %481 : vector<2x1x512xf32> to vector<2x512xf32>
    %483 = arith.truncf %449 : vector<2x128xf32> to vector<2x128xbf16>
    %cst_160 = arith.constant dense<0.000000e+00> : vector<2x512xf32>
    %484 = tpu.matmul %483, %9, %cst_160 {dimension_numbers = #tpu.dot_dimension_numbers<[1], [0], [0], [1], [0, 0, 1, 1], [], []>} : vector<2x128xbf16>, vector<128x512xbf16>, vector<2x512xf32> -> vector<2x512xf32>
    %485 = arith.addf %482, %484 : vector<2x512xf32>
    %c0_161 = arith.constant 0 : index
    %c0_162 = arith.constant 0 : index
    %c512_163 = arith.constant 512 : index
    %486 = vector.load %arg14[%c0_161, %c0_162, %c512_163] : memref<2x8x1024xf32, #tpu.memory_space<vmem>>, vector<2x1x512xf32>
    %487 = vector.shape_cast %486 : vector<2x1x512xf32> to vector<2x512xf32>
    %488 = arith.truncf %474 : vector<2x128xf32> to vector<2x128xbf16>
    %cst_164 = arith.constant dense<0.000000e+00> : vector<2x512xf32>
    %489 = tpu.matmul %488, %10, %cst_164 {dimension_numbers = #tpu.dot_dimension_numbers<[1], [0], [0], [1], [0, 0, 1, 1], [], []>} : vector<2x128xbf16>, vector<128x512xbf16>, vector<2x512xf32> -> vector<2x512xf32>
    %490 = arith.addf %487, %489 : vector<2x512xf32>
    %491 = vector.extract_strided_slice %485 {offsets = [0, 0], sizes = [2, 128], strides = [1, 1]} : vector<2x512xf32> to vector<2x128xf32>
    %492 = arith.negf %491 : vector<2x128xf32>
    %493 = math.exp %492 : vector<2x128xf32>
    %cst_165 = arith.constant 1.000000e+00 : f32
    %494 = vector.broadcast %cst_165 : f32 to vector<2x128xf32>
    %495 = arith.addf %494, %493 : vector<2x128xf32>
    %496 = arith.divf %494, %495 : vector<2x128xf32>
    %497 = vector.extract_strided_slice %485 {offsets = [0, 128], sizes = [2, 128], strides = [1, 1]} : vector<2x512xf32> to vector<2x128xf32>
    %498 = arith.negf %497 : vector<2x128xf32>
    %499 = math.exp %498 : vector<2x128xf32>
    %cst_166 = arith.constant 1.000000e+00 : f32
    %500 = vector.broadcast %cst_166 : f32 to vector<2x128xf32>
    %501 = arith.addf %500, %499 : vector<2x128xf32>
    %502 = arith.divf %500, %501 : vector<2x128xf32>
    %503 = vector.extract_strided_slice %485 {offsets = [0, 256], sizes = [2, 128], strides = [1, 1]} : vector<2x512xf32> to vector<2x128xf32>
    %504 = math.tanh %503 : vector<2x128xf32>
    %505 = vector.extract_strided_slice %485 {offsets = [0, 384], sizes = [2, 128], strides = [1, 1]} : vector<2x512xf32> to vector<2x128xf32>
    %506 = arith.negf %505 : vector<2x128xf32>
    %507 = math.exp %506 : vector<2x128xf32>
    %cst_167 = arith.constant 1.000000e+00 : f32
    %508 = vector.broadcast %cst_167 : f32 to vector<2x128xf32>
    %509 = arith.addf %508, %507 : vector<2x128xf32>
    %510 = arith.divf %508, %509 : vector<2x128xf32>
    %511 = arith.mulf %502, %447 : vector<2x128xf32>
    %512 = arith.mulf %496, %504 : vector<2x128xf32>
    %513 = arith.addf %511, %512 : vector<2x128xf32>
    %514 = math.tanh %513 : vector<2x128xf32>
    %515 = arith.mulf %510, %514 : vector<2x128xf32>
    %516 = vector.extract_strided_slice %490 {offsets = [0, 0], sizes = [2, 128], strides = [1, 1]} : vector<2x512xf32> to vector<2x128xf32>
    %517 = arith.negf %516 : vector<2x128xf32>
    %518 = math.exp %517 : vector<2x128xf32>
    %cst_168 = arith.constant 1.000000e+00 : f32
    %519 = vector.broadcast %cst_168 : f32 to vector<2x128xf32>
    %520 = arith.addf %519, %518 : vector<2x128xf32>
    %521 = arith.divf %519, %520 : vector<2x128xf32>
    %522 = vector.extract_strided_slice %490 {offsets = [0, 128], sizes = [2, 128], strides = [1, 1]} : vector<2x512xf32> to vector<2x128xf32>
    %523 = arith.negf %522 : vector<2x128xf32>
    %524 = math.exp %523 : vector<2x128xf32>
    %cst_169 = arith.constant 1.000000e+00 : f32
    %525 = vector.broadcast %cst_169 : f32 to vector<2x128xf32>
    %526 = arith.addf %525, %524 : vector<2x128xf32>
    %527 = arith.divf %525, %526 : vector<2x128xf32>
    %528 = vector.extract_strided_slice %490 {offsets = [0, 256], sizes = [2, 128], strides = [1, 1]} : vector<2x512xf32> to vector<2x128xf32>
    %529 = math.tanh %528 : vector<2x128xf32>
    %530 = vector.extract_strided_slice %490 {offsets = [0, 384], sizes = [2, 128], strides = [1, 1]} : vector<2x512xf32> to vector<2x128xf32>
    %531 = arith.negf %530 : vector<2x128xf32>
    %532 = math.exp %531 : vector<2x128xf32>
    %cst_170 = arith.constant 1.000000e+00 : f32
    %533 = vector.broadcast %cst_170 : f32 to vector<2x128xf32>
    %534 = arith.addf %533, %532 : vector<2x128xf32>
    %535 = arith.divf %533, %534 : vector<2x128xf32>
    %536 = arith.mulf %527, %472 : vector<2x128xf32>
    %537 = arith.mulf %521, %529 : vector<2x128xf32>
    %538 = arith.addf %536, %537 : vector<2x128xf32>
    %539 = math.tanh %538 : vector<2x128xf32>
    %540 = arith.mulf %535, %539 : vector<2x128xf32>
    %c0_171 = arith.constant 0 : index
    %c7_172 = arith.constant 7 : index
    %c0_173 = arith.constant 0 : index
    %541 = vector.load %arg15[%c0_171, %c7_172, %c0_173] : memref<2x8x128xf32, #tpu.memory_space<vmem>>, vector<2x1x128xf32>
    %542 = vector.shape_cast %541 : vector<2x1x128xf32> to vector<2x128xf32>
    %543 = vector.shape_cast %515 : vector<2x128xf32> to vector<2x1x128xf32>
    tpu.vector_store %arg15[%c0_171, %c7_172, %c0_173], %543 {strides = array<i32>} : memref<2x8x128xf32, #tpu.memory_space<vmem>>, vector<2x1x128xf32>,
    %c0_174 = arith.constant 0 : index
    %c0_175 = arith.constant 0 : index
    %c0_176 = arith.constant 0 : index
    %544 = vector.load %arg16[%c0_174, %c0_175, %c0_176] : memref<2x8x128xf32, #tpu.memory_space<vmem>>, vector<2x1x128xf32>
    %545 = vector.shape_cast %544 : vector<2x1x128xf32> to vector<2x128xf32>
    %546 = vector.shape_cast %540 : vector<2x128xf32> to vector<2x1x128xf32>
    tpu.vector_store %arg16[%c0_174, %c0_175, %c0_176], %546 {strides = array<i32>} : memref<2x8x128xf32, #tpu.memory_space<vmem>>, vector<2x1x128xf32>,
    %c0_177 = arith.constant 0 : index
    %c0_178 = arith.constant 0 : index
    %c0_179 = arith.constant 0 : index
    %547 = vector.load %arg15[%c0_177, %c0_178, %c0_179] : memref<2x8x128xf32, #tpu.memory_space<vmem>>, vector<2x8x128xf32>
    %548 = vector.shape_cast %547 : vector<2x8x128xf32> to vector<16x128xf32>
    %549 = arith.truncf %548 : vector<16x128xf32> to vector<16x128xbf16>
    %c0_180 = arith.constant 0 : index
    %c0_181 = arith.constant 0 : index
    %c0_182 = arith.constant 0 : index
    %550 = vector.load %arg16[%c0_180, %c0_181, %c0_182] : memref<2x8x128xf32, #tpu.memory_space<vmem>>, vector<2x8x128xf32>
    %551 = vector.shape_cast %550 : vector<2x8x128xf32> to vector<16x128xf32>
    %552 = arith.truncf %551 : vector<16x128xf32> to vector<16x128xbf16>
    %c0_183 = arith.constant 0 : index
    %c0_184 = arith.constant 0 : index
    %553 = vector.load %arg8[%c0_183, %c0_184] : memref<128x128xbf16, #tpu.memory_space<vmem>>, vector<128x128xbf16>
    %cst_185 = arith.constant dense<0.000000e+00> : vector<16x128xf32>
    %554 = tpu.matmul %549, %553, %cst_185 {dimension_numbers = #tpu.dot_dimension_numbers<[1], [0], [0], [1], [0, 0, 1, 1], [], []>} : vector<16x128xbf16>, vector<128x128xbf16>, vector<16x128xf32> -> vector<16x128xf32>
    %c0_186 = arith.constant 0 : index
    %c0_187 = arith.constant 0 : index
    %555 = vector.load %arg9[%c0_186, %c0_187] : memref<128x128xbf16, #tpu.memory_space<vmem>>, vector<128x128xbf16>
    %cst_188 = arith.constant dense<0.000000e+00> : vector<16x128xf32>
    %556 = tpu.matmul %552, %555, %cst_188 {dimension_numbers = #tpu.dot_dimension_numbers<[1], [0], [0], [1], [0, 0, 1, 1], [], []>} : vector<16x128xbf16>, vector<128x128xbf16>, vector<16x128xf32> -> vector<16x128xf32>
    %557 = arith.addf %554, %556 : vector<16x128xf32>
    %c0_189 = arith.constant 0 : index
    %c0_190 = arith.constant 0 : index
    %558 = vector.load %arg10[%c0_189, %c0_190] : memref<1x128xf32, #tpu.memory_space<vmem>>, vector<1x128xf32>
    %559 = vector.broadcast %558 : vector<1x128xf32> to vector<16x128xf32>
    %560 = arith.addf %557, %559 : vector<16x128xf32>
    %561 = vector.shape_cast %560 : vector<16x128xf32> to vector<2x8x128xf32>
    %c0_191 = arith.constant 0 : index
    %c0_192 = arith.constant 0 : index
    %c0_193 = arith.constant 0 : index
    %562 = vector.load %arg17[%c0_191, %c0_192, %c0_193] : memref<2x8x128xf32, #tpu.memory_space<vmem>>, vector<2x8x128xf32>
    tpu.vector_store %arg17[%c0_191, %c0_192, %c0_193], %561 {strides = array<i32>} : memref<2x8x128xf32, #tpu.memory_space<vmem>>, vector<2x8x128xf32>,
    %c0_194 = arith.constant 0 : index
    %c0_195 = arith.constant 0 : index
    %563 = vector.load %arg11[%c0_194, %c0_195] : memref<8x128xf32, #tpu.memory_space<vmem>>, vector<8x128xf32>
    %564 = tpu.iota {dimensions = array<i32: 1>} : vector<1x8x128xi32>
    %565 = tpu.iota {dimensions = array<i32: 2>} : vector<1x8x128xi32>
    %566 = arith.cmpi eq, %564, %565 : vector<1x8x128xi32>
    %c0_196 = arith.constant 0 : index
    %c0_197 = arith.constant 0 : index
    %c0_198 = arith.constant 0 : index
    %567 = vector.load %arg17[%c0_196, %c0_197, %c0_198] : memref<2x8x128xf32, #tpu.memory_space<vmem>>, vector<2x1x128xf32>
    %568 = vector.shape_cast %567 : vector<2x1x128xf32> to vector<2x128xf32>
    %c0_i32 = arith.constant 0 : i32
    %569 = vector.broadcast %c0_i32 : i32 to vector<2x128xi32>
    %c0_199 = arith.constant 0 : index
    %c0_200 = arith.constant 0 : index
    %c0_201 = arith.constant 0 : index
    %570 = vector.load %arg18[%c0_199, %c0_200, %c0_201] : memref<2x8x128xi32, #tpu.memory_space<vmem>>, vector<2x1x128xi32>
    %571 = vector.shape_cast %570 : vector<2x1x128xi32> to vector<2x128xi32>
    %572 = vector.shape_cast %569 : vector<2x128xi32> to vector<2x1x128xi32>
    tpu.vector_store %arg18[%c0_199, %c0_200, %c0_201], %572 {strides = array<i32>} : memref<2x8x128xi32, #tpu.memory_space<vmem>>, vector<2x1x128xi32>,
    %573 = vector.shape_cast %568 : vector<2x128xf32> to vector<2x1x128xf32>
    %cst_202 = arith.constant -1.000000e+30 : f32
    %574 = vector.shape_cast %566 : vector<1x8x128xi1> to vector<1x8x128xi1>
    %575 = vector.broadcast %574 : vector<1x8x128xi1> to vector<2x8x128xi1>
    %576 = vector.shape_cast %573 : vector<2x1x128xf32> to vector<2x1x128xf32>
    %577 = vector.broadcast %576 : vector<2x1x128xf32> to vector<2x8x128xf32>
    %578 = vector.broadcast %cst_202 : f32 to vector<2x8x128xf32>
    %579 = arith.select %575, %577, %578 : vector<2x8x128xi1>, vector<2x8x128xf32>
    %cst_203 = arith.constant dense<0xFF800000> : vector<2x8xf32>
    %580 = vector.multi_reduction <maximumf>, %579, %cst_203 [2] : vector<2x8x128xf32> to vector<2x8xf32>
    %581 = vector.shape_cast %580 : vector<2x8xf32> to vector<2x8x1xf32>
    %582 = vector.shape_cast %563 : vector<8x128xf32> to vector<1x8x128xf32>
    %583 = vector.broadcast %581 : vector<2x8x1xf32> to vector<2x8x128xf32>
    %584 = vector.broadcast %582 : vector<1x8x128xf32> to vector<2x8x128xf32>
    %585 = arith.addf %583, %584 : vector<2x8x128xf32>
    %cst_204 = arith.constant dense<0xFF800000> : vector<2x128xf32>
    %586 = vector.multi_reduction <maximumf>, %585, %cst_204 [1] : vector<2x8x128xf32> to vector<2x128xf32>
    %587 = vector.shape_cast %586 : vector<2x128xf32> to vector<2x1x128xf32>
    %588 = vector.broadcast %587 : vector<2x1x128xf32> to vector<2x8x128xf32>
    %589 = arith.cmpf oeq, %585, %588 : vector<2x8x128xf32>
    %c8_i32 = arith.constant 8 : i32
    %590 = vector.shape_cast %564 : vector<1x8x128xi32> to vector<1x8x128xi32>
    %591 = vector.broadcast %590 : vector<1x8x128xi32> to vector<2x8x128xi32>
    %592 = vector.broadcast %c8_i32 : i32 to vector<2x8x128xi32>
    %593 = arith.select %589, %591, %592 : vector<2x8x128xi1>, vector<2x8x128xi32>
    %cst_205 = arith.constant dense<2147483647> : vector<2x128xi32>
    %594 = vector.multi_reduction <minsi>, %593, %cst_205 [1] : vector<2x8x128xi32> to vector<2x128xi32>
    %c0_206 = arith.constant 0 : index
    %c1_207 = arith.constant 1 : index
    %c0_208 = arith.constant 0 : index
    %595 = vector.load %arg17[%c0_206, %c1_207, %c0_208] : memref<2x8x128xf32, #tpu.memory_space<vmem>>, vector<2x1x128xf32>
    %596 = vector.shape_cast %595 : vector<2x1x128xf32> to vector<2x128xf32>
    %597 = vector.shape_cast %587 : vector<2x1x128xf32> to vector<2x128xf32>
    %598 = arith.addf %596, %597 : vector<2x128xf32>
    %c0_209 = arith.constant 0 : index
    %c1_210 = arith.constant 1 : index
    %c0_211 = arith.constant 0 : index
    %599 = vector.load %arg18[%c0_209, %c1_210, %c0_211] : memref<2x8x128xi32, #tpu.memory_space<vmem>>, vector<2x1x128xi32>
    %600 = vector.shape_cast %599 : vector<2x1x128xi32> to vector<2x128xi32>
    %601 = vector.shape_cast %594 : vector<2x128xi32> to vector<2x1x128xi32>
    tpu.vector_store %arg18[%c0_209, %c1_210, %c0_211], %601 {strides = array<i32>} : memref<2x8x128xi32, #tpu.memory_space<vmem>>, vector<2x1x128xi32>,
    %602 = vector.shape_cast %598 : vector<2x128xf32> to vector<2x1x128xf32>
    %cst_212 = arith.constant -1.000000e+30 : f32
    %603 = vector.shape_cast %566 : vector<1x8x128xi1> to vector<1x8x128xi1>
    %604 = vector.broadcast %603 : vector<1x8x128xi1> to vector<2x8x128xi1>
    %605 = vector.shape_cast %602 : vector<2x1x128xf32> to vector<2x1x128xf32>
    %606 = vector.broadcast %605 : vector<2x1x128xf32> to vector<2x8x128xf32>
    %607 = vector.broadcast %cst_212 : f32 to vector<2x8x128xf32>
    %608 = arith.select %604, %606, %607 : vector<2x8x128xi1>, vector<2x8x128xf32>
    %cst_213 = arith.constant dense<0xFF800000> : vector<2x8xf32>
    %609 = vector.multi_reduction <maximumf>, %608, %cst_213 [2] : vector<2x8x128xf32> to vector<2x8xf32>
    %610 = vector.shape_cast %609 : vector<2x8xf32> to vector<2x8x1xf32>
    %611 = vector.shape_cast %563 : vector<8x128xf32> to vector<1x8x128xf32>
    %612 = vector.broadcast %610 : vector<2x8x1xf32> to vector<2x8x128xf32>
    %613 = vector.broadcast %611 : vector<1x8x128xf32> to vector<2x8x128xf32>
    %614 = arith.addf %612, %613 : vector<2x8x128xf32>
    %cst_214 = arith.constant dense<0xFF800000> : vector<2x128xf32>
    %615 = vector.multi_reduction <maximumf>, %614, %cst_214 [1] : vector<2x8x128xf32> to vector<2x128xf32>
    %616 = vector.shape_cast %615 : vector<2x128xf32> to vector<2x1x128xf32>
    %617 = vector.broadcast %616 : vector<2x1x128xf32> to vector<2x8x128xf32>
    %618 = arith.cmpf oeq, %614, %617 : vector<2x8x128xf32>
    %c8_i32_215 = arith.constant 8 : i32
    %619 = vector.shape_cast %564 : vector<1x8x128xi32> to vector<1x8x128xi32>
    %620 = vector.broadcast %619 : vector<1x8x128xi32> to vector<2x8x128xi32>
    %621 = vector.broadcast %c8_i32_215 : i32 to vector<2x8x128xi32>
    %622 = arith.select %618, %620, %621 : vector<2x8x128xi1>, vector<2x8x128xi32>
    %cst_216 = arith.constant dense<2147483647> : vector<2x128xi32>
    %623 = vector.multi_reduction <minsi>, %622, %cst_216 [1] : vector<2x8x128xi32> to vector<2x128xi32>
    %c0_217 = arith.constant 0 : index
    %c2_218 = arith.constant 2 : index
    %c0_219 = arith.constant 0 : index
    %624 = vector.load %arg17[%c0_217, %c2_218, %c0_219] : memref<2x8x128xf32, #tpu.memory_space<vmem>>, vector<2x1x128xf32>
    %625 = vector.shape_cast %624 : vector<2x1x128xf32> to vector<2x128xf32>
    %626 = vector.shape_cast %616 : vector<2x1x128xf32> to vector<2x128xf32>
    %627 = arith.addf %625, %626 : vector<2x128xf32>
    %c0_220 = arith.constant 0 : index
    %c2_221 = arith.constant 2 : index
    %c0_222 = arith.constant 0 : index
    %628 = vector.load %arg18[%c0_220, %c2_221, %c0_222] : memref<2x8x128xi32, #tpu.memory_space<vmem>>, vector<2x1x128xi32>
    %629 = vector.shape_cast %628 : vector<2x1x128xi32> to vector<2x128xi32>
    %630 = vector.shape_cast %623 : vector<2x128xi32> to vector<2x1x128xi32>
    tpu.vector_store %arg18[%c0_220, %c2_221, %c0_222], %630 {strides = array<i32>} : memref<2x8x128xi32, #tpu.memory_space<vmem>>, vector<2x1x128xi32>,
    %631 = vector.shape_cast %627 : vector<2x128xf32> to vector<2x1x128xf32>
    %cst_223 = arith.constant -1.000000e+30 : f32
    %632 = vector.shape_cast %566 : vector<1x8x128xi1> to vector<1x8x128xi1>
    %633 = vector.broadcast %632 : vector<1x8x128xi1> to vector<2x8x128xi1>
    %634 = vector.shape_cast %631 : vector<2x1x128xf32> to vector<2x1x128xf32>
    %635 = vector.broadcast %634 : vector<2x1x128xf32> to vector<2x8x128xf32>
    %636 = vector.broadcast %cst_223 : f32 to vector<2x8x128xf32>
    %637 = arith.select %633, %635, %636 : vector<2x8x128xi1>, vector<2x8x128xf32>
    %cst_224 = arith.constant dense<0xFF800000> : vector<2x8xf32>
    %638 = vector.multi_reduction <maximumf>, %637, %cst_224 [2] : vector<2x8x128xf32> to vector<2x8xf32>
    %639 = vector.shape_cast %638 : vector<2x8xf32> to vector<2x8x1xf32>
    %640 = vector.shape_cast %563 : vector<8x128xf32> to vector<1x8x128xf32>
    %641 = vector.broadcast %639 : vector<2x8x1xf32> to vector<2x8x128xf32>
    %642 = vector.broadcast %640 : vector<1x8x128xf32> to vector<2x8x128xf32>
    %643 = arith.addf %641, %642 : vector<2x8x128xf32>
    %cst_225 = arith.constant dense<0xFF800000> : vector<2x128xf32>
    %644 = vector.multi_reduction <maximumf>, %643, %cst_225 [1] : vector<2x8x128xf32> to vector<2x128xf32>
    %645 = vector.shape_cast %644 : vector<2x128xf32> to vector<2x1x128xf32>
    %646 = vector.broadcast %645 : vector<2x1x128xf32> to vector<2x8x128xf32>
    %647 = arith.cmpf oeq, %643, %646 : vector<2x8x128xf32>
    %c8_i32_226 = arith.constant 8 : i32
    %648 = vector.shape_cast %564 : vector<1x8x128xi32> to vector<1x8x128xi32>
    %649 = vector.broadcast %648 : vector<1x8x128xi32> to vector<2x8x128xi32>
    %650 = vector.broadcast %c8_i32_226 : i32 to vector<2x8x128xi32>
    %651 = arith.select %647, %649, %650 : vector<2x8x128xi1>, vector<2x8x128xi32>
    %cst_227 = arith.constant dense<2147483647> : vector<2x128xi32>
    %652 = vector.multi_reduction <minsi>, %651, %cst_227 [1] : vector<2x8x128xi32> to vector<2x128xi32>
    %c0_228 = arith.constant 0 : index
    %c3_229 = arith.constant 3 : index
    %c0_230 = arith.constant 0 : index
    %653 = vector.load %arg17[%c0_228, %c3_229, %c0_230] : memref<2x8x128xf32, #tpu.memory_space<vmem>>, vector<2x1x128xf32>
    %654 = vector.shape_cast %653 : vector<2x1x128xf32> to vector<2x128xf32>
    %655 = vector.shape_cast %645 : vector<2x1x128xf32> to vector<2x128xf32>
    %656 = arith.addf %654, %655 : vector<2x128xf32>
    %c0_231 = arith.constant 0 : index
    %c3_232 = arith.constant 3 : index
    %c0_233 = arith.constant 0 : index
    %657 = vector.load %arg18[%c0_231, %c3_232, %c0_233] : memref<2x8x128xi32, #tpu.memory_space<vmem>>, vector<2x1x128xi32>
    %658 = vector.shape_cast %657 : vector<2x1x128xi32> to vector<2x128xi32>
    %659 = vector.shape_cast %652 : vector<2x128xi32> to vector<2x1x128xi32>
    tpu.vector_store %arg18[%c0_231, %c3_232, %c0_233], %659 {strides = array<i32>} : memref<2x8x128xi32, #tpu.memory_space<vmem>>, vector<2x1x128xi32>,
    %660 = vector.shape_cast %656 : vector<2x128xf32> to vector<2x1x128xf32>
    %cst_234 = arith.constant -1.000000e+30 : f32
    %661 = vector.shape_cast %566 : vector<1x8x128xi1> to vector<1x8x128xi1>
    %662 = vector.broadcast %661 : vector<1x8x128xi1> to vector<2x8x128xi1>
    %663 = vector.shape_cast %660 : vector<2x1x128xf32> to vector<2x1x128xf32>
    %664 = vector.broadcast %663 : vector<2x1x128xf32> to vector<2x8x128xf32>
    %665 = vector.broadcast %cst_234 : f32 to vector<2x8x128xf32>
    %666 = arith.select %662, %664, %665 : vector<2x8x128xi1>, vector<2x8x128xf32>
    %cst_235 = arith.constant dense<0xFF800000> : vector<2x8xf32>
    %667 = vector.multi_reduction <maximumf>, %666, %cst_235 [2] : vector<2x8x128xf32> to vector<2x8xf32>
    %668 = vector.shape_cast %667 : vector<2x8xf32> to vector<2x8x1xf32>
    %669 = vector.shape_cast %563 : vector<8x128xf32> to vector<1x8x128xf32>
    %670 = vector.broadcast %668 : vector<2x8x1xf32> to vector<2x8x128xf32>
    %671 = vector.broadcast %669 : vector<1x8x128xf32> to vector<2x8x128xf32>
    %672 = arith.addf %670, %671 : vector<2x8x128xf32>
    %cst_236 = arith.constant dense<0xFF800000> : vector<2x128xf32>
    %673 = vector.multi_reduction <maximumf>, %672, %cst_236 [1] : vector<2x8x128xf32> to vector<2x128xf32>
    %674 = vector.shape_cast %673 : vector<2x128xf32> to vector<2x1x128xf32>
    %675 = vector.broadcast %674 : vector<2x1x128xf32> to vector<2x8x128xf32>
    %676 = arith.cmpf oeq, %672, %675 : vector<2x8x128xf32>
    %c8_i32_237 = arith.constant 8 : i32
    %677 = vector.shape_cast %564 : vector<1x8x128xi32> to vector<1x8x128xi32>
    %678 = vector.broadcast %677 : vector<1x8x128xi32> to vector<2x8x128xi32>
    %679 = vector.broadcast %c8_i32_237 : i32 to vector<2x8x128xi32>
    %680 = arith.select %676, %678, %679 : vector<2x8x128xi1>, vector<2x8x128xi32>
    %cst_238 = arith.constant dense<2147483647> : vector<2x128xi32>
    %681 = vector.multi_reduction <minsi>, %680, %cst_238 [1] : vector<2x8x128xi32> to vector<2x128xi32>
    %c0_239 = arith.constant 0 : index
    %c4_240 = arith.constant 4 : index
    %c0_241 = arith.constant 0 : index
    %682 = vector.load %arg17[%c0_239, %c4_240, %c0_241] : memref<2x8x128xf32, #tpu.memory_space<vmem>>, vector<2x1x128xf32>
    %683 = vector.shape_cast %682 : vector<2x1x128xf32> to vector<2x128xf32>
    %684 = vector.shape_cast %674 : vector<2x1x128xf32> to vector<2x128xf32>
    %685 = arith.addf %683, %684 : vector<2x128xf32>
    %c0_242 = arith.constant 0 : index
    %c4_243 = arith.constant 4 : index
    %c0_244 = arith.constant 0 : index
    %686 = vector.load %arg18[%c0_242, %c4_243, %c0_244] : memref<2x8x128xi32, #tpu.memory_space<vmem>>, vector<2x1x128xi32>
    %687 = vector.shape_cast %686 : vector<2x1x128xi32> to vector<2x128xi32>
    %688 = vector.shape_cast %681 : vector<2x128xi32> to vector<2x1x128xi32>
    tpu.vector_store %arg18[%c0_242, %c4_243, %c0_244], %688 {strides = array<i32>} : memref<2x8x128xi32, #tpu.memory_space<vmem>>, vector<2x1x128xi32>,
    %689 = vector.shape_cast %685 : vector<2x128xf32> to vector<2x1x128xf32>
    %cst_245 = arith.constant -1.000000e+30 : f32
    %690 = vector.shape_cast %566 : vector<1x8x128xi1> to vector<1x8x128xi1>
    %691 = vector.broadcast %690 : vector<1x8x128xi1> to vector<2x8x128xi1>
    %692 = vector.shape_cast %689 : vector<2x1x128xf32> to vector<2x1x128xf32>
    %693 = vector.broadcast %692 : vector<2x1x128xf32> to vector<2x8x128xf32>
    %694 = vector.broadcast %cst_245 : f32 to vector<2x8x128xf32>
    %695 = arith.select %691, %693, %694 : vector<2x8x128xi1>, vector<2x8x128xf32>
    %cst_246 = arith.constant dense<0xFF800000> : vector<2x8xf32>
    %696 = vector.multi_reduction <maximumf>, %695, %cst_246 [2] : vector<2x8x128xf32> to vector<2x8xf32>
    %697 = vector.shape_cast %696 : vector<2x8xf32> to vector<2x8x1xf32>
    %698 = vector.shape_cast %563 : vector<8x128xf32> to vector<1x8x128xf32>
    %699 = vector.broadcast %697 : vector<2x8x1xf32> to vector<2x8x128xf32>
    %700 = vector.broadcast %698 : vector<1x8x128xf32> to vector<2x8x128xf32>
    %701 = arith.addf %699, %700 : vector<2x8x128xf32>
    %cst_247 = arith.constant dense<0xFF800000> : vector<2x128xf32>
    %702 = vector.multi_reduction <maximumf>, %701, %cst_247 [1] : vector<2x8x128xf32> to vector<2x128xf32>
    %703 = vector.shape_cast %702 : vector<2x128xf32> to vector<2x1x128xf32>
    %704 = vector.broadcast %703 : vector<2x1x128xf32> to vector<2x8x128xf32>
    %705 = arith.cmpf oeq, %701, %704 : vector<2x8x128xf32>
    %c8_i32_248 = arith.constant 8 : i32
    %706 = vector.shape_cast %564 : vector<1x8x128xi32> to vector<1x8x128xi32>
    %707 = vector.broadcast %706 : vector<1x8x128xi32> to vector<2x8x128xi32>
    %708 = vector.broadcast %c8_i32_248 : i32 to vector<2x8x128xi32>
    %709 = arith.select %705, %707, %708 : vector<2x8x128xi1>, vector<2x8x128xi32>
    %cst_249 = arith.constant dense<2147483647> : vector<2x128xi32>
    %710 = vector.multi_reduction <minsi>, %709, %cst_249 [1] : vector<2x8x128xi32> to vector<2x128xi32>
    %c0_250 = arith.constant 0 : index
    %c5_251 = arith.constant 5 : index
    %c0_252 = arith.constant 0 : index
    %711 = vector.load %arg17[%c0_250, %c5_251, %c0_252] : memref<2x8x128xf32, #tpu.memory_space<vmem>>, vector<2x1x128xf32>
    %712 = vector.shape_cast %711 : vector<2x1x128xf32> to vector<2x128xf32>
    %713 = vector.shape_cast %703 : vector<2x1x128xf32> to vector<2x128xf32>
    %714 = arith.addf %712, %713 : vector<2x128xf32>
    %c0_253 = arith.constant 0 : index
    %c5_254 = arith.constant 5 : index
    %c0_255 = arith.constant 0 : index
    %715 = vector.load %arg18[%c0_253, %c5_254, %c0_255] : memref<2x8x128xi32, #tpu.memory_space<vmem>>, vector<2x1x128xi32>
    %716 = vector.shape_cast %715 : vector<2x1x128xi32> to vector<2x128xi32>
    %717 = vector.shape_cast %710 : vector<2x128xi32> to vector<2x1x128xi32>
    tpu.vector_store %arg18[%c0_253, %c5_254, %c0_255], %717 {strides = array<i32>} : memref<2x8x128xi32, #tpu.memory_space<vmem>>, vector<2x1x128xi32>,
    %718 = vector.shape_cast %714 : vector<2x128xf32> to vector<2x1x128xf32>
    %cst_256 = arith.constant -1.000000e+30 : f32
    %719 = vector.shape_cast %566 : vector<1x8x128xi1> to vector<1x8x128xi1>
    %720 = vector.broadcast %719 : vector<1x8x128xi1> to vector<2x8x128xi1>
    %721 = vector.shape_cast %718 : vector<2x1x128xf32> to vector<2x1x128xf32>
    %722 = vector.broadcast %721 : vector<2x1x128xf32> to vector<2x8x128xf32>
    %723 = vector.broadcast %cst_256 : f32 to vector<2x8x128xf32>
    %724 = arith.select %720, %722, %723 : vector<2x8x128xi1>, vector<2x8x128xf32>
    %cst_257 = arith.constant dense<0xFF800000> : vector<2x8xf32>
    %725 = vector.multi_reduction <maximumf>, %724, %cst_257 [2] : vector<2x8x128xf32> to vector<2x8xf32>
    %726 = vector.shape_cast %725 : vector<2x8xf32> to vector<2x8x1xf32>
    %727 = vector.shape_cast %563 : vector<8x128xf32> to vector<1x8x128xf32>
    %728 = vector.broadcast %726 : vector<2x8x1xf32> to vector<2x8x128xf32>
    %729 = vector.broadcast %727 : vector<1x8x128xf32> to vector<2x8x128xf32>
    %730 = arith.addf %728, %729 : vector<2x8x128xf32>
    %cst_258 = arith.constant dense<0xFF800000> : vector<2x128xf32>
    %731 = vector.multi_reduction <maximumf>, %730, %cst_258 [1] : vector<2x8x128xf32> to vector<2x128xf32>
    %732 = vector.shape_cast %731 : vector<2x128xf32> to vector<2x1x128xf32>
    %733 = vector.broadcast %732 : vector<2x1x128xf32> to vector<2x8x128xf32>
    %734 = arith.cmpf oeq, %730, %733 : vector<2x8x128xf32>
    %c8_i32_259 = arith.constant 8 : i32
    %735 = vector.shape_cast %564 : vector<1x8x128xi32> to vector<1x8x128xi32>
    %736 = vector.broadcast %735 : vector<1x8x128xi32> to vector<2x8x128xi32>
    %737 = vector.broadcast %c8_i32_259 : i32 to vector<2x8x128xi32>
    %738 = arith.select %734, %736, %737 : vector<2x8x128xi1>, vector<2x8x128xi32>
    %cst_260 = arith.constant dense<2147483647> : vector<2x128xi32>
    %739 = vector.multi_reduction <minsi>, %738, %cst_260 [1] : vector<2x8x128xi32> to vector<2x128xi32>
    %c0_261 = arith.constant 0 : index
    %c6_262 = arith.constant 6 : index
    %c0_263 = arith.constant 0 : index
    %740 = vector.load %arg17[%c0_261, %c6_262, %c0_263] : memref<2x8x128xf32, #tpu.memory_space<vmem>>, vector<2x1x128xf32>
    %741 = vector.shape_cast %740 : vector<2x1x128xf32> to vector<2x128xf32>
    %742 = vector.shape_cast %732 : vector<2x1x128xf32> to vector<2x128xf32>
    %743 = arith.addf %741, %742 : vector<2x128xf32>
    %c0_264 = arith.constant 0 : index
    %c6_265 = arith.constant 6 : index
    %c0_266 = arith.constant 0 : index
    %744 = vector.load %arg18[%c0_264, %c6_265, %c0_266] : memref<2x8x128xi32, #tpu.memory_space<vmem>>, vector<2x1x128xi32>
    %745 = vector.shape_cast %744 : vector<2x1x128xi32> to vector<2x128xi32>
    %746 = vector.shape_cast %739 : vector<2x128xi32> to vector<2x1x128xi32>
    tpu.vector_store %arg18[%c0_264, %c6_265, %c0_266], %746 {strides = array<i32>} : memref<2x8x128xi32, #tpu.memory_space<vmem>>, vector<2x1x128xi32>,
    %747 = vector.shape_cast %743 : vector<2x128xf32> to vector<2x1x128xf32>
    %cst_267 = arith.constant -1.000000e+30 : f32
    %748 = vector.shape_cast %566 : vector<1x8x128xi1> to vector<1x8x128xi1>
    %749 = vector.broadcast %748 : vector<1x8x128xi1> to vector<2x8x128xi1>
    %750 = vector.shape_cast %747 : vector<2x1x128xf32> to vector<2x1x128xf32>
    %751 = vector.broadcast %750 : vector<2x1x128xf32> to vector<2x8x128xf32>
    %752 = vector.broadcast %cst_267 : f32 to vector<2x8x128xf32>
    %753 = arith.select %749, %751, %752 : vector<2x8x128xi1>, vector<2x8x128xf32>
    %cst_268 = arith.constant dense<0xFF800000> : vector<2x8xf32>
    %754 = vector.multi_reduction <maximumf>, %753, %cst_268 [2] : vector<2x8x128xf32> to vector<2x8xf32>
    %755 = vector.shape_cast %754 : vector<2x8xf32> to vector<2x8x1xf32>
    %756 = vector.shape_cast %563 : vector<8x128xf32> to vector<1x8x128xf32>
    %757 = vector.broadcast %755 : vector<2x8x1xf32> to vector<2x8x128xf32>
    %758 = vector.broadcast %756 : vector<1x8x128xf32> to vector<2x8x128xf32>
    %759 = arith.addf %757, %758 : vector<2x8x128xf32>
    %cst_269 = arith.constant dense<0xFF800000> : vector<2x128xf32>
    %760 = vector.multi_reduction <maximumf>, %759, %cst_269 [1] : vector<2x8x128xf32> to vector<2x128xf32>
    %761 = vector.shape_cast %760 : vector<2x128xf32> to vector<2x1x128xf32>
    %762 = vector.broadcast %761 : vector<2x1x128xf32> to vector<2x8x128xf32>
    %763 = arith.cmpf oeq, %759, %762 : vector<2x8x128xf32>
    %c8_i32_270 = arith.constant 8 : i32
    %764 = vector.shape_cast %564 : vector<1x8x128xi32> to vector<1x8x128xi32>
    %765 = vector.broadcast %764 : vector<1x8x128xi32> to vector<2x8x128xi32>
    %766 = vector.broadcast %c8_i32_270 : i32 to vector<2x8x128xi32>
    %767 = arith.select %763, %765, %766 : vector<2x8x128xi1>, vector<2x8x128xi32>
    %cst_271 = arith.constant dense<2147483647> : vector<2x128xi32>
    %768 = vector.multi_reduction <minsi>, %767, %cst_271 [1] : vector<2x8x128xi32> to vector<2x128xi32>
    %c0_272 = arith.constant 0 : index
    %c7_273 = arith.constant 7 : index
    %c0_274 = arith.constant 0 : index
    %769 = vector.load %arg17[%c0_272, %c7_273, %c0_274] : memref<2x8x128xf32, #tpu.memory_space<vmem>>, vector<2x1x128xf32>
    %770 = vector.shape_cast %769 : vector<2x1x128xf32> to vector<2x128xf32>
    %771 = vector.shape_cast %761 : vector<2x1x128xf32> to vector<2x128xf32>
    %772 = arith.addf %770, %771 : vector<2x128xf32>
    %c0_275 = arith.constant 0 : index
    %c7_276 = arith.constant 7 : index
    %c0_277 = arith.constant 0 : index
    %773 = vector.load %arg18[%c0_275, %c7_276, %c0_277] : memref<2x8x128xi32, #tpu.memory_space<vmem>>, vector<2x1x128xi32>
    %774 = vector.shape_cast %773 : vector<2x1x128xi32> to vector<2x128xi32>
    %775 = vector.shape_cast %768 : vector<2x128xi32> to vector<2x1x128xi32>
    tpu.vector_store %arg18[%c0_275, %c7_276, %c0_277], %775 {strides = array<i32>} : memref<2x8x128xi32, #tpu.memory_space<vmem>>, vector<2x1x128xi32>,
    %c0_278 = arith.constant 0 : index
    %c0_279 = arith.constant 0 : index
    %776 = vector.load %arg12[%c0_278, %c0_279] : memref<2x128xf32, #tpu.memory_space<vmem>>, vector<2x128xf32>
    tpu.vector_store %arg12[%c0_278, %c0_279], %772 {strides = array<i32>} : memref<2x128xf32, #tpu.memory_space<vmem>>, vector<2x128xf32>,
    %c0_280 = arith.constant 0 : index
    %c0_281 = arith.constant 0 : index
    %c0_282 = arith.constant 0 : index
    %777 = vector.load %arg18[%c0_280, %c0_281, %c0_282] : memref<2x8x128xi32, #tpu.memory_space<vmem>>, vector<2x8x128xi32>
    %778 = arith.trunci %777 : vector<2x8x128xi32> to vector<2x8x128xi8>
    %c0_283 = arith.constant 0 : index
    %c0_284 = arith.constant 0 : index
    %c0_285 = arith.constant 0 : index
    %779 = vector.load %arg13[%c0_283, %c0_284, %c0_285] : memref<2x8x128xi8, #tpu.memory_space<vmem>>, vector<2x8x128xi8>
    tpu.vector_store %arg13[%c0_283, %c0_284, %c0_285], %778 {strides = array<i32>} : memref<2x8x128xi8, #tpu.memory_space<vmem>>, vector<2x8x128xi8>,
    return
  }
  func.func @transform_0(%arg0: i32) -> (i32, i32, i32) {
    %c0_i32 = arith.constant 0 : i32
    %c0_i32_0 = arith.constant 0 : i32
    %c0_i32_1 = arith.constant 0 : i32
    return %arg0, %c0_i32, %c0_i32_0 : i32, i32, i32
  }
  func.func @transform_1(%arg0: i32) -> (i32, i32) {
    %c0_i32 = arith.constant 0 : i32
    %c0_i32_0 = arith.constant 0 : i32
    %c0_i32_1 = arith.constant 0 : i32
    return %c0_i32, %c0_i32_0 : i32, i32
  }
  func.func @transform_2(%arg0: i32) -> (i32, i32) {
    %c0_i32 = arith.constant 0 : i32
    %c0_i32_0 = arith.constant 0 : i32
    %c0_i32_1 = arith.constant 0 : i32
    return %c0_i32, %c0_i32_0 : i32, i32
  }
  func.func @transform_3(%arg0: i32) -> (i32, i32) {
    %c0_i32 = arith.constant 0 : i32
    %c0_i32_0 = arith.constant 0 : i32
    %c0_i32_1 = arith.constant 0 : i32
    return %c0_i32, %c0_i32_0 : i32, i32
  }
  func.func @transform_4(%arg0: i32) -> (i32, i32) {
    %c0_i32 = arith.constant 0 : i32
    %c0_i32_0 = arith.constant 0 : i32
    %c0_i32_1 = arith.constant 0 : i32
    return %c0_i32, %c0_i32_0 : i32, i32
  }
  func.func @transform_5(%arg0: i32) -> (i32, i32, i32) {
    %c0_i32 = arith.constant 0 : i32
    %c0_i32_0 = arith.constant 0 : i32
    %c0_i32_1 = arith.constant 0 : i32
    return %arg0, %c0_i32, %c0_i32_0 : i32, i32, i32
  }
  func.func @transform_6(%arg0: i32) -> (i32, i32, i32) {
    %c0_i32 = arith.constant 0 : i32
    %c0_i32_0 = arith.constant 0 : i32
    %c0_i32_1 = arith.constant 0 : i32
    return %arg0, %c0_i32, %c0_i32_0 : i32, i32, i32
  }
  func.func @transform_7(%arg0: i32) -> (i32, i32) {
    %c0_i32 = arith.constant 0 : i32
    %c0_i32_0 = arith.constant 0 : i32
    %c0_i32_1 = arith.constant 0 : i32
    return %c0_i32, %c0_i32_0 : i32, i32
  }
  func.func @transform_8(%arg0: i32) -> (i32, i32) {
    %c0_i32 = arith.constant 0 : i32
    %c0_i32_0 = arith.constant 0 : i32
    %c0_i32_1 = arith.constant 0 : i32
    return %c0_i32, %c0_i32_0 : i32, i32
  }
  func.func @transform_9(%arg0: i32) -> (i32, i32) {
    %c0_i32 = arith.constant 0 : i32
    %c0_i32_0 = arith.constant 0 : i32
    %c0_i32_1 = arith.constant 0 : i32
    return %c0_i32, %c0_i32_0 : i32, i32
  }
  func.func @transform_10(%arg0: i32) -> (i32, i32) {
    %c0_i32 = arith.constant 0 : i32
    %c0_i32_0 = arith.constant 0 : i32
    %c0_i32_1 = arith.constant 0 : i32
    return %c0_i32, %c0_i32_0 : i32, i32
  }
  func.func @transform_11(%arg0: i32) -> (i32, i32) {
    %c0_i32 = arith.constant 0 : i32
    %c0_i32_0 = arith.constant 0 : i32
    return %arg0, %c0_i32 : i32, i32
  }
  func.func @transform_12(%arg0: i32) -> (i32, i32, i32) {
    %c0_i32 = arith.constant 0 : i32
    %c0_i32_0 = arith.constant 0 : i32
    %c0_i32_1 = arith.constant 0 : i32
    return %arg0, %c0_i32, %c0_i32_0 : i32, i32, i32
  }
}

</mosaic_0001>

<llo_original>
// kernel: custom-call.4
$region0: #{custom-call.4}
  %s0 = inlined_call_operand.vmem [shape: s32[7,2], index: 0, kind: output, shape index: {}]

// kernel: forward.1
$region0: #{forward.1}
  #allocation0 [shape = 'u32[]', space=smem, size = 0x4, offset = 0x4, fixed_abs, tag = 'smem constant byte address 0x4 - core index']
  #allocation1 [shape = 'u32[144,128]{1,0:T(1,128)}', space=vmem, size = 0x12000, scoped, tag = 'internal scratch']
  #allocation2 [shape = 'f32[2,8,1024]{2,1,0:T(8,128)}', space=vmem, size = 0x10000, scoped, tag = 'scratch operand']
  #allocation3 [shape = 'f32[2,8,128]{2,1,0:T(8,128)}', space=vmem, size = 0x2000, scoped, tag = 'scratch operand']
  #allocation4 [shape = 'f32[2,8,128]{2,1,0:T(8,128)}', space=vmem, size = 0x2000, scoped, tag = 'scratch operand']
  #allocation5 [shape = 'f32[2,8,128]{2,1,0:T(8,128)}', space=vmem, size = 0x2000, scoped, tag = 'scratch operand']
  #allocation6 [shape = 's32[2,8,128]{2,1,0:T(8,128)}', space=vmem, size = 0x2000, scoped, tag = 'scratch operand']
  %s0 = inlined_call_operand.vmem [shape: bf16[2,8,3], index: 0, kind: input, shape index: {}]
  %s1 = inlined_call_operand.vmem [shape: bf16[3,1024], index: 1, kind: input, shape index: {}]
  %s2 = inlined_call_operand.vmem [shape: f32[1,1024], index: 2, kind: input, shape index: {}]
  %s3 = inlined_call_operand.vmem [shape: bf16[128,512], index: 3, kind: input, shape index: {}]
  %s4 = inlined_call_operand.vmem [shape: bf16[128,512], index: 4, kind: input, shape index: {}]
  %s5 = inlined_call_operand.vmem [shape: f32[2,2,128], index: 5, kind: input, shape index: {}]
  %s6 = inlined_call_operand.vmem [shape: f32[2,2,128], index: 6, kind: input, shape index: {}]
  %s7 = inlined_call_operand.vmem [shape: bf16[128,128], index: 7, kind: input, shape index: {}]
  %s8 = inlined_call_operand.vmem [shape: bf16[128,128], index: 8, kind: input, shape index: {}]
  %s9 = inlined_call_operand.vmem [shape: f32[1,128], index: 9, kind: input, shape index: {}]
  %s10 = inlined_call_operand.vmem [shape: f32[8,128], index: 10, kind: input, shape index: {}]
  %s11 = inlined_call_operand.vmem [shape: f32[2,128], index: 11, kind: output, shape index: {0}]
  %s12 = inlined_call_operand.vmem [shape: s8[2,8,128], index: 12, kind: output, shape index: {1}]
  %13 = xla_tuple %s11, %s12
  %s14 = sld [smem:[#allocation0]]
  $region62: #{forward.1} parent=0
    _
  %s16 = ssub.s32 1, %s14
  %s17 = scalar_select 0, %s16, %s14
  // Predicated region
  $region2: #{forward.1} parent=0 // pred_check
    _
  $region3: #{forward.1} parent=0 // pred_check_branch
    %19 = sbr.rel (0) target = $region5
  $region4: #{forward.1} parent=0 // pred_region
    _
  $region5: #{forward.1} parent=0 // pred_fallthru
    _
  // Predicated region
  $region6: #{forward.1} parent=0 // pred_check
    _
  $region7: #{forward.1} parent=0 // pred_check_branch
    %21 = sbr.rel (0) target = $region9
  $region8: #{forward.1} parent=0 // pred_region
    _
  $region9: #{forward.1} parent=0 // pred_fallthru
    _
  // Predicated region
  $region10: #{forward.1} parent=0 // pred_check
    _
  $region11: #{forward.1} parent=0 // pred_check_branch
    %23 = sbr.rel (0) target = $region13
  $region12: #{forward.1} parent=0 // pred_region
    _
  $region13: #{forward.1} parent=0 // pred_fallthru
    _
  // Predicated region
  $region14: #{forward.1} parent=0 // pred_check
    _
  $region15: #{forward.1} parent=0 // pred_check_branch
    %25 = sbr.rel (0) target = $region17
  $region16: #{forward.1} parent=0 // pred_region
    _
  $region17: #{forward.1} parent=0 // pred_fallthru
    _
  // Predicated region
  $region18: #{forward.1} parent=0 // pred_check
    _
  $region19: #{forward.1} parent=0 // pred_check_branch
    %27 = sbr.rel (0) target = $region21
  $region20: #{forward.1} parent=0 // pred_region
    _
  $region21: #{forward.1} parent=0 // pred_fallthru
    _
  // Predicated region
  $region22: #{forward.1} parent=0 // pred_check
    _
  $region23: #{forward.1} parent=0 // pred_check_branch
    %29 = sbr.rel (0) target = $region25
  $region24: #{forward.1} parent=0 // pred_region
    _
  $region25: #{forward.1} parent=0 // pred_fallthru
    _
  // Predicated region
  $region26: #{forward.1} parent=0 // pred_check
    _
  $region27: #{forward.1} parent=0 // pred_check_branch
    %31 = sbr.rel (0) target = $region29
  $region28: #{forward.1} parent=0 // pred_region
    _
  $region29: #{forward.1} parent=0 // pred_fallthru
    _
  // Predicated region
  $region30: #{forward.1} parent=0 // pred_check
    _
  $region31: #{forward.1} parent=0 // pred_check_branch
    %33 = sbr.rel (0) target = $region33
  $region32: #{forward.1} parent=0 // pred_region
    _
  $region33: #{forward.1} parent=0 // pred_fallthru
    _
  // Predicated region
  $region34: #{forward.1} parent=0 // pred_check
    _
  $region35: #{forward.1} parent=0 // pred_check_branch
    %35 = sbr.rel (0) target = $region37
  $region36: #{forward.1} parent=0 // pred_region
    _
  $region37: #{forward.1} parent=0 // pred_fallthru
    _
  // Predicated region
  $region38: #{forward.1} parent=0 // pred_check
    _
  $region39: #{forward.1} parent=0 // pred_check_branch
    %37 = sbr.rel (0) target = $region41
  $region40: #{forward.1} parent=0 // pred_region
    _
  $region41: #{forward.1} parent=0 // pred_fallthru
    _
  // Predicated region
  $region42: #{forward.1} parent=0 // pred_check
    _
  $region43: #{forward.1} parent=0 // pred_check_branch
    %39 = sbr.rel (0) target = $region45
  $region44: #{forward.1} parent=0 // pred_region
    _
  $region45: #{forward.1} parent=0 // pred_fallthru
    _
  %v41 = vld [vmem:[%s0] sm:$0xf]
  %v42 = vld [vmem:[%s0 + $0x4] sm:$0xf]
  %v43 = vld [vmem:[%s1] sm:$0xff]
  %v44 = vld [vmem:[%s1 + $0x8] sm:$0xff]
  %v45 = vld [vmem:[%s2] sm:$0xff]
  %v47 = vlaneseq
  %v48 = vshrl.u32 %v47, 7
  %v49 = vsub.s32 0, %v48
  %v50 = vrot.slane %v45, %v49
  %v51 = vlaneseq
  %v52 = vshrl.u32 %v51, 7
  %v53 = vsub.s32 1, %v52
  %v54 = vrot.slane %v45, %v53
  %v55 = vlaneseq
  %v56 = vshrl.u32 %v55, 7
  %v57 = vsub.s32 2, %v56
  %v58 = vrot.slane %v45, %v57
  %v59 = vlaneseq
  %v60 = vshrl.u32 %v59, 7
  %v61 = vsub.s32 3, %v60
  %v62 = vrot.slane %v45, %v61
  %v63 = vlaneseq
  %v64 = vshrl.u32 %v63, 7
  %v65 = vsub.s32 4, %v64
  %v66 = vrot.slane %v45, %v65
  %v67 = vlaneseq
  %v68 = vshrl.u32 %v67, 7
  %v69 = vsub.s32 5, %v68
  %v70 = vrot.slane %v45, %v69
  %v71 = vlaneseq
  %v72 = vshrl.u32 %v71, 7
  %v73 = vsub.s32 6, %v72
  %v74 = vrot.slane %v45, %v73
  %v75 = vlaneseq
  %v76 = vshrl.u32 %v75, 7
  %v77 = vsub.s32 7, %v76
  %v78 = vrot.slane %v45, %v77
  %v89 = vunpack.c.l.b16 %v41
  %v90 = vunpack.c.l.b16 %v42
  %v91 = vpack.c.b16 %v90, %v89
  %v94 = vcombine.high %v43, %v43
  %v96 = vunpack.c.l.s4 1983009808
  %v97 = vunpack.c.0.s8 %v96
  %v98 = vlaneseq
  %v99 = vshrl.u32 %v98, 7
  %v100 = vsub.s32 %v97, %v99
  %v101 = vrot.slane %v43, %v100
  %v103 = vunpack.c.l.s4 1983009808
  %v104 = vunpack.c.0.s8 %v103
  %v105 = vlaneseq
  %v106 = vshrl.u32 %v105, 7
  %v107 = vsub.s32 %v104, %v106
  %v108 = vrot.slane %v94, %v107
  %v109 = vcombine.high %v101, %v101
  %v110 = vcombine.high %v108, %v108
  %v111 = vcombine.high %v44, %v44
  %v113 = vunpack.c.l.s4 1983009808
  %v114 = vunpack.c.0.s8 %v113
  %v115 = vlaneseq
  %v116 = vshrl.u32 %v115, 7
  %v117 = vsub.s32 %v114, %v116
  %v118 = vrot.slane %v44, %v117
  %v120 = vunpack.c.l.s4 1983009808
  %v121 = vunpack.c.0.s8 %v120
  %v122 = vlaneseq
  %v123 = vshrl.u32 %v122, 7
  %v124 = vsub.s32 %v121, %v123
  %v125 = vrot.slane %v111, %v124
  %v126 = vcombine.high %v118, %v118
  %v127 = vcombine.high %v125, %v125
  %vm128 = vcmask 23552
  %v130 = vsel %vm128, %v91, 0
  %vm132 = vcmask 1040384
  %vm133 = vcmask 1041408
  %v134 = vsel %vm132, 4294967295, 65535
  %v135 = vsel %vm133, %v134, 0
  %v137 = vand.u32 %v101, %v135
  %v140 = vand.u32 %v109, %v135
  %v143 = vand.u32 %v108, %v135
  %v146 = vand.u32 %v110, %v135
  %v149 = vand.u32 %v118, %v135
  %v152 = vand.u32 %v126, %v135
  %v155 = vand.u32 %v125, %v135
  %v158 = vand.u32 %v127, %v135
  %160 = vmatprep.subr.bf16.mxu0 %v140
  %161 = vmatpush1.bf16.msra.mxu0 %v137
  %162 = vmatprep.subr.bf16.mxu0 0
  %163 = vmatpush1.bf16.msra.mxu0 0
  %164 = vmatprep.subr.bf16.mxu0 0
  %165 = vmatpush1.bf16.msra.mxu0 0
  %166 = vmatprep.subr.bf16.mxu0 0
  %167 = vmatpush1.bf16.msra.mxu0 0
  %168 = vmatprep.subr.bf16.mxu0 0
  %169 = vmatpush1.bf16.msra.mxu0 0
  %170 = vmatprep.subr.bf16.mxu0 0
  %171 = vmatpush1.bf16.msra.mxu0 0
  %172 = vmatprep.subr.bf16.mxu0 0
  %173 = vmatpush1.bf16.msra.mxu0 0
  %174 = vmatprep.subr.bf16.mxu0 0
  %175 = vmatpush1.bf16.msra.mxu0 0
  %176 = vmatprep.subr.bf16.mxu0 0
  %177 = vmatpush1.bf16.msra.mxu0 0
  %178 = vmatprep.subr.bf16.mxu0 0
  %179 = vmatpush1.bf16.msra.mxu0 0
  %180 = vmatprep.subr.bf16.mxu0 0
  %181 = vmatpush1.bf16.msra.mxu0 0
  %182 = vmatprep.subr.bf16.mxu0 0
  %183 = vmatpush1.bf16.msra.mxu0 0
  %184 = vmatprep.subr.bf16.mxu0 0
  %185 = vmatpush1.bf16.msra.mxu0 0
  %186 = vmatprep.subr.bf16.mxu0 0
  %187 = vmatpush1.bf16.msra.mxu0 0
  %188 = vmatprep.subr.bf16.mxu0 0
  %189 = vmatpush1.bf16.msra.mxu0 0
  %190 = vmatprep.subr.bf16.mxu0 0
  %191 = vmatpush1.bf16.msra.mxu0 0
  %192 = vmatprep.mubr.bf16.mxu0 0
  %193 = vmatmul.mubr.bf16.gmra.mrb[0].mxu0 %v130
  %v194 = vpop.f32.mrb[0].mxu0
  %v195 = vadd.f32 %v50, %v194
  %v196 = vpop.f32.mrb[0].mxu0
  %v197 = vadd.f32 %v54, %v196
  %v198 = vpop.f32.mrb[0].mxu0
  %v199 = vadd.f32 %v50, %v198
  %v200 = vpop.f32.mrb[0].mxu0
  %v201 = vadd.f32 %v54, %v200
  %202 = vdwg.mxu0
  %203 = vmatprep.subr.bf16.mxu0 %v146
  %204 = vmatpush1.bf16.msra.mxu0 %v143
  %205 = vmatprep.subr.bf16.mxu0 0
  %206 = vmatpush1.bf16.msra.mxu0 0
  %207 = vmatprep.subr.bf16.mxu0 0
  %208 = vmatpush1.bf16.msra.mxu0 0
  %209 = vmatprep.subr.bf16.mxu0 0
  %210 = vmatpush1.bf16.msra.mxu0 0
  %211 = vmatprep.subr.bf16.mxu0 0
  %212 = vmatpush1.bf16.msra.mxu0 0
  %213 = vmatprep.subr.bf16.mxu0 0
  %214 = vmatpush1.bf16.msra.mxu0 0
  %215 = vmatprep.subr.bf16.mxu0 0
  %216 = vmatpush1.bf16.msra.mxu0 0
  %217 = vmatprep.subr.bf16.mxu0 0
  %218 = vmatpush1.bf16.msra.mxu0 0
  %219 = vmatprep.subr.bf16.mxu0 0
  %220 = vmatpush1.bf16.msra.mxu0 0
  %221 = vmatprep.subr.bf16.mxu0 0
  %222 = vmatpush1.bf16.msra.mxu0 0
  %223 = vmatprep.subr.bf16.mxu0 0
  %224 = vmatpush1.bf16.msra.mxu0 0
  %225 = vmatprep.subr.bf16.mxu0 0
  %226 = vmatpush1.bf16.msra.mxu0 0
  %227 = vmatprep.subr.bf16.mxu0 0
  %228 = vmatpush1.bf16.msra.mxu0 0
  %229 = vmatprep.subr.bf16.mxu0 0
  %230 = vmatpush1.bf16.msra.mxu0 0
  %231 = vmatprep.subr.bf16.mxu0 0
  %232 = vmatpush1.bf16.msra.mxu0 0
  %233 = vmatprep.subr.bf16.mxu0 0
  %234 = vmatpush1.bf16.msra.mxu0 0
  %235 = vmatprep.mubr.bf16.mxu0 0
  %236 = vmatmul.mubr.bf16.gmra.mrb[0].mxu0 %v130
  %v237 = vpop.f32.mrb[0].mxu0
  %v238 = vadd.f32 %v58, %v237
  %v239 = vpop.f32.mrb[0].mxu0
  %v240 = vadd.f32 %v62, %v239
  %v241 = vpop.f32.mrb[0].mxu0
  %v242 = vadd.f32 %v58, %v241
  %v243 = vpop.f32.mrb[0].mxu0
  %v244 = vadd.f32 %v62, %v243
  %245 = vdwg.mxu0
  %246 = vmatprep.subr.bf16.mxu0 %v152
  %247 = vmatpush1.bf16.msra.mxu0 %v149
  %248 = vmatprep.subr.bf16.mxu0 0
  %249 = vmatpush1.bf16.msra.mxu0 0
  %250 = vmatprep.subr.bf16.mxu0 0
  %251 = vmatpush1.bf16.msra.mxu0 0
  %252 = vmatprep.subr.bf16.mxu0 0
  %253 = vmatpush1.bf16.msra.mxu0 0
  %254 = vmatprep.subr.bf16.mxu0 0
  %255 = vmatpush1.bf16.msra.mxu0 0
  %256 = vmatprep.subr.bf16.mxu0 0
  %257 = vmatpush1.bf16.msra.mxu0 0
  %258 = vmatprep.subr.bf16.mxu0 0
  %259 = vmatpush1.bf16.msra.mxu0 0
  %260 = vmatprep.subr.bf16.mxu0 0
  %261 = vmatpush1.bf16.msra.mxu0 0
  %262 = vmatprep.subr.bf16.mxu0 0
  %263 = vmatpush1.bf16.msra.mxu0 0
  %264 = vmatprep.subr.bf16.mxu0 0
  %265 = vmatpush1.bf16.msra.mxu0 0
  %266 = vmatprep.subr.bf16.mxu0 0
  %267 = vmatpush1.bf16.msra.mxu0 0
  %268 = vmatprep.subr.bf16.mxu0 0
  %269 = vmatpush1.bf16.msra.mxu0 0
  %270 = vmatprep.subr.bf16.mxu0 0
  %271 = vmatpush1.bf16.msra.mxu0 0
  %272 = vmatprep.subr.bf16.mxu0 0
  %273 = vmatpush1.bf16.msra.mxu0 0
  %274 = vmatprep.subr.bf16.mxu0 0
  %275 = vmatpush1.bf16.msra.mxu0 0
  %276 = vmatprep.subr.bf16.mxu0 0
  %277 = vmatpush1.bf16.msra.mxu0 0
  %278 = vmatprep.mubr.bf16.mxu0 0
  %279 = vmatmul.mubr.bf16.gmra.mrb[0].mxu0 %v130
  %v280 = vpop.f32.mrb[0].mxu0
  %v281 = vadd.f32 %v66, %v280
  %v282 = vpop.f32.mrb[0].mxu0
  %v283 = vadd.f32 %v70, %v282
  %v284 = vpop.f32.mrb[0].mxu0
  %v285 = vadd.f32 %v66, %v284
  %v286 = vpop.f32.mrb[0].mxu0
  %v287 = vadd.f32 %v70, %v286
  %288 = vdwg.mxu0
  %289 = vmatprep.subr.bf16.mxu0 %v158
  %290 = vmatpush1.bf16.msra.mxu0 %v155
  %291 = vmatprep.subr.bf16.mxu0 0
  %292 = vmatpush1.bf16.msra.mxu0 0
  %293 = vmatprep.subr.bf16.mxu0 0
  %294 = vmatpush1.bf16.msra.mxu0 0
  %295 = vmatprep.subr.bf16.mxu0 0
  %296 = vmatpush1.bf16.msra.mxu0 0
  %297 = vmatprep.subr.bf16.mxu0 0
  %298 = vmatpush1.bf16.msra.mxu0 0
  %299 = vmatprep.subr.bf16.mxu0 0
  %300 = vmatpush1.bf16.msra.mxu0 0
  %301 = vmatprep.subr.bf16.mxu0 0
  %302 = vmatpush1.bf16.msra.mxu0 0
  %303 = vmatprep.subr.bf16.mxu0 0
  %304 = vmatpush1.bf16.msra.mxu0 0
  %305 = vmatprep.subr.bf16.mxu0 0
  %306 = vmatpush1.bf16.msra.mxu0 0
  %307 = vmatprep.subr.bf16.mxu0 0
  %308 = vmatpush1.bf16.msra.mxu0 0
  %309 = vmatprep.subr.bf16.mxu0 0
  %310 = vmatpush1.bf16.msra.mxu0 0
  %311 = vmatprep.subr.bf16.mxu0 0
  %312 = vmatpush1.bf16.msra.mxu0 0
  %313 = vmatprep.subr.bf16.mxu0 0
  %314 = vmatpush1.bf16.msra.mxu0 0
  %315 = vmatprep.subr.bf16.mxu0 0
  %316 = vmatpush1.bf16.msra.mxu0 0
  %317 = vmatprep.subr.bf16.mxu0 0
  %318 = vmatpush1.bf16.msra.mxu0 0
  %319 = vmatprep.subr.bf16.mxu0 0
  %320 = vmatpush1.bf16.msra.mxu0 0
  %321 = vmatprep.mubr.bf16.mxu0 0
  %322 = vmatmul.mubr.bf16.gmra.mrb[0].mxu0 %v130
  %v323 = vpop.f32.mrb[0].mxu0
  %v324 = vadd.f32 %v74, %v323
  %v325 = vpop.f32.mrb[0].mxu0
  %v326 = vadd.f32 %v78, %v325
  %v327 = vpop.f32.mrb[0].mxu0
  %v328 = vadd.f32 %v74, %v327
  %v329 = vpop.f32.mrb[0].mxu0
  %v330 = vadd.f32 %v78, %v329
  %331 = vdwg.mxu0
  %332 = vst [vmem:[#allocation2] sm:$0xff] %v195
  %333 = vst [vmem:[#allocation2 + $0x8] sm:$0xff] %v197
  %334 = vst [vmem:[#allocation2 + $0x10] sm:$0xff] %v238
  %335 = vst [vmem:[#allocation2 + $0x18] sm:$0xff] %v240
  %336 = vst [vmem:[#allocation2 + $0x20] sm:$0xff] %v281
  %337 = vst [vmem:[#allocation2 + $0x28] sm:$0xff] %v283
  %338 = vst [vmem:[#allocation2 + $0x30] sm:$0xff] %v324
  %339 = vst [vmem:[#allocation2 + $0x38] sm:$0xff] %v326
  %340 = vst [vmem:[#allocation2 + $0x40] sm:$0xff] %v199
  %341 = vst [vmem:[#allocation2 + $0x48] sm:$0xff] %v201
  %342 = vst [vmem:[#allocation2 + $0x50] sm:$0xff] %v242
  %343 = vst [vmem:[#allocation2 + $0x58] sm:$0xff] %v244
  %344 = vst [vmem:[#allocation2 + $0x60] sm:$0xff] %v285
  %345 = vst [vmem:[#allocation2 + $0x68] sm:$0xff] %v287
  %346 = vst [vmem:[#allocation2 + $0x70] sm:$0xff] %v328
  %347 = vst [vmem:[#allocation2 + $0x78] sm:$0xff] %v330
  %v348 = vld [vmem:[%s3] sm:$0xff]
  %v349 = vld [vmem:[%s3 + $0x8] sm:$0xff]
  %v350 = vld [vmem:[%s3 + $0x10] sm:$0xff]
  %v351 = vld [vmem:[%s3 + $0x18] sm:$0xff]
  %v352 = vld [vmem:[%s3 + $0x20] sm:$0xff]
  %v353 = vld [vmem:[%s3 + $0x28] sm:$0xff]
  %v354 = vld [vmem:[%s3 + $0x30] sm:$0xff]
  %v355 = vld [vmem:[%s3 + $0x38] sm:$0xff]
  %v356 = vld [vmem:[%s3 + $0x40] sm:$0xff]
  %v357 = vld [vmem:[%s3 + $0x48] sm:$0xff]
  %v358 = vld [vmem:[%s3 + $0x50] sm:$0xff]
  %v359 = vld [vmem:[%s3 + $0x58] sm:$0xff]
  %v360 = vld [vmem:[%s3 + $0x60] sm:$0xff]
  %v361 = vld [vmem:[%s3 + $0x68] sm:$0xff]
  %v362 = vld [vmem:[%s3 + $0x70] sm:$0xff]
  %v363 = vld [vmem:[%s3 + $0x78] sm:$0xff]
  %v364 = vld [vmem:[%s3 + $0x80] sm:$0xff]
  %v365 = vld [vmem:[%s3 + $0x88] sm:$0xff]
  %v366 = vld [vmem:[%s3 + $0x90] sm:$0xff]
  %v367 = vld [vmem:[%s3 + $0x98] sm:$0xff]
  %v368 = vld [vmem:[%s3 + $0xa0] sm:$0xff]
  %v369 = vld [vmem:[%s3 + $0xa8] sm:$0xff]
  %v370 = vld [vmem:[%s3 + $0xb0] sm:$0xff]
  %v371 = vld [vmem:[%s3 + $0xb8] sm:$0xff]
  %v372 = vld [vmem:[%s3 + $0xc0] sm:$0xff]
  %v373 = vld [vmem:[%s3 + $0xc8] sm:$0xff]
  %v374 = vld [vmem:[%s3 + $0xd0] sm:$0xff]
  %v375 = vld [vmem:[%s3 + $0xd8] sm:$0xff]
  %v376 = vld [vmem:[%s3 + $0xe0] sm:$0xff]
  %v377 = vld [vmem:[%s3 + $0xe8] sm:$0xff]
  %v378 = vld [vmem:[%s3 + $0xf0] sm:$0xff]
  %v379 = vld [vmem:[%s3 + $0xf8] sm:$0xff]
  %v380 = vld [vmem:[%s4] sm:$0xff]
  %v381 = vld [vmem:[%s4 + $0x8] sm:$0xff]
  %v382 = vld [vmem:[%s4 + $0x10] sm:$0xff]
  %v383 = vld [vmem:[%s4 + $0x18] sm:$0xff]
  %v384 = vld [vmem:[%s4 + $0x20] sm:$0xff]
  %v385 = vld [vmem:[%s4 + $0x28] sm:$0xff]
  %v386 = vld [vmem:[%s4 + $0x30] sm:$0xff]
  %v387 = vld [vmem:[%s4 + $0x38] sm:$0xff]
  %v388 = vld [vmem:[%s4 + $0x40] sm:$0xff]
  %v389 = vld [vmem:[%s4 + $0x48] sm:$0xff]
  %v390 = vld [vmem:[%s4 + $0x50] sm:$0xff]
  %v391 = vld [vmem:[%s4 + $0x58] sm:$0xff]
  %v392 = vld [vmem:[%s4 + $0x60] sm:$0xff]
  %v393 = vld [vmem:[%s4 + $0x68] sm:$0xff]
  %v394 = vld [vmem:[%s4 + $0x70] sm:$0xff]
  %v395 = vld [vmem:[%s4 + $0x78] sm:$0xff]
  %v396 = vld [vmem:[%s4 + $0x80] sm:$0xff]
  %v397 = vld [vmem:[%s4 + $0x88] sm:$0xff]
  %v398 = vld [vmem:[%s4 + $0x90] sm:$0xff]
  %v399 = vld [vmem:[%s4 + $0x98] sm:$0xff]
  %v400 = vld [vmem:[%s4 + $0xa0] sm:$0xff]
  %v401 = vld [vmem:[%s4 + $0xa8] sm:$0xff]
  %v402 = vld [vmem:[%s4 + $0xb0] sm:$0xff]
  %v403 = vld [vmem:[%s4 + $0xb8] sm:$0xff]
  %v404 = vld [vmem:[%s4 + $0xc0] sm:$0xff]
  %v405 = vld [vmem:[%s4 + $0xc8] sm:$0xff]
  %v406 = vld [vmem:[%s4 + $0xd0] sm:$0xff]
  %v407 = vld [vmem:[%s4 + $0xd8] sm:$0xff]
  %v408 = vld [vmem:[%s4 + $0xe0] sm:$0xff]
  %v409 = vld [vmem:[%s4 + $0xe8] sm:$0xff]
  %v410 = vld [vmem:[%s4 + $0xf0] sm:$0xff]
  %v411 = vld [vmem:[%s4 + $0xf8] sm:$0xff]
  %v412 = vld [vmem:[%s5] sm:$0x1]
  %v413 = vld [vmem:[%s5 + $0x2] sm:$0x1]
  %v414 = vld [vmem:[%s6] sm:$0x1]
  %v415 = vld [vmem:[%s6 + $0x2] sm:$0x1]
  %v416 = vld [vmem:[%s5 + $0x1] sm:$0x1]
  %v417 = vld [vmem:[%s5 + $0x3] sm:$0x1]
  %v418 = vld [vmem:[%s6 + $0x1] sm:$0x1]
  %v419 = vld [vmem:[%s6 + $0x3] sm:$0x1]
  %v420 = vld [vmem:[#allocation2] ss:$8 sm:$0xf]
  %s421 = scalar_lea.vmem [#allocation2], 64
  %v422 = vld [vmem:[%s421] ss:$8 sm:$0xf]
  %v423 = vpack.c.bf16 %v412, %v412
  %v424 = vpack.c.bf16 %v413, %v413
  %v427 = vunpack.c.l.b16 %v423
  %v428 = vunpack.c.l.b16 %v424
  %v429 = vrot.slane %v428, 7
  %vm430 = vcmask 1041409
  %v431 = vsel %vm430, %v429, %v427
  %v432 = vpack.c.b16 %v431, %v431
  %v466 = vunpack.c.l.b16 %v348
  %v467 = vunpack.c.h.b16 %v348
  %v468 = vunpack.c.l.b16 %v349
  %v469 = vunpack.c.h.b16 %v349
  %v470 = vunpack.c.l.b16 %v350
  %v471 = vunpack.c.h.b16 %v350
  %v472 = vunpack.c.l.b16 %v351
  %v473 = vunpack.c.h.b16 %v351
  %v474 = vunpack.c.l.b16 %v352
  %v475 = vunpack.c.h.b16 %v352
  %v476 = vunpack.c.l.b16 %v353
  %v477 = vunpack.c.h.b16 %v353
  %v478 = vunpack.c.l.b16 %v354
  %v479 = vunpack.c.h.b16 %v354
  %v480 = vunpack.c.l.b16 %v355
  %v481 = vunpack.c.h.b16 %v355
  %v482 = vunpack.c.l.b16 %v356
  %v483 = vunpack.c.h.b16 %v356
  %v484 = vunpack.c.l.b16 %v357
  %v485 = vunpack.c.h.b16 %v357
  %v486 = vunpack.c.l.b16 %v358
  %v487 = vunpack.c.h.b16 %v358
  %v488 = vunpack.c.l.b16 %v359
  %v489 = vunpack.c.h.b16 %v359
  %v490 = vunpack.c.l.b16 %v360
  %v491 = vunpack.c.h.b16 %v360
  %v492 = vunpack.c.l.b16 %v361
  %v493 = vunpack.c.h.b16 %v361
  %v494 = vunpack.c.l.b16 %v362
  %v495 = vunpack.c.h.b16 %v362
  %v496 = vunpack.c.l.b16 %v363
  %v497 = vunpack.c.h.b16 %v363
  %v498 = vunpack.c.l.b16 %v364
  %v499 = vunpack.c.h.b16 %v364
  %v500 = vunpack.c.l.b16 %v365
  %v501 = vunpack.c.h.b16 %v365
  %v502 = vunpack.c.l.b16 %v366
  %v503 = vunpack.c.h.b16 %v366
  %v504 = vunpack.c.l.b16 %v367
  %v505 = vunpack.c.h.b16 %v367
  %v506 = vunpack.c.l.b16 %v368
  %v507 = vunpack.c.h.b16 %v368
  %v508 = vunpack.c.l.b16 %v369
  %v509 = vunpack.c.h.b16 %v369
  %v510 = vunpack.c.l.b16 %v370
  %v511 = vunpack.c.h.b16 %v370
  %v512 = vunpack.c.l.b16 %v371
  %v513 = vunpack.c.h.b16 %v371
  %v514 = vunpack.c.l.b16 %v372
  %v515 = vunpack.c.h.b16 %v372
  %v516 = vunpack.c.l.b16 %v373
  %v517 = vunpack.c.h.b16 %v373
  %v518 = vunpack.c.l.b16 %v374
  %v519 = vunpack.c.h.b16 %v374
  %v520 = vunpack.c.l.b16 %v375
  %v521 = vunpack.c.h.b16 %v375
  %v522 = vunpack.c.l.b16 %v376
  %v523 = vunpack.c.h.b16 %v376
  %v524 = vunpack.c.l.b16 %v377
  %v525 = vunpack.c.h.b16 %v377
  %v526 = vunpack.c.l.b16 %v378
  %v527 = vunpack.c.h.b16 %v378
  %v528 = vunpack.c.l.b16 %v379
  %v529 = vunpack.c.h.b16 %v379
  %v530 = vpack.c.b16 %v470, %v466
  %v531 = vpack.c.b16 %v471, %v467
  %v532 = vpack.c.b16 %v472, %v468
  %v533 = vpack.c.b16 %v473, %v469
  %v534 = vpack.c.b16 %v478, %v474
  %v535 = vpack.c.b16 %v479, %v475
  %v536 = vpack.c.b16 %v480, %v476
  %v537 = vpack.c.b16 %v481, %v477
  %v538 = vpack.c.b16 %v486, %v482
  %v539 = vpack.c.b16 %v487, %v483
  %v540 = vpack.c.b16 %v488, %v484
  %v541 = vpack.c.b16 %v489, %v485
  %v542 = vpack.c.b16 %v494, %v490
  %v543 = vpack.c.b16 %v495, %v491
  %v544 = vpack.c.b16 %v496, %v492
  %v545 = vpack.c.b16 %v497, %v493
  %v546 = vpack.c.b16 %v502, %v498
  %v547 = vpack.c.b16 %v503, %v499
  %v548 = vpack.c.b16 %v504, %v500
  %v549 = vpack.c.b16 %v505, %v501
  %v550 = vpack.c.b16 %v510, %v506
  %v551 = vpack.c.b16 %v511, %v507
  %v552 = vpack.c.b16 %v512, %v508
  %v553 = vpack.c.b16 %v513, %v509
  %v554 = vpack.c.b16 %v518, %v514
  %v555 = vpack.c.b16 %v519, %v515
  %v556 = vpack.c.b16 %v520, %v516
  %v557 = vpack.c.b16 %v521, %v517
  %v558 = vpack.c.b16 %v526, %v522
  %v559 = vpack.c.b16 %v527, %v523
  %v560 = vpack.c.b16 %v528, %v524
  %v561 = vpack.c.b16 %v529, %v525
  %594 = vmatprep.subr.bf16.mxu0 %v531
  %595 = vmatpush1.bf16.msra.mxu0 %v530
  %596 = vmatprep.subr.bf16.mxu0 %v535
  %597 = vmatpush1.bf16.msra.mxu0 %v534
  %598 = vmatprep.subr.bf16.mxu0 %v539
  %599 = vmatpush1.bf16.msra.mxu0 %v538
  %600 = vmatprep.subr.bf16.mxu0 %v543
  %601 = vmatpush1.bf16.msra.mxu0 %v542
  %602 = vmatprep.subr.bf16.mxu0 %v547
  %603 = vmatpush1.bf16.msra.mxu0 %v546
  %604 = vmatprep.subr.bf16.mxu0 %v551
  %605 = vmatpush1.bf16.msra.mxu0 %v550
  %606 = vmatprep.subr.bf16.mxu0 %v555
  %607 = vmatpush1.bf16.msra.mxu0 %v554
  %608 = vmatprep.subr.bf16.mxu0 %v559
  %609 = vmatpush1.bf16.msra.mxu0 %v558
  %610 = vmatprep.subr.bf16.mxu0 0
  %611 = vmatpush1.bf16.msra.mxu0 0
  %612 = vmatprep.subr.bf16.mxu0 0
  %613 = vmatpush1.bf16.msra.mxu0 0
  %614 = vmatprep.subr.bf16.mxu0 0
  %615 = vmatpush1.bf16.msra.mxu0 0
  %616 = vmatprep.subr.bf16.mxu0 0
  %617 = vmatpush1.bf16.msra.mxu0 0
  %618 = vmatprep.subr.bf16.mxu0 0
  %619 = vmatpush1.bf16.msra.mxu0 0
  %620 = vmatprep.subr.bf16.mxu0 0
  %621 = vmatpush1.bf16.msra.mxu0 0
  %622 = vmatprep.subr.bf16.mxu0 0
  %623 = vmatpush1.bf16.msra.mxu0 0
  %624 = vmatprep.subr.bf16.mxu0 0
  %625 = vmatpush1.bf16.msra.mxu0 0
  %626 = vmatprep.mubr.bf16.mxu0 0
  %627 = vmatmul.mubr.bf16.gmra.mrb[0].mxu0 %v432
  %v628 = vpop.f32.mrb[0].mxu0
  %v629 = vadd.f32 0.0, %v628
  %v630 = vpop.f32.mrb[0].mxu0
  %v631 = vadd.f32 0.0, %v630
  %v632 = vpop.f32.mrb[0].mxu0
  %v633 = vpop.f32.mrb[0].mxu0
  %634 = vdwg.mxu0
  %635 = vmatprep.subr.bf16.mxu0 %v533
  %636 = vmatpush1.bf16.msra.mxu0 %v532
  %637 = vmatprep.subr.bf16.mxu0 %v537
  %638 = vmatpush1.bf16.msra.mxu0 %v536
  %639 = vmatprep.subr.bf16.mxu0 %v541
  %640 = vmatpush1.bf16.msra.mxu0 %v540
  %641 = vmatprep.subr.bf16.mxu0 %v545
  %642 = vmatpush1.bf16.msra.mxu0 %v544
  %643 = vmatprep.subr.bf16.mxu0 %v549
  %644 = vmatpush1.bf16.msra.mxu0 %v548
  %645 = vmatprep.subr.bf16.mxu0 %v553
  %646 = vmatpush1.bf16.msra.mxu0 %v552
  %647 = vmatprep.subr.bf16.mxu0 %v557
  %648 = vmatpush1.bf16.msra.mxu0 %v556
  %649 = vmatprep.subr.bf16.mxu0 %v561
  %650 = vmatpush1.bf16.msra.mxu0 %v560
  %651 = vmatprep.subr.bf16.mxu0 0
  %652 = vmatpush1.bf16.msra.mxu0 0
  %653 = vmatprep.subr.bf16.mxu0 0
  %654 = vmatpush1.bf16.msra.mxu0 0
  %655 = vmatprep.subr.bf16.mxu0 0
  %656 = vmatpush1.bf16.msra.mxu0 0
  %657 = vmatprep.subr.bf16.mxu0 0
  %658 = vmatpush1.bf16.msra.mxu0 0
  %659 = vmatprep.subr.bf16.mxu0 0
  %660 = vmatpush1.bf16.msra.mxu0 0
  %661 = vmatprep.subr.bf16.mxu0 0
  %662 = vmatpush1.bf16.msra.mxu0 0
  %663 = vmatprep.subr.bf16.mxu0 0
  %664 = vmatpush1.bf16.msra.mxu0 0
  %665 = vmatprep.subr.bf16.mxu0 0
  %666 = vmatpush1.bf16.msra.mxu0 0
  %667 = vmatprep.mubr.bf16.mxu0 0
  %668 = vmatmul.mubr.bf16.gmra.mrb[0].mxu0 %v432
  %v669 = vpop.f32.mrb[0].mxu0
  %v670 = vadd.f32 0.0, %v669
  %v671 = vpop.f32.mrb[0].mxu0
  %v672 = vadd.f32 0.0, %v671
  %v673 = vpop.f32.mrb[0].mxu0
  %v674 = vpop.f32.mrb[0].mxu0
  %675 = vdwg.mxu0
  %v680 = vcombine.low %v629, %v631
  %v681 = vcombine.low %v670, %v672
  %v683 = vunpack.c.l.s4 1966171168
  %v684 = vunpack.c.0.s8 %v683
  %v685 = vlaneseq
  %v686 = vshrl.u32 %v685, 7
  %v687 = vsub.s32 %v684, %v686
  %v688 = vrot.slane %v680, %v687
  %v690 = vunpack.c.l.s4 1966171168
  %v691 = vunpack.c.0.s8 %v690
  %v692 = vlaneseq
  %v693 = vshrl.u32 %v692, 7
  %v694 = vsub.s32 %v691, %v693
  %v695 = vrot.slane %v681, %v694
  %v696 = vcombine.low %v688, %v695
  %v697 = vcombine.high %v688, %v695
  %v699 = vunpack.c.l.s4 1966171168
  %v700 = vunpack.c.0.s8 %v699
  %v701 = vlaneseq
  %v702 = vshrl.u32 %v701, 7
  %v703 = vsub.s32 %v700, %v702
  %v704 = vrot.slane %v696, %v703
  %v706 = vunpack.c.l.s4 1966171168
  %v707 = vunpack.c.0.s8 %v706
  %v708 = vlaneseq
  %v709 = vshrl.u32 %v708, 7
  %v710 = vsub.s32 %v707, %v709
  %v711 = vrot.slane %v697, %v710
  %v714 = vadd.f32 %v420, %v704
  %v715 = vadd.f32 %v422, %v711
  %s716 = scalar_lea.vmem [#allocation2], 39
  %v717 = vld [vmem:[%s716] ss:$8 sm:$0xf]
  %s718 = scalar_lea.vmem [#allocation2], 103
  %v719 = vld [vmem:[%s718] ss:$8 sm:$0xf]
  %v720 = vpack.c.bf16 %v416, %v416
  %v721 = vpack.c.bf16 %v417, %v417
  %v724 = vunpack.c.l.b16 %v720
  %v725 = vunpack.c.l.b16 %v721
  %v726 = vrot.slane %v725, 7
  %v727 = vsel %vm430, %v726, %v724
  %v728 = vpack.c.b16 %v727, %v727
  %v762 = vunpack.c.l.b16 %v380
  %v763 = vunpack.c.h.b16 %v380
  %v764 = vunpack.c.l.b16 %v381
  %v765 = vunpack.c.h.b16 %v381
  %v766 = vunpack.c.l.b16 %v382
  %v767 = vunpack.c.h.b16 %v382
  %v768 = vunpack.c.l.b16 %v383
  %v769 = vunpack.c.h.b16 %v383
  %v770 = vunpack.c.l.b16 %v384
  %v771 = vunpack.c.h.b16 %v384
  %v772 = vunpack.c.l.b16 %v385
  %v773 = vunpack.c.h.b16 %v385
  %v774 = vunpack.c.l.b16 %v386
  %v775 = vunpack.c.h.b16 %v386
  %v776 = vunpack.c.l.b16 %v387
  %v777 = vunpack.c.h.b16 %v387
  %v778 = vunpack.c.l.b16 %v388
  %v779 = vunpack.c.h.b16 %v388
  %v780 = vunpack.c.l.b16 %v389
  %v781 = vunpack.c.h.b16 %v389
  %v782 = vunpack.c.l.b16 %v390
  %v783 = vunpack.c.h.b16 %v390
  %v784 = vunpack.c.l.b16 %v391
  %v785 = vunpack.c.h.b16 %v391
  %v786 = vunpack.c.l.b16 %v392
  %v787 = vunpack.c.h.b16 %v392
  %v788 = vunpack.c.l.b16 %v393
  %v789 = vunpack.c.h.b16 %v393
  %v790 = vunpack.c.l.b16 %v394
  %v791 = vunpack.c.h.b16 %v394
  %v792 = vunpack.c.l.b16 %v395
  %v793 = vunpack.c.h.b16 %v395
  %v794 = vunpack.c.l.b16 %v396
  %v795 = vunpack.c.h.b16 %v396
  %v796 = vunpack.c.l.b16 %v397
  %v797 = vunpack.c.h.b16 %v397
  %v798 = vunpack.c.l.b16 %v398
  %v799 = vunpack.c.h.b16 %v398
  %v800 = vunpack.c.l.b16 %v399
  %v801 = vunpack.c.h.b16 %v399
  %v802 = vunpack.c.l.b16 %v400
  %v803 = vunpack.c.h.b16 %v400
  %v804 = vunpack.c.l.b16 %v401
  %v805 = vunpack.c.h.b16 %v401
  %v806 = vunpack.c.l.b16 %v402
  %v807 = vunpack.c.h.b16 %v402
  %v808 = vunpack.c.l.b16 %v403
  %v809 = vunpack.c.h.b16 %v403
  %v810 = vunpack.c.l.b16 %v404
  %v811 = vunpack.c.h.b16 %v404
  %v812 = vunpack.c.l.b16 %v405
  %v813 = vunpack.c.h.b16 %v405
  %v814 = vunpack.c.l.b16 %v406
  %v815 = vunpack.c.h.b16 %v406
  %v816 = vunpack.c.l.b16 %v407
  %v817 = vunpack.c.h.b16 %v407
  %v818 = vunpack.c.l.b16 %v408
  %v819 = vunpack.c.h.b16 %v408
  %v820 = vunpack.c.l.b16 %v409
  %v821 = vunpack.c.h.b16 %v409
  %v822 = vunpack.c.l.b16 %v410
  %v823 = vunpack.c.h.b16 %v410
  %v824 = vunpack.c.l.b16 %v411
  %v825 = vunpack.c.h.b16 %v411
  %v826 = vpack.c.b16 %v766, %v762
  %v827 = vpack.c.b16 %v767, %v763
  %v828 = vpack.c.b16 %v768, %v764
  %v829 = vpack.c.b16 %v769, %v765
  %v830 = vpack.c.b16 %v774, %v770
  %v831 = vpack.c.b16 %v775, %v771
  %v832 = vpack.c.b16 %v776, %v772
  %v833 = vpack.c.b16 %v777, %v773
  %v834 = vpack.c.b16 %v782, %v778
  %v835 = vpack.c.b16 %v783, %v779
  %v836 = vpack.c.b16 %v784, %v780
  %v837 = vpack.c.b16 %v785, %v781
  %v838 = vpack.c.b16 %v790, %v786
  %v839 = vpack.c.b16 %v791, %v787
  %v840 = vpack.c.b16 %v792, %v788
  %v841 = vpack.c.b16 %v793, %v789
  %v842 = vpack.c.b16 %v798, %v794
  %v843 = vpack.c.b16 %v799, %v795
  %v844 = vpack.c.b16 %v800, %v796
  %v845 = vpack.c.b16 %v801, %v797
  %v846 = vpack.c.b16 %v806, %v802
  %v847 = vpack.c.b16 %v807, %v803
  %v848 = vpack.c.b16 %v808, %v804
  %v849 = vpack.c.b16 %v809, %v805
  %v850 = vpack.c.b16 %v814, %v810
  %v851 = vpack.c.b16 %v815, %v811
  %v852 = vpack.c.b16 %v816, %v812
  %v853 = vpack.c.b16 %v817, %v813
  %v854 = vpack.c.b16 %v822, %v818
  %v855 = vpack.c.b16 %v823, %v819
  %v856 = vpack.c.b16 %v824, %v820
  %v857 = vpack.c.b16 %v825, %v821
  %890 = vmatprep.subr.bf16.mxu0 %v827
  %891 = vmatpush1.bf16.msra.mxu0 %v826
  %892 = vmatprep.subr.bf16.mxu0 %v831
  %893 = vmatpush1.bf16.msra.mxu0 %v830
  %894 = vmatprep.subr.bf16.mxu0 %v835
  %895 = vmatpush1.bf16.msra.mxu0 %v834
  %896 = vmatprep.subr.bf16.mxu0 %v839
  %897 = vmatpush1.bf16.msra.mxu0 %v838
  %898 = vmatprep.subr.bf16.mxu0 %v843
  %899 = vmatpush1.bf16.msra.mxu0 %v842
  %900 = vmatprep.subr.bf16.mxu0 %v847
  %901 = vmatpush1.bf16.msra.mxu0 %v846
  %902 = vmatprep.subr.bf16.mxu0 %v851
  %903 = vmatpush1.bf16.msra.mxu0 %v850
  %904 = vmatprep.subr.bf16.mxu0 %v855
  %905 = vmatpush1.bf16.msra.mxu0 %v854
  %906 = vmatprep.subr.bf16.mxu0 0
  %907 = vmatpush1.bf16.msra.mxu0 0
  %908 = vmatprep.subr.bf16.mxu0 0
  %909 = vmatpush1.bf16.msra.mxu0 0
  %910 = vmatprep.subr.bf16.mxu0 0
  %911 = vmatpush1.bf16.msra.mxu0 0
  %912 = vmatprep.subr.bf16.mxu0 0
  %913 = vmatpush1.bf16.msra.mxu0 0
  %914 = vmatprep.subr.bf16.mxu0 0
  %915 = vmatpush1.bf16.msra.mxu0 0
  %916 = vmatprep.subr.bf16.mxu0 0
  %917 = vmatpush1.bf16.msra.mxu0 0
  %918 = vmatprep.subr.bf16.mxu0 0
  %919 = vmatpush1.bf16.msra.mxu0 0
  %920 = vmatprep.subr.bf16.mxu0 0
  %921 = vmatpush1.bf16.msra.mxu0 0
  %922 = vmatprep.mubr.bf16.mxu0 0
  %923 = vmatmul.mubr.bf16.gmra.mrb[0].mxu0 %v728
  %v924 = vpop.f32.mrb[0].mxu0
  %v925 = vadd.f32 0.0, %v924
  %v926 = vpop.f32.mrb[0].mxu0
  %v927 = vadd.f32 0.0, %v926
  %v928 = vpop.f32.mrb[0].mxu0
  %v929 = vpop.f32.mrb[0].mxu0
  %930 = vdwg.mxu0
  %931 = vmatprep.subr.bf16.mxu0 %v829
  %932 = vmatpush1.bf16.msra.mxu0 %v828
  %933 = vmatprep.subr.bf16.mxu0 %v833
  %934 = vmatpush1.bf16.msra.mxu0 %v832
  %935 = vmatprep.subr.bf16.mxu0 %v837
  %936 = vmatpush1.bf16.msra.mxu0 %v836
  %937 = vmatprep.subr.bf16.mxu0 %v841
  %938 = vmatpush1.bf16.msra.mxu0 %v840
  %939 = vmatprep.subr.bf16.mxu0 %v845
  %940 = vmatpush1.bf16.msra.mxu0 %v844
  %941 = vmatprep.subr.bf16.mxu0 %v849
  %942 = vmatpush1.bf16.msra.mxu0 %v848
  %943 = vmatprep.subr.bf16.mxu0 %v853
  %944 = vmatpush1.bf16.msra.mxu0 %v852
  %945 = vmatprep.subr.bf16.mxu0 %v857
  %946 = vmatpush1.bf16.msra.mxu0 %v856
  %947 = vmatprep.subr.bf16.mxu0 0
  %948 = vmatpush1.bf16.msra.mxu0 0
  %949 = vmatprep.subr.bf16.mxu0 0
  %950 = vmatpush1.bf16.msra.mxu0 0
  %951 = vmatprep.subr.bf16.mxu0 0
  %952 = vmatpush1.bf16.msra.mxu0 0
  %953 = vmatprep.subr.bf16.mxu0 0
  %954 = vmatpush1.bf16.msra.mxu0 0
  %955 = vmatprep.subr.bf16.mxu0 0
  %956 = vmatpush1.bf16.msra.mxu0 0
  %957 = vmatprep.subr.bf16.mxu0 0
  %958 = vmatpush1.bf16.msra.mxu0 0
  %959 = vmatprep.subr.bf16.mxu0 0
  %960 = vmatpush1.bf16.msra.mxu0 0
  %961 = vmatprep.subr.bf16.mxu0 0
  %962 = vmatpush1.bf16.msra.mxu0 0
  %963 = vmatprep.mubr.bf16.mxu0 0
  %964 = vmatmul.mubr.bf16.gmra.mrb[0].mxu0 %v728
  %v965 = vpop.f32.mrb[0].mxu0
  %v966 = vadd.f32 0.0, %v965
  %v967 = vpop.f32.mrb[0].mxu0
  %v968 = vadd.f32 0.0, %v967
  %v969 = vpop.f32.mrb[0].mxu0
  %v970 = vpop.f32.mrb[0].mxu0
  %971 = vdwg.mxu0
  %v976 = vcombine.low %v925, %v927
  %v977 = vcombine.low %v966, %v968
  %v979 = vunpack.c.l.s4 1966171168
  %v980 = vunpack.c.0.s8 %v979
  %v981 = vlaneseq
  %v982 = vshrl.u32 %v981, 7
  %v983 = vsub.s32 %v980, %v982
  %v984 = vrot.slane %v976, %v983
  %v986 = vunpack.c.l.s4 1966171168
  %v987 = vunpack.c.0.s8 %v986
  %v988 = vlaneseq
  %v989 = vshrl.u32 %v988, 7
  %v990 = vsub.s32 %v987, %v989
  %v991 = vrot.slane %v977, %v990
  %v992 = vcombine.low %v984, %v991
  %v993 = vcombine.high %v984, %v991
  %v995 = vunpack.c.l.s4 1966171168
  %v996 = vunpack.c.0.s8 %v995
  %v997 = vlaneseq
  %v998 = vshrl.u32 %v997, 7
  %v999 = vsub.s32 %v996, %v998
  %v1000 = vrot.slane %v992, %v999
  %v1002 = vunpack.c.l.s4 1966171168
  %v1003 = vunpack.c.0.s8 %v1002
  %v1004 = vlaneseq
  %v1005 = vshrl.u32 %v1004, 7
  %v1006 = vsub.s32 %v1003, %v1005
  %v1007 = vrot.slane %v993, %v1006
  %v1010 = vadd.f32 %v717, %v1000
  %v1011 = vadd.f32 %v719, %v1007
  %v1012 = vxor.u32 %v714, 2147483648
  %v1013 = vxor.u32 %v715, 2147483648
  %v1014 = vmul.f32 %v1012, 1.442695
  %v1015 = vpow.pop %v1014
  %v1016 = vmul.f32 %v1013, 1.442695
  %v1017 = vpow.pop %v1016
  %v1018 = vadd.f32 %v1015, 1.0
  %v1019 = vadd.f32 %v1017, 1.0
  %v1020 = vrcp.pop %v1018
  %v1021 = vmul.f32 1.0, %v1020
  %v1022 = vrcp.pop %v1019
  %v1023 = vmul.f32 1.0, %v1022
  %v1026 = vrot.slane %v714, 1
  %v1027 = vrot.slane %v715, 1
  %v1030 = vxor.u32 %v1026, 2147483648
  %v1031 = vxor.u32 %v1027, 2147483648
  %v1032 = vmul.f32 %v1030, 1.442695
  %v1033 = vpow.pop %v1032
  %v1034 = vmul.f32 %v1031, 1.442695
  %v1035 = vpow.pop %v1034
  %v1036 = vadd.f32 %v1033, 1.0
  %v1037 = vadd.f32 %v1035, 1.0
  %v1038 = vrcp.pop %v1036
  %v1039 = vmul.f32 1.0, %v1038
  %v1040 = vrcp.pop %v1037
  %v1041 = vmul.f32 1.0, %v1040
  %v1042 = vrot.slane %v714, 2
  %v1043 = vrot.slane %v715, 2
  %v1046 = vtanh.pop %v1042
  %v1047 = vtanh.pop %v1043
  %v1048 = vrot.slane %v714, 3
  %v1049 = vrot.slane %v715, 3
  %v1052 = vxor.u32 %v1048, 2147483648
  %v1053 = vxor.u32 %v1049, 2147483648
  %v1054 = vmul.f32 %v1052, 1.442695
  %v1055 = vpow.pop %v1054
  %v1056 = vmul.f32 %v1053, 1.442695
  %v1057 = vpow.pop %v1056
  %v1058 = vadd.f32 %v1055, 1.0
  %v1059 = vadd.f32 %v1057, 1.0
  %v1060 = vrcp.pop %v1058
  %v1061 = vmul.f32 1.0, %v1060
  %v1062 = vrcp.pop %v1059
  %v1063 = vmul.f32 1.0, %v1062
  %v1064 = vmul.f32 %v1039, %v414
  %v1065 = vmul.f32 %v1041, %v415
  %v1066 = vmul.f32 %v1021, %v1046
  %v1067 = vmul.f32 %v1023, %v1047
  %v1068 = vadd.f32 %v1064, %v1066
  %v1069 = vadd.f32 %v1065, %v1067
  %v1070 = vtanh.pop %v1068
  %v1071 = vtanh.pop %v1069
  %v1072 = vmul.f32 %v1061, %v1070
  %v1073 = vmul.f32 %v1063, %v1071
  %v1074 = vxor.u32 %v1010, 2147483648
  %v1075 = vxor.u32 %v1011, 2147483648
  %v1076 = vmul.f32 %v1074, 1.442695
  %v1077 = vpow.pop %v1076
  %v1078 = vmul.f32 %v1075, 1.442695
  %v1079 = vpow.pop %v1078
  %v1080 = vadd.f32 %v1077, 1.0
  %v1081 = vadd.f32 %v1079, 1.0
  %v1082 = vrcp.pop %v1080
  %v1083 = vmul.f32 1.0, %v1082
  %v1084 = vrcp.pop %v1081
  %v1085 = vmul.f32 1.0, %v1084
  %v1088 = vrot.slane %v1010, 1
  %v1089 = vrot.slane %v1011, 1
  %v1092 = vxor.u32 %v1088, 2147483648
  %v1093 = vxor.u32 %v1089, 2147483648
  %v1094 = vmul.f32 %v1092, 1.442695
  %v1095 = vpow.pop %v1094
  %v1096 = vmul.f32 %v1093, 1.442695
  %v1097 = vpow.pop %v1096
  %v1098 = vadd.f32 %v1095, 1.0
  %v1099 = vadd.f32 %v1097, 1.0
  %v1100 = vrcp.pop %v1098
  %v1101 = vmul.f32 1.0, %v1100
  %v1102 = vrcp.pop %v1099
  %v1103 = vmul.f32 1.0, %v1102
  %v1104 = vrot.slane %v1010, 2
  %v1105 = vrot.slane %v1011, 2
  %v1108 = vtanh.pop %v1104
  %v1109 = vtanh.pop %v1105
  %v1110 = vrot.slane %v1010, 3
  %v1111 = vrot.slane %v1011, 3
  %v1114 = vxor.u32 %v1110, 2147483648
  %v1115 = vxor.u32 %v1111, 2147483648
  %v1116 = vmul.f32 %v1114, 1.442695
  %v1117 = vpow.pop %v1116
  %v1118 = vmul.f32 %v1115, 1.442695
  %v1119 = vpow.pop %v1118
  %v1120 = vadd.f32 %v1117, 1.0
  %v1121 = vadd.f32 %v1119, 1.0
  %v1122 = vrcp.pop %v1120
  %v1123 = vmul.f32 1.0, %v1122
  %v1124 = vrcp.pop %v1121
  %v1125 = vmul.f32 1.0, %v1124
  %v1126 = vmul.f32 %v1101, %v418
  %v1127 = vmul.f32 %v1103, %v419
  %v1128 = vmul.f32 %v1083, %v1108
  %v1129 = vmul.f32 %v1085, %v1109
  %v1130 = vadd.f32 %v1126, %v1128
  %v1131 = vadd.f32 %v1127, %v1129
  %v1132 = vtanh.pop %v1130
  %v1133 = vtanh.pop %v1131
  %v1134 = vmul.f32 %v1123, %v1132
  %v1135 = vmul.f32 %v1125, %v1133
  %1136 = vst [vmem:[#allocation3] sm:$0x1] %v1072
  %1137 = vst [vmem:[#allocation3 + $0x8] sm:$0x1] %v1073
  %1138 = vst [vmem:[#allocation4 + $0x7] sm:$0x1] %v1134
  %1139 = vst [vmem:[#allocation4 + $0xf] sm:$0x1] %v1135
  %s1140 = scalar_lea.vmem [#allocation2], 1
  %v1141 = vld [vmem:[%s1140] ss:$8 sm:$0xf]
  %s1142 = scalar_lea.vmem [#allocation2], 65
  %v1143 = vld [vmem:[%s1142] ss:$8 sm:$0xf]
  %v1144 = vpack.c.bf16 %v1072, %v1072
  %v1145 = vpack.c.bf16 %v1073, %v1073
  %v1148 = vunpack.c.l.b16 %v1144
  %v1149 = vunpack.c.l.b16 %v1145
  %v1150 = vrot.slane %v1149, 7
  %v1151 = vsel %vm430, %v1150, %v1148
  %v1152 = vpack.c.b16 %v1151, %v1151
  %1154 = vmatprep.subr.bf16.mxu0 %v531
  %1155 = vmatpush1.bf16.msra.mxu0 %v530
  %1156 = vmatprep.subr.bf16.mxu0 %v535
  %1157 = vmatpush1.bf16.msra.mxu0 %v534
  %1158 = vmatprep.subr.bf16.mxu0 %v539
  %1159 = vmatpush1.bf16.msra.mxu0 %v538
  %1160 = vmatprep.subr.bf16.mxu0 %v543
  %1161 = vmatpush1.bf16.msra.mxu0 %v542
  %1162 = vmatprep.subr.bf16.mxu0 %v547
  %1163 = vmatpush1.bf16.msra.mxu0 %v546
  %1164 = vmatprep.subr.bf16.mxu0 %v551
  %1165 = vmatpush1.bf16.msra.mxu0 %v550
  %1166 = vmatprep.subr.bf16.mxu0 %v555
  %1167 = vmatpush1.bf16.msra.mxu0 %v554
  %1168 = vmatprep.subr.bf16.mxu0 %v559
  %1169 = vmatpush1.bf16.msra.mxu0 %v558
  %1170 = vmatprep.subr.bf16.mxu0 0
  %1171 = vmatpush1.bf16.msra.mxu0 0
  %1172 = vmatprep.subr.bf16.mxu0 0
  %1173 = vmatpush1.bf16.msra.mxu0 0
  %1174 = vmatprep.subr.bf16.mxu0 0
  %1175 = vmatpush1.bf16.msra.mxu0 0
  %1176 = vmatprep.subr.bf16.mxu0 0
  %1177 = vmatpush1.bf16.msra.mxu0 0
  %1178 = vmatprep.subr.bf16.mxu0 0
  %1179 = vmatpush1.bf16.msra.mxu0 0
  %1180 = vmatprep.subr.bf16.mxu0 0
  %1181 = vmatpush1.bf16.msra.mxu0 0
  %1182 = vmatprep.subr.bf16.mxu0 0
  %1183 = vmatpush1.bf16.msra.mxu0 0
  %1184 = vmatprep.subr.bf16.mxu0 0
  %1185 = vmatpush1.bf16.msra.mxu0 0
  %1186 = vmatprep.mubr.bf16.mxu0 0
  %1187 = vmatmul.mubr.bf16.gmra.mrb[0].mxu0 %v1152
  %v1188 = vpop.f32.mrb[0].mxu0
  %v1189 = vadd.f32 0.0, %v1188
  %v1190 = vpop.f32.mrb[0].mxu0
  %v1191 = vadd.f32 0.0, %v1190
  %v1192 = vpop.f32.mrb[0].mxu0
  %v1193 = vpop.f32.mrb[0].mxu0
  %1194 = vdwg.mxu0
  %1195 = vmatprep.subr.bf16.mxu0 %v533
  %1196 = vmatpush1.bf16.msra.mxu0 %v532
  %1197 = vmatprep.subr.bf16.mxu0 %v537
  %1198 = vmatpush1.bf16.msra.mxu0 %v536
  %1199 = vmatprep.subr.bf16.mxu0 %v541
  %1200 = vmatpush1.bf16.msra.mxu0 %v540
  %1201 = vmatprep.subr.bf16.mxu0 %v545
  %1202 = vmatpush1.bf16.msra.mxu0 %v544
  %1203 = vmatprep.subr.bf16.mxu0 %v549
  %1204 = vmatpush1.bf16.msra.mxu0 %v548
  %1205 = vmatprep.subr.bf16.mxu0 %v553
  %1206 = vmatpush1.bf16.msra.mxu0 %v552
  %1207 = vmatprep.subr.bf16.mxu0 %v557
  %1208 = vmatpush1.bf16.msra.mxu0 %v556
  %1209 = vmatprep.subr.bf16.mxu0 %v561
  %1210 = vmatpush1.bf16.msra.mxu0 %v560
  %1211 = vmatprep.subr.bf16.mxu0 0
  %1212 = vmatpush1.bf16.msra.mxu0 0
  %1213 = vmatprep.subr.bf16.mxu0 0
  %1214 = vmatpush1.bf16.msra.mxu0 0
  %1215 = vmatprep.subr.bf16.mxu0 0
  %1216 = vmatpush1.bf16.msra.mxu0 0
  %1217 = vmatprep.subr.bf16.mxu0 0
  %1218 = vmatpush1.bf16.msra.mxu0 0
  %1219 = vmatprep.subr.bf16.mxu0 0
  %1220 = vmatpush1.bf16.msra.mxu0 0
  %1221 = vmatprep.subr.bf16.mxu0 0
  %1222 = vmatpush1.bf16.msra.mxu0 0
  %1223 = vmatprep.subr.bf16.mxu0 0
  %1224 = vmatpush1.bf16.msra.mxu0 0
  %1225 = vmatprep.subr.bf16.mxu0 0
  %1226 = vmatpush1.bf16.msra.mxu0 0
  %1227 = vmatprep.mubr.bf16.mxu0 0
  %1228 = vmatmul.mubr.bf16.gmra.mrb[0].mxu0 %v1152
  %v1229 = vpop.f32.mrb[0].mxu0
  %v1230 = vadd.f32 0.0, %v1229
  %v1231 = vpop.f32.mrb[0].mxu0
  %v1232 = vadd.f32 0.0, %v1231
  %v1233 = vpop.f32.mrb[0].mxu0
  %v1234 = vpop.f32.mrb[0].mxu0
  %1235 = vdwg.mxu0
  %v1240 = vcombine.low %v1189, %v1191
  %v1241 = vcombine.low %v1230, %v1232
  %v1243 = vunpack.c.l.s4 1966171168
  %v1244 = vunpack.c.0.s8 %v1243
  %v1245 = vlaneseq
  %v1246 = vshrl.u32 %v1245, 7
  %v1247 = vsub.s32 %v1244, %v1246
  %v1248 = vrot.slane %v1240, %v1247
  %v1250 = vunpack.c.l.s4 1966171168
  %v1251 = vunpack.c.0.s8 %v1250
  %v1252 = vlaneseq
  %v1253 = vshrl.u32 %v1252, 7
  %v1254 = vsub.s32 %v1251, %v1253
  %v1255 = vrot.slane %v1241, %v1254
  %v1256 = vcombine.low %v1248, %v1255
  %v1257 = vcombine.high %v1248, %v1255
  %v1259 = vunpack.c.l.s4 1966171168
  %v1260 = vunpack.c.0.s8 %v1259
  %v1261 = vlaneseq
  %v1262 = vshrl.u32 %v1261, 7
  %v1263 = vsub.s32 %v1260, %v1262
  %v1264 = vrot.slane %v1256, %v1263
  %v1266 = vunpack.c.l.s4 1966171168
  %v1267 = vunpack.c.0.s8 %v1266
  %v1268 = vlaneseq
  %v1269 = vshrl.u32 %v1268, 7
  %v1270 = vsub.s32 %v1267, %v1269
  %v1271 = vrot.slane %v1257, %v1270
  %v1274 = vadd.f32 %v1141, %v1264
  %v1275 = vadd.f32 %v1143, %v1271
  %s1276 = scalar_lea.vmem [#allocation2], 38
  %v1277 = vld [vmem:[%s1276] ss:$8 sm:$0xf]
  %s1278 = scalar_lea.vmem [#allocation2], 102
  %v1279 = vld [vmem:[%s1278] ss:$8 sm:$0xf]
  %v1280 = vpack.c.bf16 %v1134, %v1134
  %v1281 = vpack.c.bf16 %v1135, %v1135
  %v1284 = vunpack.c.l.b16 %v1280
  %v1285 = vunpack.c.l.b16 %v1281
  %v1286 = vrot.slane %v1285, 7
  %v1287 = vsel %vm430, %v1286, %v1284
  %v1288 = vpack.c.b16 %v1287, %v1287
  %1290 = vmatprep.subr.bf16.mxu0 %v827
  %1291 = vmatpush1.bf16.msra.mxu0 %v826
  %1292 = vmatprep.subr.bf16.mxu0 %v831
  %1293 = vmatpush1.bf16.msra.mxu0 %v830
  %1294 = vmatprep.subr.bf16.mxu0 %v835
  %1295 = vmatpush1.bf16.msra.mxu0 %v834
  %1296 = vmatprep.subr.bf16.mxu0 %v839
  %1297 = vmatpush1.bf16.msra.mxu0 %v838
  %1298 = vmatprep.subr.bf16.mxu0 %v843
  %1299 = vmatpush1.bf16.msra.mxu0 %v842
  %1300 = vmatprep.subr.bf16.mxu0 %v847
  %1301 = vmatpush1.bf16.msra.mxu0 %v846
  %1302 = vmatprep.subr.bf16.mxu0 %v851
  %1303 = vmatpush1.bf16.msra.mxu0 %v850
  %1304 = vmatprep.subr.bf16.mxu0 %v855
  %1305 = vmatpush1.bf16.msra.mxu0 %v854
  %1306 = vmatprep.subr.bf16.mxu0 0
  %1307 = vmatpush1.bf16.msra.mxu0 0
  %1308 = vmatprep.subr.bf16.mxu0 0
  %1309 = vmatpush1.bf16.msra.mxu0 0
  %1310 = vmatprep.subr.bf16.mxu0 0
  %1311 = vmatpush1.bf16.msra.mxu0 0
  %1312 = vmatprep.subr.bf16.mxu0 0
  %1313 = vmatpush1.bf16.msra.mxu0 0
  %1314 = vmatprep.subr.bf16.mxu0 0
  %1315 = vmatpush1.bf16.msra.mxu0 0
  %1316 = vmatprep.subr.bf16.mxu0 0
  %1317 = vmatpush1.bf16.msra.mxu0 0
  %1318 = vmatprep.subr.bf16.mxu0 0
  %1319 = vmatpush1.bf16.msra.mxu0 0
  %1320 = vmatprep.subr.bf16.mxu0 0
  %1321 = vmatpush1.bf16.msra.mxu0 0
  %1322 = vmatprep.mubr.bf16.mxu0 0
  %1323 = vmatmul.mubr.bf16.gmra.mrb[0].mxu0 %v1288
  %v1324 = vpop.f32.mrb[0].mxu0
  %v1325 = vadd.f32 0.0, %v1324
  %v1326 = vpop.f32.mrb[0].mxu0
  %v1327 = vadd.f32 0.0, %v1326
  %v1328 = vpop.f32.mrb[0].mxu0
  %v1329 = vpop.f32.mrb[0].mxu0
  %1330 = vdwg.mxu0
  %1331 = vmatprep.subr.bf16.mxu0 %v829
  %1332 = vmatpush1.bf16.msra.mxu0 %v828
  %1333 = vmatprep.subr.bf16.mxu0 %v833
  %1334 = vmatpush1.bf16.msra.mxu0 %v832
  %1335 = vmatprep.subr.bf16.mxu0 %v837
  %1336 = vmatpush1.bf16.msra.mxu0 %v836
  %1337 = vmatprep.subr.bf16.mxu0 %v841
  %1338 = vmatpush1.bf16.msra.mxu0 %v840
  %1339 = vmatprep.subr.bf16.mxu0 %v845
  %1340 = vmatpush1.bf16.msra.mxu0 %v844
  %1341 = vmatprep.subr.bf16.mxu0 %v849
  %1342 = vmatpush1.bf16.msra.mxu0 %v848
  %1343 = vmatprep.subr.bf16.mxu0 %v853
  %1344 = vmatpush1.bf16.msra.mxu0 %v852
  %1345 = vmatprep.subr.bf16.mxu0 %v857
  %1346 = vmatpush1.bf16.msra.mxu0 %v856
  %1347 = vmatprep.subr.bf16.mxu0 0
  %1348 = vmatpush1.bf16.msra.mxu0 0
  %1349 = vmatprep.subr.bf16.mxu0 0
  %1350 = vmatpush1.bf16.msra.mxu0 0
  %1351 = vmatprep.subr.bf16.mxu0 0
  %1352 = vmatpush1.bf16.msra.mxu0 0
  %1353 = vmatprep.subr.bf16.mxu0 0
  %1354 = vmatpush1.bf16.msra.mxu0 0
  %1355 = vmatprep.subr.bf16.mxu0 0
  %1356 = vmatpush1.bf16.msra.mxu0 0
  %1357 = vmatprep.subr.bf16.mxu0 0
  %1358 = vmatpush1.bf16.msra.mxu0 0
  %1359 = vmatprep.subr.bf16.mxu0 0
  %1360 = vmatpush1.bf16.msra.mxu0 0
  %1361 = vmatprep.subr.bf16.mxu0 0
  %1362 = vmatpush1.bf16.msra.mxu0 0
  %1363 = vmatprep.mubr.bf16.mxu0 0
  %1364 = vmatmul.mubr.bf16.gmra.mrb[0].mxu0 %v1288
  %v1365 = vpop.f32.mrb[0].mxu0
  %v1366 = vadd.f32 0.0, %v1365
  %v1367 = vpop.f32.mrb[0].mxu0
  %v1368 = vadd.f32 0.0, %v1367
  %v1369 = vpop.f32.mrb[0].mxu0
  %v1370 = vpop.f32.mrb[0].mxu0
  %1371 = vdwg.mxu0
  %v1376 = vcombine.low %v1325, %v1327
  %v1377 = vcombine.low %v1366, %v1368
  %v1379 = vunpack.c.l.s4 1966171168
  %v1380 = vunpack.c.0.s8 %v1379
  %v1381 = vlaneseq
  %v1382 = vshrl.u32 %v1381, 7
  %v1383 = vsub.s32 %v1380, %v1382
  %v1384 = vrot.slane %v1376, %v1383
  %v1386 = vunpack.c.l.s4 1966171168
  %v1387 = vunpack.c.0.s8 %v1386
  %v1388 = vlaneseq
  %v1389 = vshrl.u32 %v1388, 7
  %v1390 = vsub.s32 %v1387, %v1389
  %v1391 = vrot.slane %v1377, %v1390
  %v1392 = vcombine.low %v1384, %v1391
  %v1393 = vcombine.high %v1384, %v1391
  %v1395 = vunpack.c.l.s4 1966171168
  %v1396 = vunpack.c.0.s8 %v1395
  %v1397 = vlaneseq
  %v1398 = vshrl.u32 %v1397, 7
  %v1399 = vsub.s32 %v1396, %v1398
  %v1400 = vrot.slane %v1392, %v1399
  %v1402 = vunpack.c.l.s4 1966171168
  %v1403 = vunpack.c.0.s8 %v1402
  %v1404 = vlaneseq
  %v1405 = vshrl.u32 %v1404, 7
  %v1406 = vsub.s32 %v1403, %v1405
  %v1407 = vrot.slane %v1393, %v1406
  %v1410 = vadd.f32 %v1277, %v1400
  %v1411 = vadd.f32 %v1279, %v1407
  %v1412 = vxor.u32 %v1274, 2147483648
  %v1413 = vxor.u32 %v1275, 2147483648
  %v1414 = vmul.f32 %v1412, 1.442695
  %v1415 = vpow.pop %v1414
  %v1416 = vmul.f32 %v1413, 1.442695
  %v1417 = vpow.pop %v1416
  %v1418 = vadd.f32 %v1415, 1.0
  %v1419 = vadd.f32 %v1417, 1.0
  %v1420 = vrcp.pop %v1418
  %v1421 = vmul.f32 1.0, %v1420
  %v1422 = vrcp.pop %v1419
  %v1423 = vmul.f32 1.0, %v1422
  %v1426 = vrot.slane %v1274, 1
  %v1427 = vrot.slane %v1275, 1
  %v1430 = vxor.u32 %v1426, 2147483648
  %v1431 = vxor.u32 %v1427, 2147483648
  %v1432 = vmul.f32 %v1430, 1.442695
  %v1433 = vpow.pop %v1432
  %v1434 = vmul.f32 %v1431, 1.442695
  %v1435 = vpow.pop %v1434
  %v1436 = vadd.f32 %v1433, 1.0
  %v1437 = vadd.f32 %v1435, 1.0
  %v1438 = vrcp.pop %v1436
  %v1439 = vmul.f32 1.0, %v1438
  %v1440 = vrcp.pop %v1437
  %v1441 = vmul.f32 1.0, %v1440
  %v1442 = vrot.slane %v1274, 2
  %v1443 = vrot.slane %v1275, 2
  %v1446 = vtanh.pop %v1442
  %v1447 = vtanh.pop %v1443
  %v1448 = vrot.slane %v1274, 3
  %v1449 = vrot.slane %v1275, 3
  %v1452 = vxor.u32 %v1448, 2147483648
  %v1453 = vxor.u32 %v1449, 2147483648
  %v1454 = vmul.f32 %v1452, 1.442695
  %v1455 = vpow.pop %v1454
  %v1456 = vmul.f32 %v1453, 1.442695
  %v1457 = vpow.pop %v1456
  %v1458 = vadd.f32 %v1455, 1.0
  %v1459 = vadd.f32 %v1457, 1.0
  %v1460 = vrcp.pop %v1458
  %v1461 = vmul.f32 1.0, %v1460
  %v1462 = vrcp.pop %v1459
  %v1463 = vmul.f32 1.0, %v1462
  %v1464 = vmul.f32 %v1439, %v1068
  %v1465 = vmul.f32 %v1441, %v1069
  %v1466 = vmul.f32 %v1421, %v1446
  %v1467 = vmul.f32 %v1423, %v1447
  %v1468 = vadd.f32 %v1464, %v1466
  %v1469 = vadd.f32 %v1465, %v1467
  %v1470 = vtanh.pop %v1468
  %v1471 = vtanh.pop %v1469
  %v1472 = vmul.f32 %v1461, %v1470
  %v1473 = vmul.f32 %v1463, %v1471
  %v1474 = vxor.u32 %v1410, 2147483648
  %v1475 = vxor.u32 %v1411, 2147483648
  %v1476 = vmul.f32 %v1474, 1.442695
  %v1477 = vpow.pop %v1476
  %v1478 = vmul.f32 %v1475, 1.442695
  %v1479 = vpow.pop %v1478
  %v1480 = vadd.f32 %v1477, 1.0
  %v1481 = vadd.f32 %v1479, 1.0
  %v1482 = vrcp.pop %v1480
  %v1483 = vmul.f32 1.0, %v1482
  %v1484 = vrcp.pop %v1481
  %v1485 = vmul.f32 1.0, %v1484
  %v1488 = vrot.slane %v1410, 1
  %v1489 = vrot.slane %v1411, 1
  %v1492 = vxor.u32 %v1488, 2147483648
  %v1493 = vxor.u32 %v1489, 2147483648
  %v1494 = vmul.f32 %v1492, 1.442695
  %v1495 = vpow.pop %v1494
  %v1496 = vmul.f32 %v1493, 1.442695
  %v1497 = vpow.pop %v1496
  %v1498 = vadd.f32 %v1495, 1.0
  %v1499 = vadd.f32 %v1497, 1.0
  %v1500 = vrcp.pop %v1498
  %v1501 = vmul.f32 1.0, %v1500
  %v1502 = vrcp.pop %v1499
  %v1503 = vmul.f32 1.0, %v1502
  %v1504 = vrot.slane %v1410, 2
  %v1505 = vrot.slane %v1411, 2
  %v1508 = vtanh.pop %v1504
  %v1509 = vtanh.pop %v1505
  %v1510 = vrot.slane %v1410, 3
  %v1511 = vrot.slane %v1411, 3
  %v1514 = vxor.u32 %v1510, 2147483648
  %v1515 = vxor.u32 %v1511, 2147483648
  %v1516 = vmul.f32 %v1514, 1.442695
  %v1517 = vpow.pop %v1516
  %v1518 = vmul.f32 %v1515, 1.442695
  %v1519 = vpow.pop %v1518
  %v1520 = vadd.f32 %v1517, 1.0
  %v1521 = vadd.f32 %v1519, 1.0
  %v1522 = vrcp.pop %v1520
  %v1523 = vmul.f32 1.0, %v1522
  %v1524 = vrcp.pop %v1521
  %v1525 = vmul.f32 1.0, %v1524
  %v1526 = vmul.f32 %v1501, %v1130
  %v1527 = vmul.f32 %v1503, %v1131
  %v1528 = vmul.f32 %v1483, %v1508
  %v1529 = vmul.f32 %v1485, %v1509
  %v1530 = vadd.f32 %v1526, %v1528
  %v1531 = vadd.f32 %v1527, %v1529
  %v1532 = vtanh.pop %v1530
  %v1533 = vtanh.pop %v1531
  %v1534 = vmul.f32 %v1523, %v1532
  %v1535 = vmul.f32 %v1525, %v1533
  %1536 = vst [vmem:[#allocation3 + $0x1] sm:$0x1] %v1472
  %1537 = vst [vmem:[#allocation3 + $0x9] sm:$0x1] %v1473
  %1538 = vst [vmem:[#allocation4 + $0x6] sm:$0x1] %v1534
  %1539 = vst [vmem:[#allocation4 + $0xe] sm:$0x1] %v1535
  %s1540 = scalar_lea.vmem [#allocation2], 2
  %v1541 = vld [vmem:[%s1540] ss:$8 sm:$0xf]
  %s1542 = scalar_lea.vmem [#allocation2], 66
  %v1543 = vld [vmem:[%s1542] ss:$8 sm:$0xf]
  %v1544 = vpack.c.bf16 %v1472, %v1472
  %v1545 = vpack.c.bf16 %v1473, %v1473
  %v1548 = vunpack.c.l.b16 %v1544
  %v1549 = vunpack.c.l.b16 %v1545
  %v1550 = vrot.slane %v1549, 7
  %v1551 = vsel %vm430, %v1550, %v1548
  %v1552 = vpack.c.b16 %v1551, %v1551
  %1554 = vmatprep.subr.bf16.mxu0 %v531
  %1555 = vmatpush1.bf16.msra.mxu0 %v530
  %1556 = vmatprep.subr.bf16.mxu0 %v535
  %1557 = vmatpush1.bf16.msra.mxu0 %v534
  %1558 = vmatprep.subr.bf16.mxu0 %v539
  %1559 = vmatpush1.bf16.msra.mxu0 %v538
  %1560 = vmatprep.subr.bf16.mxu0 %v543
  %1561 = vmatpush1.bf16.msra.mxu0 %v542
  %1562 = vmatprep.subr.bf16.mxu0 %v547
  %1563 = vmatpush1.bf16.msra.mxu0 %v546
  %1564 = vmatprep.subr.bf16.mxu0 %v551
  %1565 = vmatpush1.bf16.msra.mxu0 %v550
  %1566 = vmatprep.subr.bf16.mxu0 %v555
  %1567 = vmatpush1.bf16.msra.mxu0 %v554
  %1568 = vmatprep.subr.bf16.mxu0 %v559
  %1569 = vmatpush1.bf16.msra.mxu0 %v558
  %1570 = vmatprep.subr.bf16.mxu0 0
  %1571 = vmatpush1.bf16.msra.mxu0 0
  %1572 = vmatprep.subr.bf16.mxu0 0
  %1573 = vmatpush1.bf16.msra.mxu0 0
  %1574 = vmatprep.subr.bf16.mxu0 0
  %1575 = vmatpush1.bf16.msra.mxu0 0
  %1576 = vmatprep.subr.bf16.mxu0 0
  %1577 = vmatpush1.bf16.msra.mxu0 0
  %1578 = vmatprep.subr.bf16.mxu0 0
  %1579 = vmatpush1.bf16.msra.mxu0 0
  %1580 = vmatprep.subr.bf16.mxu0 0
  %1581 = vmatpush1.bf16.msra.mxu0 0
  %1582 = vmatprep.subr.bf16.mxu0 0
  %1583 = vmatpush1.bf16.msra.mxu0 0
  %1584 = vmatprep.subr.bf16.mxu0 0
  %1585 = vmatpush1.bf16.msra.mxu0 0
  %1586 = vmatprep.mubr.bf16.mxu0 0
  %1587 = vmatmul.mubr.bf16.gmra.mrb[0].mxu0 %v1552
  %v1588 = vpop.f32.mrb[0].mxu0
  %v1589 = vadd.f32 0.0, %v1588
  %v1590 = vpop.f32.mrb[0].mxu0
  %v1591 = vadd.f32 0.0, %v1590
  %v1592 = vpop.f32.mrb[0].mxu0
  %v1593 = vpop.f32.mrb[0].mxu0
  %1594 = vdwg.mxu0
  %1595 = vmatprep.subr.bf16.mxu0 %v533
  %1596 = vmatpush1.bf16.msra.mxu0 %v532
  %1597 = vmatprep.subr.bf16.mxu0 %v537
  %1598 = vmatpush1.bf16.msra.mxu0 %v536
  %1599 = vmatprep.subr.bf16.mxu0 %v541
  %1600 = vmatpush1.bf16.msra.mxu0 %v540
  %1601 = vmatprep.subr.bf16.mxu0 %v545
  %1602 = vmatpush1.bf16.msra.mxu0 %v544
  %1603 = vmatprep.subr.bf16.mxu0 %v549
  %1604 = vmatpush1.bf16.msra.mxu0 %v548
  %1605 = vmatprep.subr.bf16.mxu0 %v553
  %1606 = vmatpush1.bf16.msra.mxu0 %v552
  %1607 = vmatprep.subr.bf16.mxu0 %v557
  %1608 = vmatpush1.bf16.msra.mxu0 %v556
  %1609 = vmatprep.subr.bf16.mxu0 %v561
  %1610 = vmatpush1.bf16.msra.mxu0 %v560
  %1611 = vmatprep.subr.bf16.mxu0 0
  %1612 = vmatpush1.bf16.msra.mxu0 0
  %1613 = vmatprep.subr.bf16.mxu0 0
  %1614 = vmatpush1.bf16.msra.mxu0 0
  %1615 = vmatprep.subr.bf16.mxu0 0
  %1616 = vmatpush1.bf16.msra.mxu0 0
  %1617 = vmatprep.subr.bf16.mxu0 0
  %1618 = vmatpush1.bf16.msra.mxu0 0
  %1619 = vmatprep.subr.bf16.mxu0 0
  %1620 = vmatpush1.bf16.msra.mxu0 0
  %1621 = vmatprep.subr.bf16.mxu0 0
  %1622 = vmatpush1.bf16.msra.mxu0 0
  %1623 = vmatprep.subr.bf16.mxu0 0
  %1624 = vmatpush1.bf16.msra.mxu0 0
  %1625 = vmatprep.subr.bf16.mxu0 0
  %1626 = vmatpush1.bf16.msra.mxu0 0
  %1627 = vmatprep.mubr.bf16.mxu0 0
  %1628 = vmatmul.mubr.bf16.gmra.mrb[0].mxu0 %v1552
  %v1629 = vpop.f32.mrb[0].mxu0
  %v1630 = vadd.f32 0.0, %v1629
  %v1631 = vpop.f32.mrb[0].mxu0
  %v1632 = vadd.f32 0.0, %v1631
  %v1633 = vpop.f32.mrb[0].mxu0
  %v1634 = vpop.f32.mrb[0].mxu0
  %1635 = vdwg.mxu0
  %v1640 = vcombine.low %v1589, %v1591
  %v1641 = vcombine.low %v1630, %v1632
  %v1643 = vunpack.c.l.s4 1966171168
  %v1644 = vunpack.c.0.s8 %v1643
  %v1645 = vlaneseq
  %v1646 = vshrl.u32 %v1645, 7
  %v1647 = vsub.s32 %v1644, %v1646
  %v1648 = vrot.slane %v1640, %v1647
  %v1650 = vunpack.c.l.s4 1966171168
  %v1651 = vunpack.c.0.s8 %v1650
  %v1652 = vlaneseq
  %v1653 = vshrl.u32 %v1652, 7
  %v1654 = vsub.s32 %v1651, %v1653
  %v1655 = vrot.slane %v1641, %v1654
  %v1656 = vcombine.low %v1648, %v1655
  %v1657 = vcombine.high %v1648, %v1655
  %v1659 = vunpack.c.l.s4 1966171168
  %v1660 = vunpack.c.0.s8 %v1659
  %v1661 = vlaneseq
  %v1662 = vshrl.u32 %v1661, 7
  %v1663 = vsub.s32 %v1660, %v1662
  %v1664 = vrot.slane %v1656, %v1663
  %v1666 = vunpack.c.l.s4 1966171168
  %v1667 = vunpack.c.0.s8 %v1666
  %v1668 = vlaneseq
  %v1669 = vshrl.u32 %v1668, 7
  %v1670 = vsub.s32 %v1667, %v1669
  %v1671 = vrot.slane %v1657, %v1670
  %v1674 = vadd.f32 %v1541, %v1664
  %v1675 = vadd.f32 %v1543, %v1671
  %s1676 = scalar_lea.vmem [#allocation2], 37
  %v1677 = vld [vmem:[%s1676] ss:$8 sm:$0xf]
  %s1678 = scalar_lea.vmem [#allocation2], 101
  %v1679 = vld [vmem:[%s1678] ss:$8 sm:$0xf]
  %v1680 = vpack.c.bf16 %v1534, %v1534
  %v1681 = vpack.c.bf16 %v1535, %v1535
  %v1684 = vunpack.c.l.b16 %v1680
  %v1685 = vunpack.c.l.b16 %v1681
  %v1686 = vrot.slane %v1685, 7
  %v1687 = vsel %vm430, %v1686, %v1684
  %v1688 = vpack.c.b16 %v1687, %v1687
  %1690 = vmatprep.subr.bf16.mxu0 %v827
  %1691 = vmatpush1.bf16.msra.mxu0 %v826
  %1692 = vmatprep.subr.bf16.mxu0 %v831
  %1693 = vmatpush1.bf16.msra.mxu0 %v830
  %1694 = vmatprep.subr.bf16.mxu0 %v835
  %1695 = vmatpush1.bf16.msra.mxu0 %v834
  %1696 = vmatprep.subr.bf16.mxu0 %v839
  %1697 = vmatpush1.bf16.msra.mxu0 %v838
  %1698 = vmatprep.subr.bf16.mxu0 %v843
  %1699 = vmatpush1.bf16.msra.mxu0 %v842
  %1700 = vmatprep.subr.bf16.mxu0 %v847
  %1701 = vmatpush1.bf16.msra.mxu0 %v846
  %1702 = vmatprep.subr.bf16.mxu0 %v851
  %1703 = vmatpush1.bf16.msra.mxu0 %v850
  %1704 = vmatprep.subr.bf16.mxu0 %v855
  %1705 = vmatpush1.bf16.msra.mxu0 %v854
  %1706 = vmatprep.subr.bf16.mxu0 0
  %1707 = vmatpush1.bf16.msra.mxu0 0
  %1708 = vmatprep.subr.bf16.mxu0 0
  %1709 = vmatpush1.bf16.msra.mxu0 0
  %1710 = vmatprep.subr.bf16.mxu0 0
  %1711 = vmatpush1.bf16.msra.mxu0 0
  %1712 = vmatprep.subr.bf16.mxu0 0
  %1713 = vmatpush1.bf16.msra.mxu0 0
  %1714 = vmatprep.subr.bf16.mxu0 0
  %1715 = vmatpush1.bf16.msra.mxu0 0
  %1716 = vmatprep.subr.bf16.mxu0 0
  %1717 = vmatpush1.bf16.msra.mxu0 0
  %1718 = vmatprep.subr.bf16.mxu0 0
  %1719 = vmatpush1.bf16.msra.mxu0 0
  %1720 = vmatprep.subr.bf16.mxu0 0
  %1721 = vmatpush1.bf16.msra.mxu0 0
  %1722 = vmatprep.mubr.bf16.mxu0 0
  %1723 = vmatmul.mubr.bf16.gmra.mrb[0].mxu0 %v1688
  %v1724 = vpop.f32.mrb[0].mxu0
  %v1725 = vadd.f32 0.0, %v1724
  %v1726 = vpop.f32.mrb[0].mxu0
  %v1727 = vadd.f32 0.0, %v1726
  %v1728 = vpop.f32.mrb[0].mxu0
  %v1729 = vpop.f32.mrb[0].mxu0
  %1730 = vdwg.mxu0
  %1731 = vmatprep.subr.bf16.mxu0 %v829
  %1732 = vmatpush1.bf16.msra.mxu0 %v828
  %1733 = vmatprep.subr.bf16.mxu0 %v833
  %1734 = vmatpush1.bf16.msra.mxu0 %v832
  %1735 = vmatprep.subr.bf16.mxu0 %v837
  %1736 = vmatpush1.bf16.msra.mxu0 %v836
  %1737 = vmatprep.subr.bf16.mxu0 %v841
  %1738 = vmatpush1.bf16.msra.mxu0 %v840
  %1739 = vmatprep.subr.bf16.mxu0 %v845
  %1740 = vmatpush1.bf16.msra.mxu0 %v844
  %1741 = vmatprep.subr.bf16.mxu0 %v849
  %1742 = vmatpush1.bf16.msra.mxu0 %v848
  %1743 = vmatprep.subr.bf16.mxu0 %v853
  %1744 = vmatpush1.bf16.msra.mxu0 %v852
  %1745 = vmatprep.subr.bf16.mxu0 %v857
  %1746 = vmatpush1.bf16.msra.mxu0 %v856
  %1747 = vmatprep.subr.bf16.mxu0 0
  %1748 = vmatpush1.bf16.msra.mxu0 0
  %1749 = vmatprep.subr.bf16.mxu0 0
  %1750 = vmatpush1.bf16.msra.mxu0 0
  %1751 = vmatprep.subr.bf16.mxu0 0
  %1752 = vmatpush1.bf16.msra.mxu0 0
  %1753 = vmatprep.subr.bf16.mxu0 0
  %1754 = vmatpush1.bf16.msra.mxu0 0
  %1755 = vmatprep.subr.bf16.mxu0 0
  %1756 = vmatpush1.bf16.msra.mxu0 0
  %1757 = vmatprep.subr.bf16.mxu0 0
  %1758 = vmatpush1.bf16.msra.mxu0 0
  %1759 = vmatprep.subr.bf16.mxu0 0
  %1760 = vmatpush1.bf16.msra.mxu0 0
  %1761 = vmatprep.subr.bf16.mxu0 0
  %1762 = vmatpush1.bf16.msra.mxu0 0
  %1763 = vmatprep.mubr.bf16.mxu0 0
  %1764 = vmatmul.mubr.bf16.gmra.mrb[0].mxu0 %v1688
  %v1765 = vpop.f32.mrb[0].mxu0
  %v1766 = vadd.f32 0.0, %v1765
  %v1767 = vpop.f32.mrb[0].mxu0
  %v1768 = vadd.f32 0.0, %v1767
  %v1769 = vpop.f32.mrb[0].mxu0
  %v1770 = vpop.f32.mrb[0].mxu0
  %1771 = vdwg.mxu0
  %v1776 = vcombine.low %v1725, %v1727
  %v1777 = vcombine.low %v1766, %v1768
  %v1779 = vunpack.c.l.s4 1966171168
  %v1780 = vunpack.c.0.s8 %v1779
  %v1781 = vlaneseq
  %v1782 = vshrl.u32 %v1781, 7
  %v1783 = vsub.s32 %v1780, %v1782
  %v1784 = vrot.slane %v1776, %v1783
  %v1786 = vunpack.c.l.s4 1966171168
  %v1787 = vunpack.c.0.s8 %v1786
  %v1788 = vlaneseq
  %v1789 = vshrl.u32 %v1788, 7
  %v1790 = vsub.s32 %v1787, %v1789
  %v1791 = vrot.slane %v1777, %v1790
  %v1792 = vcombine.low %v1784, %v1791
  %v1793 = vcombine.high %v1784, %v1791
  %v1795 = vunpack.c.l.s4 1966171168
  %v1796 = vunpack.c.0.s8 %v1795
  %v1797 = vlaneseq
  %v1798 = vshrl.u32 %v1797, 7
  %v1799 = vsub.s32 %v1796, %v1798
  %v1800 = vrot.slane %v1792, %v1799
  %v1802 = vunpack.c.l.s4 1966171168
  %v1803 = vunpack.c.0.s8 %v1802
  %v1804 = vlaneseq
  %v1805 = vshrl.u32 %v1804, 7
  %v1806 = vsub.s32 %v1803, %v1805
  %v1807 = vrot.slane %v1793, %v1806
  %v1810 = vadd.f32 %v1677, %v1800
  %v1811 = vadd.f32 %v1679, %v1807
  %v1812 = vxor.u32 %v1674, 2147483648
  %v1813 = vxor.u32 %v1675, 2147483648
  %v1814 = vmul.f32 %v1812, 1.442695
  %v1815 = vpow.pop %v1814
  %v1816 = vmul.f32 %v1813, 1.442695
  %v1817 = vpow.pop %v1816
  %v1818 = vadd.f32 %v1815, 1.0
  %v1819 = vadd.f32 %v1817, 1.0
  %v1820 = vrcp.pop %v1818
  %v1821 = vmul.f32 1.0, %v1820
  %v1822 = vrcp.pop %v1819
  %v1823 = vmul.f32 1.0, %v1822
  %v1826 = vrot.slane %v1674, 1
  %v1827 = vrot.slane %v1675, 1
  %v1830 = vxor.u32 %v1826, 2147483648
  %v1831 = vxor.u32 %v1827, 2147483648
  %v1832 = vmul.f32 %v1830, 1.442695
  %v1833 = vpow.pop %v1832
  %v1834 = vmul.f32 %v1831, 1.442695
  %v1835 = vpow.pop %v1834
  %v1836 = vadd.f32 %v1833, 1.0
  %v1837 = vadd.f32 %v1835, 1.0
  %v1838 = vrcp.pop %v1836
  %v1839 = vmul.f32 1.0, %v1838
  %v1840 = vrcp.pop %v1837
  %v1841 = vmul.f32 1.0, %v1840
  %v1842 = vrot.slane %v1674, 2
  %v1843 = vrot.slane %v1675, 2
  %v1846 = vtanh.pop %v1842
  %v1847 = vtanh.pop %v1843
  %v1848 = vrot.slane %v1674, 3
  %v1849 = vrot.slane %v1675, 3
  %v1852 = vxor.u32 %v1848, 2147483648
  %v1853 = vxor.u32 %v1849, 2147483648
  %v1854 = vmul.f32 %v1852, 1.442695
  %v1855 = vpow.pop %v1854
  %v1856 = vmul.f32 %v1853, 1.442695
  %v1857 = vpow.pop %v1856
  %v1858 = vadd.f32 %v1855, 1.0
  %v1859 = vadd.f32 %v1857, 1.0
  %v1860 = vrcp.pop %v1858
  %v1861 = vmul.f32 1.0, %v1860
  %v1862 = vrcp.pop %v1859
  %v1863 = vmul.f32 1.0, %v1862
  %v1864 = vmul.f32 %v1839, %v1468
  %v1865 = vmul.f32 %v1841, %v1469
  %v1866 = vmul.f32 %v1821, %v1846
  %v1867 = vmul.f32 %v1823, %v1847
  %v1868 = vadd.f32 %v1864, %v1866
  %v1869 = vadd.f32 %v1865, %v1867
  %v1870 = vtanh.pop %v1868
  %v1871 = vtanh.pop %v1869
  %v1872 = vmul.f32 %v1861, %v1870
  %v1873 = vmul.f32 %v1863, %v1871
  %v1874 = vxor.u32 %v1810, 2147483648
  %v1875 = vxor.u32 %v1811, 2147483648
  %v1876 = vmul.f32 %v1874, 1.442695
  %v1877 = vpow.pop %v1876
  %v1878 = vmul.f32 %v1875, 1.442695
  %v1879 = vpow.pop %v1878
  %v1880 = vadd.f32 %v1877, 1.0
  %v1881 = vadd.f32 %v1879, 1.0
  %v1882 = vrcp.pop %v1880
  %v1883 = vmul.f32 1.0, %v1882
  %v1884 = vrcp.pop %v1881
  %v1885 = vmul.f32 1.0, %v1884
  %v1888 = vrot.slane %v1810, 1
  %v1889 = vrot.slane %v1811, 1
  %v1892 = vxor.u32 %v1888, 2147483648
  %v1893 = vxor.u32 %v1889, 2147483648
  %v1894 = vmul.f32 %v1892, 1.442695
  %v1895 = vpow.pop %v1894
  %v1896 = vmul.f32 %v1893, 1.442695
  %v1897 = vpow.pop %v1896
  %v1898 = vadd.f32 %v1895, 1.0
  %v1899 = vadd.f32 %v1897, 1.0
  %v1900 = vrcp.pop %v1898
  %v1901 = vmul.f32 1.0, %v1900
  %v1902 = vrcp.pop %v1899
  %v1903 = vmul.f32 1.0, %v1902
  %v1904 = vrot.slane %v1810, 2
  %v1905 = vrot.slane %v1811, 2
  %v1908 = vtanh.pop %v1904
  %v1909 = vtanh.pop %v1905
  %v1910 = vrot.slane %v1810, 3
  %v1911 = vrot.slane %v1811, 3
  %v1914 = vxor.u32 %v1910, 2147483648
  %v1915 = vxor.u32 %v1911, 2147483648
  %v1916 = vmul.f32 %v1914, 1.442695
  %v1917 = vpow.pop %v1916
  %v1918 = vmul.f32 %v1915, 1.442695
  %v1919 = vpow.pop %v1918
  %v1920 = vadd.f32 %v1917, 1.0
  %v1921 = vadd.f32 %v1919, 1.0
  %v1922 = vrcp.pop %v1920
  %v1923 = vmul.f32 1.0, %v1922
  %v1924 = vrcp.pop %v1921
  %v1925 = vmul.f32 1.0, %v1924
  %v1926 = vmul.f32 %v1901, %v1530
  %v1927 = vmul.f32 %v1903, %v1531
  %v1928 = vmul.f32 %v1883, %v1908
  %v1929 = vmul.f32 %v1885, %v1909
  %v1930 = vadd.f32 %v1926, %v1928
  %v1931 = vadd.f32 %v1927, %v1929
  %v1932 = vtanh.pop %v1930
  %v1933 = vtanh.pop %v1931
  %v1934 = vmul.f32 %v1923, %v1932
  %v1935 = vmul.f32 %v1925, %v1933
  %1936 = vst [vmem:[#allocation3 + $0x2] sm:$0x1] %v1872
  %1937 = vst [vmem:[#allocation3 + $0xa] sm:$0x1] %v1873
  %1938 = vst [vmem:[#allocation4 + $0x5] sm:$0x1] %v1934
  %1939 = vst [vmem:[#allocation4 + $0xd] sm:$0x1] %v1935
  %s1940 = scalar_lea.vmem [#allocation2], 3
  %v1941 = vld [vmem:[%s1940] ss:$8 sm:$0xf]
  %s1942 = scalar_lea.vmem [#allocation2], 67
  %v1943 = vld [vmem:[%s1942] ss:$8 sm:$0xf]
  %v1944 = vpack.c.bf16 %v1872, %v1872
  %v1945 = vpack.c.bf16 %v1873, %v1873
  %v1948 = vunpack.c.l.b16 %v1944
  %v1949 = vunpack.c.l.b16 %v1945
  %v1950 = vrot.slane %v1949, 7
  %v1951 = vsel %vm430, %v1950, %v1948
  %v1952 = vpack.c.b16 %v1951, %v1951
  %1954 = vmatprep.subr.bf16.mxu0 %v531
  %1955 = vmatpush1.bf16.msra.mxu0 %v530
  %1956 = vmatprep.subr.bf16.mxu0 %v535
  %1957 = vmatpush1.bf16.msra.mxu0 %v534
  %1958 = vmatprep.subr.bf16.mxu0 %v539
  %1959 = vmatpush1.bf16.msra.mxu0 %v538
  %1960 = vmatprep.subr.bf16.mxu0 %v543
  %1961 = vmatpush1.bf16.msra.mxu0 %v542
  %1962 = vmatprep.subr.bf16.mxu0 %v547
  %1963 = vmatpush1.bf16.msra.mxu0 %v546
  %1964 = vmatprep.subr.bf16.mxu0 %v551
  %1965 = vmatpush1.bf16.msra.mxu0 %v550
  %1966 = vmatprep.subr.bf16.mxu0 %v555
  %1967 = vmatpush1.bf16.msra.mxu0 %v554
  %1968 = vmatprep.subr.bf16.mxu0 %v559
  %1969 = vmatpush1.bf16.msra.mxu0 %v558
  %1970 = vmatprep.subr.bf16.mxu0 0
  %1971 = vmatpush1.bf16.msra.mxu0 0
  %1972 = vmatprep.subr.bf16.mxu0 0
  %1973 = vmatpush1.bf16.msra.mxu0 0
  %1974 = vmatprep.subr.bf16.mxu0 0
  %1975 = vmatpush1.bf16.msra.mxu0 0
  %1976 = vmatprep.subr.bf16.mxu0 0
  %1977 = vmatpush1.bf16.msra.mxu0 0
  %1978 = vmatprep.subr.bf16.mxu0 0
  %1979 = vmatpush1.bf16.msra.mxu0 0
  %1980 = vmatprep.subr.bf16.mxu0 0
  %1981 = vmatpush1.bf16.msra.mxu0 0
  %1982 = vmatprep.subr.bf16.mxu0 0
  %1983 = vmatpush1.bf16.msra.mxu0 0
  %1984 = vmatprep.subr.bf16.mxu0 0
  %1985 = vmatpush1.bf16.msra.mxu0 0
  %1986 = vmatprep.mubr.bf16.mxu0 0
  %1987 = vmatmul.mubr.bf16.gmra.mrb[0].mxu0 %v1952
  %v1988 = vpop.f32.mrb[0].mxu0
  %v1989 = vadd.f32 0.0, %v1988
  %v1990 = vpop.f32.mrb[0].mxu0
  %v1991 = vadd.f32 0.0, %v1990
  %v1992 = vpop.f32.mrb[0].mxu0
  %v1993 = vpop.f32.mrb[0].mxu0
  %1994 = vdwg.mxu0
  %1995 = vmatprep.subr.bf16.mxu0 %v533
  %1996 = vmatpush1.bf16.msra.mxu0 %v532
  %1997 = vmatprep.subr.bf16.mxu0 %v537
  %1998 = vmatpush1.bf16.msra.mxu0 %v536
  %1999 = vmatprep.subr.bf16.mxu0 %v541
  %2000 = vmatpush1.bf16.msra.mxu0 %v540
  %2001 = vmatprep.subr.bf16.mxu0 %v545
  %2002 = vmatpush1.bf16.msra.mxu0 %v544
  %2003 = vmatprep.subr.bf16.mxu0 %v549
  %2004 = vmatpush1.bf16.msra.mxu0 %v548
  %2005 = vmatprep.subr.bf16.mxu0 %v553
  %2006 = vmatpush1.bf16.msra.mxu0 %v552
  %2007 = vmatprep.subr.bf16.mxu0 %v557
  %2008 = vmatpush1.bf16.msra.mxu0 %v556
  %2009 = vmatprep.subr.bf16.mxu0 %v561
  %2010 = vmatpush1.bf16.msra.mxu0 %v560
  %2011 = vmatprep.subr.bf16.mxu0 0
  %2012 = vmatpush1.bf16.msra.mxu0 0
  %2013 = vmatprep.subr.bf16.mxu0 0
  %2014 = vmatpush1.bf16.msra.mxu0 0
  %2015 = vmatprep.subr.bf16.mxu0 0
  %2016 = vmatpush1.bf16.msra.mxu0 0
  %2017 = vmatprep.subr.bf16.mxu0 0
  %2018 = vmatpush1.bf16.msra.mxu0 0
  %2019 = vmatprep.subr.bf16.mxu0 0
  %2020 = vmatpush1.bf16.msra.mxu0 0
  %2021 = vmatprep.subr.bf16.mxu0 0
  %2022 = vmatpush1.bf16.msra.mxu0 0
  %2023 = vmatprep.subr.bf16.mxu0 0
  %2024 = vmatpush1.bf16.msra.mxu0 0
  %2025 = vmatprep.subr.bf16.mxu0 0
  %2026 = vmatpush1.bf16.msra.mxu0 0
  %2027 = vmatprep.mubr.bf16.mxu0 0
  %2028 = vmatmul.mubr.bf16.gmra.mrb[0].mxu0 %v1952
  %v2029 = vpop.f32.mrb[0].mxu0
  %v2030 = vadd.f32 0.0, %v2029
  %v2031 = vpop.f32.mrb[0].mxu0
  %v2032 = vadd.f32 0.0, %v2031
  %v2033 = vpop.f32.mrb[0].mxu0
  %v2034 = vpop.f32.mrb[0].mxu0
  %2035 = vdwg.mxu0
  %v2040 = vcombine.low %v1989, %v1991
  %v2041 = vcombine.low %v2030, %v2032
  %v2043 = vunpack.c.l.s4 1966171168
  %v2044 = vunpack.c.0.s8 %v2043
  %v2045 = vlaneseq
  %v2046 = vshrl.u32 %v2045, 7
  %v2047 = vsub.s32 %v2044, %v2046
  %v2048 = vrot.slane %v2040, %v2047
  %v2050 = vunpack.c.l.s4 1966171168
  %v2051 = vunpack.c.0.s8 %v2050
  %v2052 = vlaneseq
  %v2053 = vshrl.u32 %v2052, 7
  %v2054 = vsub.s32 %v2051, %v2053
  %v2055 = vrot.slane %v2041, %v2054
  %v2056 = vcombine.low %v2048, %v2055
  %v2057 = vcombine.high %v2048, %v2055
  %v2059 = vunpack.c.l.s4 1966171168
  %v2060 = vunpack.c.0.s8 %v2059
  %v2061 = vlaneseq
  %v2062 = vshrl.u32 %v2061, 7
  %v2063 = vsub.s32 %v2060, %v2062
  %v2064 = vrot.slane %v2056, %v2063
  %v2066 = vunpack.c.l.s4 1966171168
  %v2067 = vunpack.c.0.s8 %v2066
  %v2068 = vlaneseq
  %v2069 = vshrl.u32 %v2068, 7
  %v2070 = vsub.s32 %v2067, %v2069
  %v2071 = vrot.slane %v2057, %v2070
  %v2074 = vadd.f32 %v1941, %v2064
  %v2075 = vadd.f32 %v1943, %v2071
  %s2076 = scalar_lea.vmem [#allocation2], 36
  %v2077 = vld [vmem:[%s2076] ss:$8 sm:$0xf]
  %s2078 = scalar_lea.vmem [#allocation2], 100
  %v2079 = vld [vmem:[%s2078] ss:$8 sm:$0xf]
  %v2080 = vpack.c.bf16 %v1934, %v1934
  %v2081 = vpack.c.bf16 %v1935, %v1935
  %v2084 = vunpack.c.l.b16 %v2080
  %v2085 = vunpack.c.l.b16 %v2081
  %v2086 = vrot.slane %v2085, 7
  %v2087 = vsel %vm430, %v2086, %v2084
  %v2088 = vpack.c.b16 %v2087, %v2087
  %2090 = vmatprep.subr.bf16.mxu0 %v827
  %2091 = vmatpush1.bf16.msra.mxu0 %v826
  %2092 = vmatprep.subr.bf16.mxu0 %v831
  %2093 = vmatpush1.bf16.msra.mxu0 %v830
  %2094 = vmatprep.subr.bf16.mxu0 %v835
  %2095 = vmatpush1.bf16.msra.mxu0 %v834
  %2096 = vmatprep.subr.bf16.mxu0 %v839
  %2097 = vmatpush1.bf16.msra.mxu0 %v838
  %2098 = vmatprep.subr.bf16.mxu0 %v843
  %2099 = vmatpush1.bf16.msra.mxu0 %v842
  %2100 = vmatprep.subr.bf16.mxu0 %v847
  %2101 = vmatpush1.bf16.msra.mxu0 %v846
  %2102 = vmatprep.subr.bf16.mxu0 %v851
  %2103 = vmatpush1.bf16.msra.mxu0 %v850
  %2104 = vmatprep.subr.bf16.mxu0 %v855
  %2105 = vmatpush1.bf16.msra.mxu0 %v854
  %2106 = vmatprep.subr.bf16.mxu0 0
  %2107 = vmatpush1.bf16.msra.mxu0 0
  %2108 = vmatprep.subr.bf16.mxu0 0
  %2109 = vmatpush1.bf16.msra.mxu0 0
  %2110 = vmatprep.subr.bf16.mxu0 0
  %2111 = vmatpush1.bf16.msra.mxu0 0
  %2112 = vmatprep.subr.bf16.mxu0 0
  %2113 = vmatpush1.bf16.msra.mxu0 0
  %2114 = vmatprep.subr.bf16.mxu0 0
  %2115 = vmatpush1.bf16.msra.mxu0 0
  %2116 = vmatprep.subr.bf16.mxu0 0
  %2117 = vmatpush1.bf16.msra.mxu0 0
  %2118 = vmatprep.subr.bf16.mxu0 0
  %2119 = vmatpush1.bf16.msra.mxu0 0
  %2120 = vmatprep.subr.bf16.mxu0 0
  %2121 = vmatpush1.bf16.msra.mxu0 0
  %2122 = vmatprep.mubr.bf16.mxu0 0
  %2123 = vmatmul.mubr.bf16.gmra.mrb[0].mxu0 %v2088
  %v2124 = vpop.f32.mrb[0].mxu0
  %v2125 = vadd.f32 0.0, %v2124
  %v2126 = vpop.f32.mrb[0].mxu0
  %v2127 = vadd.f32 0.0, %v2126
  %v2128 = vpop.f32.mrb[0].mxu0
  %v2129 = vpop.f32.mrb[0].mxu0
  %2130 = vdwg.mxu0
  %2131 = vmatprep.subr.bf16.mxu0 %v829
  %2132 = vmatpush1.bf16.msra.mxu0 %v828
  %2133 = vmatprep.subr.bf16.mxu0 %v833
  %2134 = vmatpush1.bf16.msra.mxu0 %v832
  %2135 = vmatprep.subr.bf16.mxu0 %v837
  %2136 = vmatpush1.bf16.msra.mxu0 %v836
  %2137 = vmatprep.subr.bf16.mxu0 %v841
  %2138 = vmatpush1.bf16.msra.mxu0 %v840
  %2139 = vmatprep.subr.bf16.mxu0 %v845
  %2140 = vmatpush1.bf16.msra.mxu0 %v844
  %2141 = vmatprep.subr.bf16.mxu0 %v849
  %2142 = vmatpush1.bf16.msra.mxu0 %v848
  %2143 = vmatprep.subr.bf16.mxu0 %v853
  %2144 = vmatpush1.bf16.msra.mxu0 %v852
  %2145 = vmatprep.subr.bf16.mxu0 %v857
  %2146 = vmatpush1.bf16.msra.mxu0 %v856
  %2147 = vmatprep.subr.bf16.mxu0 0
  %2148 = vmatpush1.bf16.msra.mxu0 0
  %2149 = vmatprep.subr.bf16.mxu0 0
  %2150 = vmatpush1.bf16.msra.mxu0 0
  %2151 = vmatprep.subr.bf16.mxu0 0
  %2152 = vmatpush1.bf16.msra.mxu0 0
  %2153 = vmatprep.subr.bf16.mxu0 0
  %2154 = vmatpush1.bf16.msra.mxu0 0
  %2155 = vmatprep.subr.bf16.mxu0 0
  %2156 = vmatpush1.bf16.msra.mxu0 0
  %2157 = vmatprep.subr.bf16.mxu0 0
  %2158 = vmatpush1.bf16.msra.mxu0 0
  %2159 = vmatprep.subr.bf16.mxu0 0
  %2160 = vmatpush1.bf16.msra.mxu0 0
  %2161 = vmatprep.subr.bf16.mxu0 0
  %2162 = vmatpush1.bf16.msra.mxu0 0
  %2163 = vmatprep.mubr.bf16.mxu0 0
  %2164 = vmatmul.mubr.bf16.gmra.mrb[0].mxu0 %v2088
  %v2165 = vpop.f32.mrb[0].mxu0
  %v2166 = vadd.f32 0.0, %v2165
  %v2167 = vpop.f32.mrb[0].mxu0
  %v2168 = vadd.f32 0.0, %v2167
  %v2169 = vpop.f32.mrb[0].mxu0
  %v2170 = vpop.f32.mrb[0].mxu0
  %2171 = vdwg.mxu0
  %v2176 = vcombine.low %v2125, %v2127
  %v2177 = vcombine.low %v2166, %v2168
  %v2179 = vunpack.c.l.s4 1966171168
  %v2180 = vunpack.c.0.s8 %v2179
  %v2181 = vlaneseq
  %v2182 = vshrl.u32 %v2181, 7
  %v2183 = vsub.s32 %v2180, %v2182
  %v2184 = vrot.slane %v2176, %v2183
  %v2186 = vunpack.c.l.s4 1966171168
  %v2187 = vunpack.c.0.s8 %v2186
  %v2188 = vlaneseq
  %v2189 = vshrl.u32 %v2188, 7
  %v2190 = vsub.s32 %v2187, %v2189
  %v2191 = vrot.slane %v2177, %v2190
  %v2192 = vcombine.low %v2184, %v2191
  %v2193 = vcombine.high %v2184, %v2191
  %v2195 = vunpack.c.l.s4 1966171168
  %v2196 = vunpack.c.0.s8 %v2195
  %v2197 = vlaneseq
  %v2198 = vshrl.u32 %v2197, 7
  %v2199 = vsub.s32 %v2196, %v2198
  %v2200 = vrot.slane %v2192, %v2199
  %v2202 = vunpack.c.l.s4 1966171168
  %v2203 = vunpack.c.0.s8 %v2202
  %v2204 = vlaneseq
  %v2205 = vshrl.u32 %v2204, 7
  %v2206 = vsub.s32 %v2203, %v2205
  %v2207 = vrot.slane %v2193, %v2206
  %v2210 = vadd.f32 %v2077, %v2200
  %v2211 = vadd.f32 %v2079, %v2207
  %v2212 = vxor.u32 %v2074, 2147483648
  %v2213 = vxor.u32 %v2075, 2147483648
  %v2214 = vmul.f32 %v2212, 1.442695
  %v2215 = vpow.pop %v2214
  %v2216 = vmul.f32 %v2213, 1.442695
  %v2217 = vpow.pop %v2216
  %v2218 = vadd.f32 %v2215, 1.0
  %v2219 = vadd.f32 %v2217, 1.0
  %v2220 = vrcp.pop %v2218
  %v2221 = vmul.f32 1.0, %v2220
  %v2222 = vrcp.pop %v2219
  %v2223 = vmul.f32 1.0, %v2222
  %v2226 = vrot.slane %v2074, 1
  %v2227 = vrot.slane %v2075, 1
  %v2230 = vxor.u32 %v2226, 2147483648
  %v2231 = vxor.u32 %v2227, 2147483648
  %v2232 = vmul.f32 %v2230, 1.442695
  %v2233 = vpow.pop %v2232
  %v2234 = vmul.f32 %v2231, 1.442695
  %v2235 = vpow.pop %v2234
  %v2236 = vadd.f32 %v2233, 1.0
  %v2237 = vadd.f32 %v2235, 1.0
  %v2238 = vrcp.pop %v2236
  %v2239 = vmul.f32 1.0, %v2238
  %v2240 = vrcp.pop %v2237
  %v2241 = vmul.f32 1.0, %v2240
  %v2242 = vrot.slane %v2074, 2
  %v2243 = vrot.slane %v2075, 2
  %v2246 = vtanh.pop %v2242
  %v2247 = vtanh.pop %v2243
  %v2248 = vrot.slane %v2074, 3
  %v2249 = vrot.slane %v2075, 3
  %v2252 = vxor.u32 %v2248, 2147483648
  %v2253 = vxor.u32 %v2249, 2147483648
  %v2254 = vmul.f32 %v2252, 1.442695
  %v2255 = vpow.pop %v2254
  %v2256 = vmul.f32 %v2253, 1.442695
  %v2257 = vpow.pop %v2256
  %v2258 = vadd.f32 %v2255, 1.0
  %v2259 = vadd.f32 %v2257, 1.0
  %v2260 = vrcp.pop %v2258
  %v2261 = vmul.f32 1.0, %v2260
  %v2262 = vrcp.pop %v2259
  %v2263 = vmul.f32 1.0, %v2262
  %v2264 = vmul.f32 %v2239, %v1868
  %v2265 = vmul.f32 %v2241, %v1869
  %v2266 = vmul.f32 %v2221, %v2246
  %v2267 = vmul.f32 %v2223, %v2247
  %v2268 = vadd.f32 %v2264, %v2266
  %v2269 = vadd.f32 %v2265, %v2267
  %v2270 = vtanh.pop %v2268
  %v2271 = vtanh.pop %v2269
  %v2272 = vmul.f32 %v2261, %v2270
  %v2273 = vmul.f32 %v2263, %v2271
  %v2274 = vxor.u32 %v2210, 2147483648
  %v2275 = vxor.u32 %v2211, 2147483648
  %v2276 = vmul.f32 %v2274, 1.442695
  %v2277 = vpow.pop %v2276
  %v2278 = vmul.f32 %v2275, 1.442695
  %v2279 = vpow.pop %v2278
  %v2280 = vadd.f32 %v2277, 1.0
  %v2281 = vadd.f32 %v2279, 1.0
  %v2282 = vrcp.pop %v2280
  %v2283 = vmul.f32 1.0, %v2282
  %v2284 = vrcp.pop %v2281
  %v2285 = vmul.f32 1.0, %v2284
  %v2288 = vrot.slane %v2210, 1
  %v2289 = vrot.slane %v2211, 1
  %v2292 = vxor.u32 %v2288, 2147483648
  %v2293 = vxor.u32 %v2289, 2147483648
  %v2294 = vmul.f32 %v2292, 1.442695
  %v2295 = vpow.pop %v2294
  %v2296 = vmul.f32 %v2293, 1.442695
  %v2297 = vpow.pop %v2296
  %v2298 = vadd.f32 %v2295, 1.0
  %v2299 = vadd.f32 %v2297, 1.0
  %v2300 = vrcp.pop %v2298
  %v2301 = vmul.f32 1.0, %v2300
  %v2302 = vrcp.pop %v2299
  %v2303 = vmul.f32 1.0, %v2302
  %v2304 = vrot.slane %v2210, 2
  %v2305 = vrot.slane %v2211, 2
  %v2308 = vtanh.pop %v2304
  %v2309 = vtanh.pop %v2305
  %v2310 = vrot.slane %v2210, 3
  %v2311 = vrot.slane %v2211, 3
  %v2314 = vxor.u32 %v2310, 2147483648
  %v2315 = vxor.u32 %v2311, 2147483648
  %v2316 = vmul.f32 %v2314, 1.442695
  %v2317 = vpow.pop %v2316
  %v2318 = vmul.f32 %v2315, 1.442695
  %v2319 = vpow.pop %v2318
  %v2320 = vadd.f32 %v2317, 1.0
  %v2321 = vadd.f32 %v2319, 1.0
  %v2322 = vrcp.pop %v2320
  %v2323 = vmul.f32 1.0, %v2322
  %v2324 = vrcp.pop %v2321
  %v2325 = vmul.f32 1.0, %v2324
  %v2326 = vmul.f32 %v2301, %v1930
  %v2327 = vmul.f32 %v2303, %v1931
  %v2328 = vmul.f32 %v2283, %v2308
  %v2329 = vmul.f32 %v2285, %v2309
  %v2330 = vadd.f32 %v2326, %v2328
  %v2331 = vadd.f32 %v2327, %v2329
  %v2332 = vtanh.pop %v2330
  %v2333 = vtanh.pop %v2331
  %v2334 = vmul.f32 %v2323, %v2332
  %v2335 = vmul.f32 %v2325, %v2333
  %2336 = vst [vmem:[#allocation3 + $0x3] sm:$0x1] %v2272
  %2337 = vst [vmem:[#allocation3 + $0xb] sm:$0x1] %v2273
  %2338 = vst [vmem:[#allocation4 + $0x4] sm:$0x1] %v2334
  %2339 = vst [vmem:[#allocation4 + $0xc] sm:$0x1] %v2335
  %s2340 = scalar_lea.vmem [#allocation2], 4
  %v2341 = vld [vmem:[%s2340] ss:$8 sm:$0xf]
  %s2342 = scalar_lea.vmem [#allocation2], 68
  %v2343 = vld [vmem:[%s2342] ss:$8 sm:$0xf]
  %v2344 = vpack.c.bf16 %v2272, %v2272
  %v2345 = vpack.c.bf16 %v2273, %v2273
  %v2348 = vunpack.c.l.b16 %v2344
  %v2349 = vunpack.c.l.b16 %v2345
  %v2350 = vrot.slane %v2349, 7
  %v2351 = vsel %vm430, %v2350, %v2348
  %v2352 = vpack.c.b16 %v2351, %v2351
  %2354 = vmatprep.subr.bf16.mxu0 %v531
  %2355 = vmatpush1.bf16.msra.mxu0 %v530
  %2356 = vmatprep.subr.bf16.mxu0 %v535
  %2357 = vmatpush1.bf16.msra.mxu0 %v534
  %2358 = vmatprep.subr.bf16.mxu0 %v539
  %2359 = vmatpush1.bf16.msra.mxu0 %v538
  %2360 = vmatprep.subr.bf16.mxu0 %v543
  %2361 = vmatpush1.bf16.msra.mxu0 %v542
  %2362 = vmatprep.subr.bf16.mxu0 %v547
  %2363 = vmatpush1.bf16.msra.mxu0 %v546
  %2364 = vmatprep.subr.bf16.mxu0 %v551
  %2365 = vmatpush1.bf16.msra.mxu0 %v550
  %2366 = vmatprep.subr.bf16.mxu0 %v555
  %2367 = vmatpush1.bf16.msra.mxu0 %v554
  %2368 = vmatprep.subr.bf16.mxu0 %v559
  %2369 = vmatpush1.bf16.msra.mxu0 %v558
  %2370 = vmatprep.subr.bf16.mxu0 0
  %2371 = vmatpush1.bf16.msra.mxu0 0
  %2372 = vmatprep.subr.bf16.mxu0 0
  %2373 = vmatpush1.bf16.msra.mxu0 0
  %2374 = vmatprep.subr.bf16.mxu0 0
  %2375 = vmatpush1.bf16.msra.mxu0 0
  %2376 = vmatprep.subr.bf16.mxu0 0
  %2377 = vmatpush1.bf16.msra.mxu0 0
  %2378 = vmatprep.subr.bf16.mxu0 0
  %2379 = vmatpush1.bf16.msra.mxu0 0
  %2380 = vmatprep.subr.bf16.mxu0 0
  %2381 = vmatpush1.bf16.msra.mxu0 0
  %2382 = vmatprep.subr.bf16.mxu0 0
  %2383 = vmatpush1.bf16.msra.mxu0 0
  %2384 = vmatprep.subr.bf16.mxu0 0
  %2385 = vmatpush1.bf16.msra.mxu0 0
  %2386 = vmatprep.mubr.bf16.mxu0 0
  %2387 = vmatmul.mubr.bf16.gmra.mrb[0].mxu0 %v2352
  %v2388 = vpop.f32.mrb[0].mxu0
  %v2389 = vadd.f32 0.0, %v2388
  %v2390 = vpop.f32.mrb[0].mxu0
  %v2391 = vadd.f32 0.0, %v2390
  %v2392 = vpop.f32.mrb[0].mxu0
  %v2393 = vpop.f32.mrb[0].mxu0
  %2394 = vdwg.mxu0
  %2395 = vmatprep.subr.bf16.mxu0 %v533
  %2396 = vmatpush1.bf16.msra.mxu0 %v532
  %2397 = vmatprep.subr.bf16.mxu0 %v537
  %2398 = vmatpush1.bf16.msra.mxu0 %v536
  %2399 = vmatprep.subr.bf16.mxu0 %v541
  %2400 = vmatpush1.bf16.msra.mxu0 %v540
  %2401 = vmatprep.subr.bf16.mxu0 %v545
  %2402 = vmatpush1.bf16.msra.mxu0 %v544
  %2403 = vmatprep.subr.bf16.mxu0 %v549
  %2404 = vmatpush1.bf16.msra.mxu0 %v548
  %2405 = vmatprep.subr.bf16.mxu0 %v553
  %2406 = vmatpush1.bf16.msra.mxu0 %v552
  %2407 = vmatprep.subr.bf16.mxu0 %v557
  %2408 = vmatpush1.bf16.msra.mxu0 %v556
  %2409 = vmatprep.subr.bf16.mxu0 %v561
  %2410 = vmatpush1.bf16.msra.mxu0 %v560
  %2411 = vmatprep.subr.bf16.mxu0 0
  %2412 = vmatpush1.bf16.msra.mxu0 0
  %2413 = vmatprep.subr.bf16.mxu0 0
  %2414 = vmatpush1.bf16.msra.mxu0 0
  %2415 = vmatprep.subr.bf16.mxu0 0
  %2416 = vmatpush1.bf16.msra.mxu0 0
  %2417 = vmatprep.subr.bf16.mxu0 0
  %2418 = vmatpush1.bf16.msra.mxu0 0
  %2419 = vmatprep.subr.bf16.mxu0 0
  %2420 = vmatpush1.bf16.msra.mxu0 0
  %2421 = vmatprep.subr.bf16.mxu0 0
  %2422 = vmatpush1.bf16.msra.mxu0 0
  %2423 = vmatprep.subr.bf16.mxu0 0
  %2424 = vmatpush1.bf16.msra.mxu0 0
  %2425 = vmatprep.subr.bf16.mxu0 0
  %2426 = vmatpush1.bf16.msra.mxu0 0
  %2427 = vmatprep.mubr.bf16.mxu0 0
  %2428 = vmatmul.mubr.bf16.gmra.mrb[0].mxu0 %v2352
  %v2429 = vpop.f32.mrb[0].mxu0
  %v2430 = vadd.f32 0.0, %v2429
  %v2431 = vpop.f32.mrb[0].mxu0
  %v2432 = vadd.f32 0.0, %v2431
  %v2433 = vpop.f32.mrb[0].mxu0
  %v2434 = vpop.f32.mrb[0].mxu0
  %2435 = vdwg.mxu0
  %v2440 = vcombine.low %v2389, %v2391
  %v2441 = vcombine.low %v2430, %v2432
  %v2443 = vunpack.c.l.s4 1966171168
  %v2444 = vunpack.c.0.s8 %v2443
  %v2445 = vlaneseq
  %v2446 = vshrl.u32 %v2445, 7
  %v2447 = vsub.s32 %v2444, %v2446
  %v2448 = vrot.slane %v2440, %v2447
  %v2450 = vunpack.c.l.s4 1966171168
  %v2451 = vunpack.c.0.s8 %v2450
  %v2452 = vlaneseq
  %v2453 = vshrl.u32 %v2452, 7
  %v2454 = vsub.s32 %v2451, %v2453
  %v2455 = vrot.slane %v2441, %v2454
  %v2456 = vcombine.low %v2448, %v2455
  %v2457 = vcombine.high %v2448, %v2455
  %v2459 = vunpack.c.l.s4 1966171168
  %v2460 = vunpack.c.0.s8 %v2459
  %v2461 = vlaneseq
  %v2462 = vshrl.u32 %v2461, 7
  %v2463 = vsub.s32 %v2460, %v2462
  %v2464 = vrot.slane %v2456, %v2463
  %v2466 = vunpack.c.l.s4 1966171168
  %v2467 = vunpack.c.0.s8 %v2466
  %v2468 = vlaneseq
  %v2469 = vshrl.u32 %v2468, 7
  %v2470 = vsub.s32 %v2467, %v2469
  %v2471 = vrot.slane %v2457, %v2470
  %v2474 = vadd.f32 %v2341, %v2464
  %v2475 = vadd.f32 %v2343, %v2471
  %s2476 = scalar_lea.vmem [#allocation2], 35
  %v2477 = vld [vmem:[%s2476] ss:$8 sm:$0xf]
  %s2478 = scalar_lea.vmem [#allocation2], 99
  %v2479 = vld [vmem:[%s2478] ss:$8 sm:$0xf]
  %v2480 = vpack.c.bf16 %v2334, %v2334
  %v2481 = vpack.c.bf16 %v2335, %v2335
  %v2484 = vunpack.c.l.b16 %v2480
  %v2485 = vunpack.c.l.b16 %v2481
  %v2486 = vrot.slane %v2485, 7
  %v2487 = vsel %vm430, %v2486, %v2484
  %v2488 = vpack.c.b16 %v2487, %v2487
  %2490 = vmatprep.subr.bf16.mxu0 %v827
  %2491 = vmatpush1.bf16.msra.mxu0 %v826
  %2492 = vmatprep.subr.bf16.mxu0 %v831
  %2493 = vmatpush1.bf16.msra.mxu0 %v830
  %2494 = vmatprep.subr.bf16.mxu0 %v835
  %2495 = vmatpush1.bf16.msra.mxu0 %v834
  %2496 = vmatprep.subr.bf16.mxu0 %v839
  %2497 = vmatpush1.bf16.msra.mxu0 %v838
  %2498 = vmatprep.subr.bf16.mxu0 %v843
  %2499 = vmatpush1.bf16.msra.mxu0 %v842
  %2500 = vmatprep.subr.bf16.mxu0 %v847
  %2501 = vmatpush1.bf16.msra.mxu0 %v846
  %2502 = vmatprep.subr.bf16.mxu0 %v851
  %2503 = vmatpush1.bf16.msra.mxu0 %v850
  %2504 = vmatprep.subr.bf16.mxu0 %v855
  %2505 = vmatpush1.bf16.msra.mxu0 %v854
  %2506 = vmatprep.subr.bf16.mxu0 0
  %2507 = vmatpush1.bf16.msra.mxu0 0
  %2508 = vmatprep.subr.bf16.mxu0 0
  %2509 = vmatpush1.bf16.msra.mxu0 0
  %2510 = vmatprep.subr.bf16.mxu0 0
  %2511 = vmatpush1.bf16.msra.mxu0 0
  %2512 = vmatprep.subr.bf16.mxu0 0
  %2513 = vmatpush1.bf16.msra.mxu0 0
  %2514 = vmatprep.subr.bf16.mxu0 0
  %2515 = vmatpush1.bf16.msra.mxu0 0
  %2516 = vmatprep.subr.bf16.mxu0 0
  %2517 = vmatpush1.bf16.msra.mxu0 0
  %2518 = vmatprep.subr.bf16.mxu0 0
  %2519 = vmatpush1.bf16.msra.mxu0 0
  %2520 = vmatprep.subr.bf16.mxu0 0
  %2521 = vmatpush1.bf16.msra.mxu0 0
  %2522 = vmatprep.mubr.bf16.mxu0 0
  %2523 = vmatmul.mubr.bf16.gmra.mrb[0].mxu0 %v2488
  %v2524 = vpop.f32.mrb[0].mxu0
  %v2525 = vadd.f32 0.0, %v2524
  %v2526 = vpop.f32.mrb[0].mxu0
  %v2527 = vadd.f32 0.0, %v2526
  %v2528 = vpop.f32.mrb[0].mxu0
  %v2529 = vpop.f32.mrb[0].mxu0
  %2530 = vdwg.mxu0
  %2531 = vmatprep.subr.bf16.mxu0 %v829
  %2532 = vmatpush1.bf16.msra.mxu0 %v828
  %2533 = vmatprep.subr.bf16.mxu0 %v833
  %2534 = vmatpush1.bf16.msra.mxu0 %v832
  %2535 = vmatprep.subr.bf16.mxu0 %v837
  %2536 = vmatpush1.bf16.msra.mxu0 %v836
  %2537 = vmatprep.subr.bf16.mxu0 %v841
  %2538 = vmatpush1.bf16.msra.mxu0 %v840
  %2539 = vmatprep.subr.bf16.mxu0 %v845
  %2540 = vmatpush1.bf16.msra.mxu0 %v844
  %2541 = vmatprep.subr.bf16.mxu0 %v849
  %2542 = vmatpush1.bf16.msra.mxu0 %v848
  %2543 = vmatprep.subr.bf16.mxu0 %v853
  %2544 = vmatpush1.bf16.msra.mxu0 %v852
  %2545 = vmatprep.subr.bf16.mxu0 %v857
  %2546 = vmatpush1.bf16.msra.mxu0 %v856
  %2547 = vmatprep.subr.bf16.mxu0 0
  %2548 = vmatpush1.bf16.msra.mxu0 0
  %2549 = vmatprep.subr.bf16.mxu0 0
  %2550 = vmatpush1.bf16.msra.mxu0 0
  %2551 = vmatprep.subr.bf16.mxu0 0
  %2552 = vmatpush1.bf16.msra.mxu0 0
  %2553 = vmatprep.subr.bf16.mxu0 0
  %2554 = vmatpush1.bf16.msra.mxu0 0
  %2555 = vmatprep.subr.bf16.mxu0 0
  %2556 = vmatpush1.bf16.msra.mxu0 0
  %2557 = vmatprep.subr.bf16.mxu0 0
  %2558 = vmatpush1.bf16.msra.mxu0 0
  %2559 = vmatprep.subr.bf16.mxu0 0
  %2560 = vmatpush1.bf16.msra.mxu0 0
  %2561 = vmatprep.subr.bf16.mxu0 0
  %2562 = vmatpush1.bf16.msra.mxu0 0
  %2563 = vmatprep.mubr.bf16.mxu0 0
  %2564 = vmatmul.mubr.bf16.gmra.mrb[0].mxu0 %v2488
  %v2565 = vpop.f32.mrb[0].mxu0
  %v2566 = vadd.f32 0.0, %v2565
  %v2567 = vpop.f32.mrb[0].mxu0
  %v2568 = vadd.f32 0.0, %v2567
  %v2569 = vpop.f32.mrb[0].mxu0
  %v2570 = vpop.f32.mrb[0].mxu0
  %2571 = vdwg.mxu0
  %v2576 = vcombine.low %v2525, %v2527
  %v2577 = vcombine.low %v2566, %v2568
  %v2579 = vunpack.c.l.s4 1966171168
  %v2580 = vunpack.c.0.s8 %v2579
  %v2581 = vlaneseq
  %v2582 = vshrl.u32 %v2581, 7
  %v2583 = vsub.s32 %v2580, %v2582
  %v2584 = vrot.slane %v2576, %v2583
  %v2586 = vunpack.c.l.s4 1966171168
  %v2587 = vunpack.c.0.s8 %v2586
  %v2588 = vlaneseq
  %v2589 = vshrl.u32 %v2588, 7
  %v2590 = vsub.s32 %v2587, %v2589
  %v2591 = vrot.slane %v2577, %v2590
  %v2592 = vcombine.low %v2584, %v2591
  %v2593 = vcombine.high %v2584, %v2591
  %v2595 = vunpack.c.l.s4 1966171168
  %v2596 = vunpack.c.0.s8 %v2595
  %v2597 = vlaneseq
  %v2598 = vshrl.u32 %v2597, 7
  %v2599 = vsub.s32 %v2596, %v2598
  %v2600 = vrot.slane %v2592, %v2599
  %v2602 = vunpack.c.l.s4 1966171168
  %v2603 = vunpack.c.0.s8 %v2602
  %v2604 = vlaneseq
  %v2605 = vshrl.u32 %v2604, 7
  %v2606 = vsub.s32 %v2603, %v2605
  %v2607 = vrot.slane %v2593, %v2606
  %v2610 = vadd.f32 %v2477, %v2600
  %v2611 = vadd.f32 %v2479, %v2607
  %v2612 = vxor.u32 %v2474, 2147483648
  %v2613 = vxor.u32 %v2475, 2147483648
  %v2614 = vmul.f32 %v2612, 1.442695
  %v2615 = vpow.pop %v2614
  %v2616 = vmul.f32 %v2613, 1.442695
  %v2617 = vpow.pop %v2616
  %v2618 = vadd.f32 %v2615, 1.0
  %v2619 = vadd.f32 %v2617, 1.0
  %v2620 = vrcp.pop %v2618
  %v2621 = vmul.f32 1.0, %v2620
  %v2622 = vrcp.pop %v2619
  %v2623 = vmul.f32 1.0, %v2622
  %v2626 = vrot.slane %v2474, 1
  %v2627 = vrot.slane %v2475, 1
  %v2630 = vxor.u32 %v2626, 2147483648
  %v2631 = vxor.u32 %v2627, 2147483648
  %v2632 = vmul.f32 %v2630, 1.442695
  %v2633 = vpow.pop %v2632
  %v2634 = vmul.f32 %v2631, 1.442695
  %v2635 = vpow.pop %v2634
  %v2636 = vadd.f32 %v2633, 1.0
  %v2637 = vadd.f32 %v2635, 1.0
  %v2638 = vrcp.pop %v2636
  %v2639 = vmul.f32 1.0, %v2638
  %v2640 = vrcp.pop %v2637
  %v2641 = vmul.f32 1.0, %v2640
  %v2642 = vrot.slane %v2474, 2
  %v2643 = vrot.slane %v2475, 2
  %v2646 = vtanh.pop %v2642
  %v2647 = vtanh.pop %v2643
  %v2648 = vrot.slane %v2474, 3
  %v2649 = vrot.slane %v2475, 3
  %v2652 = vxor.u32 %v2648, 2147483648
  %v2653 = vxor.u32 %v2649, 2147483648
  %v2654 = vmul.f32 %v2652, 1.442695
  %v2655 = vpow.pop %v2654
  %v2656 = vmul.f32 %v2653, 1.442695
  %v2657 = vpow.pop %v2656
  %v2658 = vadd.f32 %v2655, 1.0
  %v2659 = vadd.f32 %v2657, 1.0
  %v2660 = vrcp.pop %v2658
  %v2661 = vmul.f32 1.0, %v2660
  %v2662 = vrcp.pop %v2659
  %v2663 = vmul.f32 1.0, %v2662
  %v2664 = vmul.f32 %v2639, %v2268
  %v2665 = vmul.f32 %v2641, %v2269
  %v2666 = vmul.f32 %v2621, %v2646
  %v2667 = vmul.f32 %v2623, %v2647
  %v2668 = vadd.f32 %v2664, %v2666
  %v2669 = vadd.f32 %v2665, %v2667
  %v2670 = vtanh.pop %v2668
  %v2671 = vtanh.pop %v2669
  %v2672 = vmul.f32 %v2661, %v2670
  %v2673 = vmul.f32 %v2663, %v2671
  %v2674 = vxor.u32 %v2610, 2147483648
  %v2675 = vxor.u32 %v2611, 2147483648
  %v2676 = vmul.f32 %v2674, 1.442695
  %v2677 = vpow.pop %v2676
  %v2678 = vmul.f32 %v2675, 1.442695
  %v2679 = vpow.pop %v2678
  %v2680 = vadd.f32 %v2677, 1.0
  %v2681 = vadd.f32 %v2679, 1.0
  %v2682 = vrcp.pop %v2680
  %v2683 = vmul.f32 1.0, %v2682
  %v2684 = vrcp.pop %v2681
  %v2685 = vmul.f32 1.0, %v2684
  %v2688 = vrot.slane %v2610, 1
  %v2689 = vrot.slane %v2611, 1
  %v2692 = vxor.u32 %v2688, 2147483648
  %v2693 = vxor.u32 %v2689, 2147483648
  %v2694 = vmul.f32 %v2692, 1.442695
  %v2695 = vpow.pop %v2694
  %v2696 = vmul.f32 %v2693, 1.442695
  %v2697 = vpow.pop %v2696
  %v2698 = vadd.f32 %v2695, 1.0
  %v2699 = vadd.f32 %v2697, 1.0
  %v2700 = vrcp.pop %v2698
  %v2701 = vmul.f32 1.0, %v2700
  %v2702 = vrcp.pop %v2699
  %v2703 = vmul.f32 1.0, %v2702
  %v2704 = vrot.slane %v2610, 2
  %v2705 = vrot.slane %v2611, 2
  %v2708 = vtanh.pop %v2704
  %v2709 = vtanh.pop %v2705
  %v2710 = vrot.slane %v2610, 3
  %v2711 = vrot.slane %v2611, 3
  %v2714 = vxor.u32 %v2710, 2147483648
  %v2715 = vxor.u32 %v2711, 2147483648
  %v2716 = vmul.f32 %v2714, 1.442695
  %v2717 = vpow.pop %v2716
  %v2718 = vmul.f32 %v2715, 1.442695
  %v2719 = vpow.pop %v2718
  %v2720 = vadd.f32 %v2717, 1.0
  %v2721 = vadd.f32 %v2719, 1.0
  %v2722 = vrcp.pop %v2720
  %v2723 = vmul.f32 1.0, %v2722
  %v2724 = vrcp.pop %v2721
  %v2725 = vmul.f32 1.0, %v2724
  %v2726 = vmul.f32 %v2701, %v2330
  %v2727 = vmul.f32 %v2703, %v2331
  %v2728 = vmul.f32 %v2683, %v2708
  %v2729 = vmul.f32 %v2685, %v2709
  %v2730 = vadd.f32 %v2726, %v2728
  %v2731 = vadd.f32 %v2727, %v2729
  %v2732 = vtanh.pop %v2730
  %v2733 = vtanh.pop %v2731
  %v2734 = vmul.f32 %v2723, %v2732
  %v2735 = vmul.f32 %v2725, %v2733
  %2736 = vst [vmem:[#allocation3 + $0x4] sm:$0x1] %v2672
  %2737 = vst [vmem:[#allocation3 + $0xc] sm:$0x1] %v2673
  %2738 = vst [vmem:[#allocation4 + $0x3] sm:$0x1] %v2734
  %2739 = vst [vmem:[#allocation4 + $0xb] sm:$0x1] %v2735
  %s2740 = scalar_lea.vmem [#allocation2], 5
  %v2741 = vld [vmem:[%s2740] ss:$8 sm:$0xf]
  %s2742 = scalar_lea.vmem [#allocation2], 69
  %v2743 = vld [vmem:[%s2742] ss:$8 sm:$0xf]
  %v2744 = vpack.c.bf16 %v2672, %v2672
  %v2745 = vpack.c.bf16 %v2673, %v2673
  %v2748 = vunpack.c.l.b16 %v2744
  %v2749 = vunpack.c.l.b16 %v2745
  %v2750 = vrot.slane %v2749, 7
  %v2751 = vsel %vm430, %v2750, %v2748
  %v2752 = vpack.c.b16 %v2751, %v2751
  %2754 = vmatprep.subr.bf16.mxu0 %v531
  %2755 = vmatpush1.bf16.msra.mxu0 %v530
  %2756 = vmatprep.subr.bf16.mxu0 %v535
  %2757 = vmatpush1.bf16.msra.mxu0 %v534
  %2758 = vmatprep.subr.bf16.mxu0 %v539
  %2759 = vmatpush1.bf16.msra.mxu0 %v538
  %2760 = vmatprep.subr.bf16.mxu0 %v543
  %2761 = vmatpush1.bf16.msra.mxu0 %v542
  %2762 = vmatprep.subr.bf16.mxu0 %v547
  %2763 = vmatpush1.bf16.msra.mxu0 %v546
  %2764 = vmatprep.subr.bf16.mxu0 %v551
  %2765 = vmatpush1.bf16.msra.mxu0 %v550
  %2766 = vmatprep.subr.bf16.mxu0 %v555
  %2767 = vmatpush1.bf16.msra.mxu0 %v554
  %2768 = vmatprep.subr.bf16.mxu0 %v559
  %2769 = vmatpush1.bf16.msra.mxu0 %v558
  %2770 = vmatprep.subr.bf16.mxu0 0
  %2771 = vmatpush1.bf16.msra.mxu0 0
  %2772 = vmatprep.subr.bf16.mxu0 0
  %2773 = vmatpush1.bf16.msra.mxu0 0
  %2774 = vmatprep.subr.bf16.mxu0 0
  %2775 = vmatpush1.bf16.msra.mxu0 0
  %2776 = vmatprep.subr.bf16.mxu0 0
  %2777 = vmatpush1.bf16.msra.mxu0 0
  %2778 = vmatprep.subr.bf16.mxu0 0
  %2779 = vmatpush1.bf16.msra.mxu0 0
  %2780 = vmatprep.subr.bf16.mxu0 0
  %2781 = vmatpush1.bf16.msra.mxu0 0
  %2782 = vmatprep.subr.bf16.mxu0 0
  %2783 = vmatpush1.bf16.msra.mxu0 0
  %2784 = vmatprep.subr.bf16.mxu0 0
  %2785 = vmatpush1.bf16.msra.mxu0 0
  %2786 = vmatprep.mubr.bf16.mxu0 0
  %2787 = vmatmul.mubr.bf16.gmra.mrb[0].mxu0 %v2752
  %v2788 = vpop.f32.mrb[0].mxu0
  %v2789 = vadd.f32 0.0, %v2788
  %v2790 = vpop.f32.mrb[0].mxu0
  %v2791 = vadd.f32 0.0, %v2790
  %v2792 = vpop.f32.mrb[0].mxu0
  %v2793 = vpop.f32.mrb[0].mxu0
  %2794 = vdwg.mxu0
  %2795 = vmatprep.subr.bf16.mxu0 %v533
  %2796 = vmatpush1.bf16.msra.mxu0 %v532
  %2797 = vmatprep.subr.bf16.mxu0 %v537
  %2798 = vmatpush1.bf16.msra.mxu0 %v536
  %2799 = vmatprep.subr.bf16.mxu0 %v541
  %2800 = vmatpush1.bf16.msra.mxu0 %v540
  %2801 = vmatprep.subr.bf16.mxu0 %v545
  %2802 = vmatpush1.bf16.msra.mxu0 %v544
  %2803 = vmatprep.subr.bf16.mxu0 %v549
  %2804 = vmatpush1.bf16.msra.mxu0 %v548
  %2805 = vmatprep.subr.bf16.mxu0 %v553
  %2806 = vmatpush1.bf16.msra.mxu0 %v552
  %2807 = vmatprep.subr.bf16.mxu0 %v557
  %2808 = vmatpush1.bf16.msra.mxu0 %v556
  %2809 = vmatprep.subr.bf16.mxu0 %v561
  %2810 = vmatpush1.bf16.msra.mxu0 %v560
  %2811 = vmatprep.subr.bf16.mxu0 0
  %2812 = vmatpush1.bf16.msra.mxu0 0
  %2813 = vmatprep.subr.bf16.mxu0 0
  %2814 = vmatpush1.bf16.msra.mxu0 0
  %2815 = vmatprep.subr.bf16.mxu0 0
  %2816 = vmatpush1.bf16.msra.mxu0 0
  %2817 = vmatprep.subr.bf16.mxu0 0
  %2818 = vmatpush1.bf16.msra.mxu0 0
  %2819 = vmatprep.subr.bf16.mxu0 0
  %2820 = vmatpush1.bf16.msra.mxu0 0
  %2821 = vmatprep.subr.bf16.mxu0 0
  %2822 = vmatpush1.bf16.msra.mxu0 0
  %2823 = vmatprep.subr.bf16.mxu0 0
  %2824 = vmatpush1.bf16.msra.mxu0 0
  %2825 = vmatprep.subr.bf16.mxu0 0
  %2826 = vmatpush1.bf16.msra.mxu0 0
  %2827 = vmatprep.mubr.bf16.mxu0 0
  %2828 = vmatmul.mubr.bf16.gmra.mrb[0].mxu0 %v2752
  %v2829 = vpop.f32.mrb[0].mxu0
  %v2830 = vadd.f32 0.0, %v2829
  %v2831 = vpop.f32.mrb[0].mxu0
  %v2832 = vadd.f32 0.0, %v2831
  %v2833 = vpop.f32.mrb[0].mxu0
  %v2834 = vpop.f32.mrb[0].mxu0
  %2835 = vdwg.mxu0
  %v2840 = vcombine.low %v2789, %v2791
  %v2841 = vcombine.low %v2830, %v2832
  %v2843 = vunpack.c.l.s4 1966171168
  %v2844 = vunpack.c.0.s8 %v2843
  %v2845 = vlaneseq
  %v2846 = vshrl.u32 %v2845, 7
  %v2847 = vsub.s32 %v2844, %v2846
  %v2848 = vrot.slane %v2840, %v2847
  %v2850 = vunpack.c.l.s4 1966171168
  %v2851 = vunpack.c.0.s8 %v2850
  %v2852 = vlaneseq
  %v2853 = vshrl.u32 %v2852, 7
  %v2854 = vsub.s32 %v2851, %v2853
  %v2855 = vrot.slane %v2841, %v2854
  %v2856 = vcombine.low %v2848, %v2855
  %v2857 = vcombine.high %v2848, %v2855
  %v2859 = vunpack.c.l.s4 1966171168
  %v2860 = vunpack.c.0.s8 %v2859
  %v2861 = vlaneseq
  %v2862 = vshrl.u32 %v2861, 7
  %v2863 = vsub.s32 %v2860, %v2862
  %v2864 = vrot.slane %v2856, %v2863
  %v2866 = vunpack.c.l.s4 1966171168
  %v2867 = vunpack.c.0.s8 %v2866
  %v2868 = vlaneseq
  %v2869 = vshrl.u32 %v2868, 7
  %v2870 = vsub.s32 %v2867, %v2869
  %v2871 = vrot.slane %v2857, %v2870
  %v2874 = vadd.f32 %v2741, %v2864
  %v2875 = vadd.f32 %v2743, %v2871
  %s2876 = scalar_lea.vmem [#allocation2], 34
  %v2877 = vld [vmem:[%s2876] ss:$8 sm:$0xf]
  %s2878 = scalar_lea.vmem [#allocation2], 98
  %v2879 = vld [vmem:[%s2878] ss:$8 sm:$0xf]
  %v2880 = vpack.c.bf16 %v2734, %v2734
  %v2881 = vpack.c.bf16 %v2735, %v2735
  %v2884 = vunpack.c.l.b16 %v2880
  %v2885 = vunpack.c.l.b16 %v2881
  %v2886 = vrot.slane %v2885, 7
  %v2887 = vsel %vm430, %v2886, %v2884
  %v2888 = vpack.c.b16 %v2887, %v2887
  %2890 = vmatprep.subr.bf16.mxu0 %v827
  %2891 = vmatpush1.bf16.msra.mxu0 %v826
  %2892 = vmatprep.subr.bf16.mxu0 %v831
  %2893 = vmatpush1.bf16.msra.mxu0 %v830
  %2894 = vmatprep.subr.bf16.mxu0 %v835
  %2895 = vmatpush1.bf16.msra.mxu0 %v834
  %2896 = vmatprep.subr.bf16.mxu0 %v839
  %2897 = vmatpush1.bf16.msra.mxu0 %v838
  %2898 = vmatprep.subr.bf16.mxu0 %v843
  %2899 = vmatpush1.bf16.msra.mxu0 %v842
  %2900 = vmatprep.subr.bf16.mxu0 %v847
  %2901 = vmatpush1.bf16.msra.mxu0 %v846
  %2902 = vmatprep.subr.bf16.mxu0 %v851
  %2903 = vmatpush1.bf16.msra.mxu0 %v850
  %2904 = vmatprep.subr.bf16.mxu0 %v855
  %2905 = vmatpush1.bf16.msra.mxu0 %v854
  %2906 = vmatprep.subr.bf16.mxu0 0
  %2907 = vmatpush1.bf16.msra.mxu0 0
  %2908 = vmatprep.subr.bf16.mxu0 0
  %2909 = vmatpush1.bf16.msra.mxu0 0
  %2910 = vmatprep.subr.bf16.mxu0 0
  %2911 = vmatpush1.bf16.msra.mxu0 0
  %2912 = vmatprep.subr.bf16.mxu0 0
  %2913 = vmatpush1.bf16.msra.mxu0 0
  %2914 = vmatprep.subr.bf16.mxu0 0
  %2915 = vmatpush1.bf16.msra.mxu0 0
  %2916 = vmatprep.subr.bf16.mxu0 0
  %2917 = vmatpush1.bf16.msra.mxu0 0
  %2918 = vmatprep.subr.bf16.mxu0 0
  %2919 = vmatpush1.bf16.msra.mxu0 0
  %2920 = vmatprep.subr.bf16.mxu0 0
  %2921 = vmatpush1.bf16.msra.mxu0 0
  %2922 = vmatprep.mubr.bf16.mxu0 0
  %2923 = vmatmul.mubr.bf16.gmra.mrb[0].mxu0 %v2888
  %v2924 = vpop.f32.mrb[0].mxu0
  %v2925 = vadd.f32 0.0, %v2924
  %v2926 = vpop.f32.mrb[0].mxu0
  %v2927 = vadd.f32 0.0, %v2926
  %v2928 = vpop.f32.mrb[0].mxu0
  %v2929 = vpop.f32.mrb[0].mxu0
  %2930 = vdwg.mxu0
  %2931 = vmatprep.subr.bf16.mxu0 %v829
  %2932 = vmatpush1.bf16.msra.mxu0 %v828
  %2933 = vmatprep.subr.bf16.mxu0 %v833
  %2934 = vmatpush1.bf16.msra.mxu0 %v832
  %2935 = vmatprep.subr.bf16.mxu0 %v837
  %2936 = vmatpush1.bf16.msra.mxu0 %v836
  %2937 = vmatprep.subr.bf16.mxu0 %v841
  %2938 = vmatpush1.bf16.msra.mxu0 %v840
  %2939 = vmatprep.subr.bf16.mxu0 %v845
  %2940 = vmatpush1.bf16.msra.mxu0 %v844
  %2941 = vmatprep.subr.bf16.mxu0 %v849
  %2942 = vmatpush1.bf16.msra.mxu0 %v848
  %2943 = vmatprep.subr.bf16.mxu0 %v853
  %2944 = vmatpush1.bf16.msra.mxu0 %v852
  %2945 = vmatprep.subr.bf16.mxu0 %v857
  %2946 = vmatpush1.bf16.msra.mxu0 %v856
  %2947 = vmatprep.subr.bf16.mxu0 0
  %2948 = vmatpush1.bf16.msra.mxu0 0
  %2949 = vmatprep.subr.bf16.mxu0 0
  %2950 = vmatpush1.bf16.msra.mxu0 0
  %2951 = vmatprep.subr.bf16.mxu0 0
  %2952 = vmatpush1.bf16.msra.mxu0 0
  %2953 = vmatprep.subr.bf16.mxu0 0
  %2954 = vmatpush1.bf16.msra.mxu0 0
  %2955 = vmatprep.subr.bf16.mxu0 0
  %2956 = vmatpush1.bf16.msra.mxu0 0
  %2957 = vmatprep.subr.bf16.mxu0 0
  %2958 = vmatpush1.bf16.msra.mxu0 0
  %2959 = vmatprep.subr.bf16.mxu0 0
  %2960 = vmatpush1.bf16.msra.mxu0 0
  %2961 = vmatprep.subr.bf16.mxu0 0
  %2962 = vmatpush1.bf16.msra.mxu0 0
  %2963 = vmatprep.mubr.bf16.mxu0 0
  %2964 = vmatmul.mubr.bf16.gmra.mrb[0].mxu0 %v2888
  %v2965 = vpop.f32.mrb[0].mxu0
  %v2966 = vadd.f32 0.0, %v2965
  %v2967 = vpop.f32.mrb[0].mxu0
  %v2968 = vadd.f32 0.0, %v2967
  %v2969 = vpop.f32.mrb[0].mxu0
  %v2970 = vpop.f32.mrb[0].mxu0
  %2971 = vdwg.mxu0
  %v2976 = vcombine.low %v2925, %v2927
  %v2977 = vcombine.low %v2966, %v2968
  %v2979 = vunpack.c.l.s4 1966171168
  %v2980 = vunpack.c.0.s8 %v2979
  %v2981 = vlaneseq
  %v2982 = vshrl.u32 %v2981, 7
  %v2983 = vsub.s32 %v2980, %v2982
  %v2984 = vrot.slane %v2976, %v2983
  %v2986 = vunpack.c.l.s4 1966171168
  %v2987 = vunpack.c.0.s8 %v2986
  %v2988 = vlaneseq
  %v2989 = vshrl.u32 %v2988, 7
  %v2990 = vsub.s32 %v2987, %v2989
  %v2991 = vrot.slane %v2977, %v2990
  %v2992 = vcombine.low %v2984, %v2991
  %v2993 = vcombine.high %v2984, %v2991
  %v2995 = vunpack.c.l.s4 1966171168
  %v2996 = vunpack.c.0.s8 %v2995
  %v2997 = vlaneseq
  %v2998 = vshrl.u32 %v2997, 7
  %v2999 = vsub.s32 %v2996, %v2998
  %v3000 = vrot.slane %v2992, %v2999
  %v3002 = vunpack.c.l.s4 1966171168
  %v3003 = vunpack.c.0.s8 %v3002
  %v3004 = vlaneseq
  %v3005 = vshrl.u32 %v3004, 7
  %v3006 = vsub.s32 %v3003, %v3005
  %v3007 = vrot.slane %v2993, %v3006
  %v3010 = vadd.f32 %v2877, %v3000
  %v3011 = vadd.f32 %v2879, %v3007
  %v3012 = vxor.u32 %v2874, 2147483648
  %v3013 = vxor.u32 %v2875, 2147483648
  %v3014 = vmul.f32 %v3012, 1.442695
  %v3015 = vpow.pop %v3014
  %v3016 = vmul.f32 %v3013, 1.442695
  %v3017 = vpow.pop %v3016
  %v3018 = vadd.f32 %v3015, 1.0
  %v3019 = vadd.f32 %v3017, 1.0
  %v3020 = vrcp.pop %v3018
  %v3021 = vmul.f32 1.0, %v3020
  %v3022 = vrcp.pop %v3019
  %v3023 = vmul.f32 1.0, %v3022
  %v3026 = vrot.slane %v2874, 1
  %v3027 = vrot.slane %v2875, 1
  %v3030 = vxor.u32 %v3026, 2147483648
  %v3031 = vxor.u32 %v3027, 2147483648
  %v3032 = vmul.f32 %v3030, 1.442695
  %v3033 = vpow.pop %v3032
  %v3034 = vmul.f32 %v3031, 1.442695
  %v3035 = vpow.pop %v3034
  %v3036 = vadd.f32 %v3033, 1.0
  %v3037 = vadd.f32 %v3035, 1.0
  %v3038 = vrcp.pop %v3036
  %v3039 = vmul.f32 1.0, %v3038
  %v3040 = vrcp.pop %v3037
  %v3041 = vmul.f32 1.0, %v3040
  %v3042 = vrot.slane %v2874, 2
  %v3043 = vrot.slane %v2875, 2
  %v3046 = vtanh.pop %v3042
  %v3047 = vtanh.pop %v3043
  %v3048 = vrot.slane %v2874, 3
  %v3049 = vrot.slane %v2875, 3
  %v3052 = vxor.u32 %v3048, 2147483648
  %v3053 = vxor.u32 %v3049, 2147483648
  %v3054 = vmul.f32 %v3052, 1.442695
  %v3055 = vpow.pop %v3054
  %v3056 = vmul.f32 %v3053, 1.442695
  %v3057 = vpow.pop %v3056
  %v3058 = vadd.f32 %v3055, 1.0
  %v3059 = vadd.f32 %v3057, 1.0
  %v3060 = vrcp.pop %v3058
  %v3061 = vmul.f32 1.0, %v3060
  %v3062 = vrcp.pop %v3059
  %v3063 = vmul.f32 1.0, %v3062
  %v3064 = vmul.f32 %v3039, %v2668
  %v3065 = vmul.f32 %v3041, %v2669
  %v3066 = vmul.f32 %v3021, %v3046
  %v3067 = vmul.f32 %v3023, %v3047
  %v3068 = vadd.f32 %v3064, %v3066
  %v3069 = vadd.f32 %v3065, %v3067
  %v3070 = vtanh.pop %v3068
  %v3071 = vtanh.pop %v3069
  %v3072 = vmul.f32 %v3061, %v3070
  %v3073 = vmul.f32 %v3063, %v3071
  %v3074 = vxor.u32 %v3010, 2147483648
  %v3075 = vxor.u32 %v3011, 2147483648
  %v3076 = vmul.f32 %v3074, 1.442695
  %v3077 = vpow.pop %v3076
  %v3078 = vmul.f32 %v3075, 1.442695
  %v3079 = vpow.pop %v3078
  %v3080 = vadd.f32 %v3077, 1.0
  %v3081 = vadd.f32 %v3079, 1.0
  %v3082 = vrcp.pop %v3080
  %v3083 = vmul.f32 1.0, %v3082
  %v3084 = vrcp.pop %v3081
  %v3085 = vmul.f32 1.0, %v3084
  %v3088 = vrot.slane %v3010, 1
  %v3089 = vrot.slane %v3011, 1
  %v3092 = vxor.u32 %v3088, 2147483648
  %v3093 = vxor.u32 %v3089, 2147483648
  %v3094 = vmul.f32 %v3092, 1.442695
  %v3095 = vpow.pop %v3094
  %v3096 = vmul.f32 %v3093, 1.442695
  %v3097 = vpow.pop %v3096
  %v3098 = vadd.f32 %v3095, 1.0
  %v3099 = vadd.f32 %v3097, 1.0
  %v3100 = vrcp.pop %v3098
  %v3101 = vmul.f32 1.0, %v3100
  %v3102 = vrcp.pop %v3099
  %v3103 = vmul.f32 1.0, %v3102
  %v3104 = vrot.slane %v3010, 2
  %v3105 = vrot.slane %v3011, 2
  %v3108 = vtanh.pop %v3104
  %v3109 = vtanh.pop %v3105
  %v3110 = vrot.slane %v3010, 3
  %v3111 = vrot.slane %v3011, 3
  %v3114 = vxor.u32 %v3110, 2147483648
  %v3115 = vxor.u32 %v3111, 2147483648
  %v3116 = vmul.f32 %v3114, 1.442695
  %v3117 = vpow.pop %v3116
  %v3118 = vmul.f32 %v3115, 1.442695
  %v3119 = vpow.pop %v3118
  %v3120 = vadd.f32 %v3117, 1.0
  %v3121 = vadd.f32 %v3119, 1.0
  %v3122 = vrcp.pop %v3120
  %v3123 = vmul.f32 1.0, %v3122
  %v3124 = vrcp.pop %v3121
  %v3125 = vmul.f32 1.0, %v3124
  %v3126 = vmul.f32 %v3101, %v2730
  %v3127 = vmul.f32 %v3103, %v2731
  %v3128 = vmul.f32 %v3083, %v3108
  %v3129 = vmul.f32 %v3085, %v3109
  %v3130 = vadd.f32 %v3126, %v3128
  %v3131 = vadd.f32 %v3127, %v3129
  %v3132 = vtanh.pop %v3130
  %v3133 = vtanh.pop %v3131
  %v3134 = vmul.f32 %v3123, %v3132
  %v3135 = vmul.f32 %v3125, %v3133
  %3136 = vst [vmem:[#allocation3 + $0x5] sm:$0x1] %v3072
  %3137 = vst [vmem:[#allocation3 + $0xd] sm:$0x1] %v3073
  %3138 = vst [vmem:[#allocation4 + $0x2] sm:$0x1] %v3134
  %3139 = vst [vmem:[#allocation4 + $0xa] sm:$0x1] %v3135
  %s3140 = scalar_lea.vmem [#allocation2], 6
  %v3141 = vld [vmem:[%s3140] ss:$8 sm:$0xf]
  %s3142 = scalar_lea.vmem [#allocation2], 70
  %v3143 = vld [vmem:[%s3142] ss:$8 sm:$0xf]
  %v3144 = vpack.c.bf16 %v3072, %v3072
  %v3145 = vpack.c.bf16 %v3073, %v3073
  %v3148 = vunpack.c.l.b16 %v3144
  %v3149 = vunpack.c.l.b16 %v3145
  %v3150 = vrot.slane %v3149, 7
  %v3151 = vsel %vm430, %v3150, %v3148
  %v3152 = vpack.c.b16 %v3151, %v3151
  %3154 = vmatprep.subr.bf16.mxu0 %v531
  %3155 = vmatpush1.bf16.msra.mxu0 %v530
  %3156 = vmatprep.subr.bf16.mxu0 %v535
  %3157 = vmatpush1.bf16.msra.mxu0 %v534
  %3158 = vmatprep.subr.bf16.mxu0 %v539
  %3159 = vmatpush1.bf16.msra.mxu0 %v538
  %3160 = vmatprep.subr.bf16.mxu0 %v543
  %3161 = vmatpush1.bf16.msra.mxu0 %v542
  %3162 = vmatprep.subr.bf16.mxu0 %v547
  %3163 = vmatpush1.bf16.msra.mxu0 %v546
  %3164 = vmatprep.subr.bf16.mxu0 %v551
  %3165 = vmatpush1.bf16.msra.mxu0 %v550
  %3166 = vmatprep.subr.bf16.mxu0 %v555
  %3167 = vmatpush1.bf16.msra.mxu0 %v554
  %3168 = vmatprep.subr.bf16.mxu0 %v559
  %3169 = vmatpush1.bf16.msra.mxu0 %v558
  %3170 = vmatprep.subr.bf16.mxu0 0
  %3171 = vmatpush1.bf16.msra.mxu0 0
  %3172 = vmatprep.subr.bf16.mxu0 0
  %3173 = vmatpush1.bf16.msra.mxu0 0
  %3174 = vmatprep.subr.bf16.mxu0 0
  %3175 = vmatpush1.bf16.msra.mxu0 0
  %3176 = vmatprep.subr.bf16.mxu0 0
  %3177 = vmatpush1.bf16.msra.mxu0 0
  %3178 = vmatprep.subr.bf16.mxu0 0
  %3179 = vmatpush1.bf16.msra.mxu0 0
  %3180 = vmatprep.subr.bf16.mxu0 0
  %3181 = vmatpush1.bf16.msra.mxu0 0
  %3182 = vmatprep.subr.bf16.mxu0 0
  %3183 = vmatpush1.bf16.msra.mxu0 0
  %3184 = vmatprep.subr.bf16.mxu0 0
  %3185 = vmatpush1.bf16.msra.mxu0 0
  %3186 = vmatprep.mubr.bf16.mxu0 0
  %3187 = vmatmul.mubr.bf16.gmra.mrb[0].mxu0 %v3152
  %v3188 = vpop.f32.mrb[0].mxu0
  %v3189 = vadd.f32 0.0, %v3188
  %v3190 = vpop.f32.mrb[0].mxu0
  %v3191 = vadd.f32 0.0, %v3190
  %v3192 = vpop.f32.mrb[0].mxu0
  %v3193 = vpop.f32.mrb[0].mxu0
  %3194 = vdwg.mxu0
  %3195 = vmatprep.subr.bf16.mxu0 %v533
  %3196 = vmatpush1.bf16.msra.mxu0 %v532
  %3197 = vmatprep.subr.bf16.mxu0 %v537
  %3198 = vmatpush1.bf16.msra.mxu0 %v536
  %3199 = vmatprep.subr.bf16.mxu0 %v541
  %3200 = vmatpush1.bf16.msra.mxu0 %v540
  %3201 = vmatprep.subr.bf16.mxu0 %v545
  %3202 = vmatpush1.bf16.msra.mxu0 %v544
  %3203 = vmatprep.subr.bf16.mxu0 %v549
  %3204 = vmatpush1.bf16.msra.mxu0 %v548
  %3205 = vmatprep.subr.bf16.mxu0 %v553
  %3206 = vmatpush1.bf16.msra.mxu0 %v552
  %3207 = vmatprep.subr.bf16.mxu0 %v557
  %3208 = vmatpush1.bf16.msra.mxu0 %v556
  %3209 = vmatprep.subr.bf16.mxu0 %v561
  %3210 = vmatpush1.bf16.msra.mxu0 %v560
  %3211 = vmatprep.subr.bf16.mxu0 0
  %3212 = vmatpush1.bf16.msra.mxu0 0
  %3213 = vmatprep.subr.bf16.mxu0 0
  %3214 = vmatpush1.bf16.msra.mxu0 0
  %3215 = vmatprep.subr.bf16.mxu0 0
  %3216 = vmatpush1.bf16.msra.mxu0 0
  %3217 = vmatprep.subr.bf16.mxu0 0
  %3218 = vmatpush1.bf16.msra.mxu0 0
  %3219 = vmatprep.subr.bf16.mxu0 0
  %3220 = vmatpush1.bf16.msra.mxu0 0
  %3221 = vmatprep.subr.bf16.mxu0 0
  %3222 = vmatpush1.bf16.msra.mxu0 0
  %3223 = vmatprep.subr.bf16.mxu0 0
  %3224 = vmatpush1.bf16.msra.mxu0 0
  %3225 = vmatprep.subr.bf16.mxu0 0
  %3226 = vmatpush1.bf16.msra.mxu0 0
  %3227 = vmatprep.mubr.bf16.mxu0 0
  %3228 = vmatmul.mubr.bf16.gmra.mrb[0].mxu0 %v3152
  %v3229 = vpop.f32.mrb[0].mxu0
  %v3230 = vadd.f32 0.0, %v3229
  %v3231 = vpop.f32.mrb[0].mxu0
  %v3232 = vadd.f32 0.0, %v3231
  %v3233 = vpop.f32.mrb[0].mxu0
  %v3234 = vpop.f32.mrb[0].mxu0
  %3235 = vdwg.mxu0
  %v3240 = vcombine.low %v3189, %v3191
  %v3241 = vcombine.low %v3230, %v3232
  %v3243 = vunpack.c.l.s4 1966171168
  %v3244 = vunpack.c.0.s8 %v3243
  %v3245 = vlaneseq
  %v3246 = vshrl.u32 %v3245, 7
  %v3247 = vsub.s32 %v3244, %v3246
  %v3248 = vrot.slane %v3240, %v3247
  %v3250 = vunpack.c.l.s4 1966171168
  %v3251 = vunpack.c.0.s8 %v3250
  %v3252 = vlaneseq
  %v3253 = vshrl.u32 %v3252, 7
  %v3254 = vsub.s32 %v3251, %v3253
  %v3255 = vrot.slane %v3241, %v3254
  %v3256 = vcombine.low %v3248, %v3255
  %v3257 = vcombine.high %v3248, %v3255
  %v3259 = vunpack.c.l.s4 1966171168
  %v3260 = vunpack.c.0.s8 %v3259
  %v3261 = vlaneseq
  %v3262 = vshrl.u32 %v3261, 7
  %v3263 = vsub.s32 %v3260, %v3262
  %v3264 = vrot.slane %v3256, %v3263
  %v3266 = vunpack.c.l.s4 1966171168
  %v3267 = vunpack.c.0.s8 %v3266
  %v3268 = vlaneseq
  %v3269 = vshrl.u32 %v3268, 7
  %v3270 = vsub.s32 %v3267, %v3269
  %v3271 = vrot.slane %v3257, %v3270
  %v3274 = vadd.f32 %v3141, %v3264
  %v3275 = vadd.f32 %v3143, %v3271
  %s3276 = scalar_lea.vmem [#allocation2], 33
  %v3277 = vld [vmem:[%s3276] ss:$8 sm:$0xf]
  %s3278 = scalar_lea.vmem [#allocation2], 97
  %v3279 = vld [vmem:[%s3278] ss:$8 sm:$0xf]
  %v3280 = vpack.c.bf16 %v3134, %v3134
  %v3281 = vpack.c.bf16 %v3135, %v3135
  %v3284 = vunpack.c.l.b16 %v3280
  %v3285 = vunpack.c.l.b16 %v3281
  %v3286 = vrot.slane %v3285, 7
  %v3287 = vsel %vm430, %v3286, %v3284
  %v3288 = vpack.c.b16 %v3287, %v3287
  %3290 = vmatprep.subr.bf16.mxu0 %v827
  %3291 = vmatpush1.bf16.msra.mxu0 %v826
  %3292 = vmatprep.subr.bf16.mxu0 %v831
  %3293 = vmatpush1.bf16.msra.mxu0 %v830
  %3294 = vmatprep.subr.bf16.mxu0 %v835
  %3295 = vmatpush1.bf16.msra.mxu0 %v834
  %3296 = vmatprep.subr.bf16.mxu0 %v839
  %3297 = vmatpush1.bf16.msra.mxu0 %v838
  %3298 = vmatprep.subr.bf16.mxu0 %v843
  %3299 = vmatpush1.bf16.msra.mxu0 %v842
  %3300 = vmatprep.subr.bf16.mxu0 %v847
  %3301 = vmatpush1.bf16.msra.mxu0 %v846
  %3302 = vmatprep.subr.bf16.mxu0 %v851
  %3303 = vmatpush1.bf16.msra.mxu0 %v850
  %3304 = vmatprep.subr.bf16.mxu0 %v855
  %3305 = vmatpush1.bf16.msra.mxu0 %v854
  %3306 = vmatprep.subr.bf16.mxu0 0
  %3307 = vmatpush1.bf16.msra.mxu0 0
  %3308 = vmatprep.subr.bf16.mxu0 0
  %3309 = vmatpush1.bf16.msra.mxu0 0
  %3310 = vmatprep.subr.bf16.mxu0 0
  %3311 = vmatpush1.bf16.msra.mxu0 0
  %3312 = vmatprep.subr.bf16.mxu0 0
  %3313 = vmatpush1.bf16.msra.mxu0 0
  %3314 = vmatprep.subr.bf16.mxu0 0
  %3315 = vmatpush1.bf16.msra.mxu0 0
  %3316 = vmatprep.subr.bf16.mxu0 0
  %3317 = vmatpush1.bf16.msra.mxu0 0
  %3318 = vmatprep.subr.bf16.mxu0 0
  %3319 = vmatpush1.bf16.msra.mxu0 0
  %3320 = vmatprep.subr.bf16.mxu0 0
  %3321 = vmatpush1.bf16.msra.mxu0 0
  %3322 = vmatprep.mubr.bf16.mxu0 0
  %3323 = vmatmul.mubr.bf16.gmra.mrb[0].mxu0 %v3288
  %v3324 = vpop.f32.mrb[0].mxu0
  %v3325 = vadd.f32 0.0, %v3324
  %v3326 = vpop.f32.mrb[0].mxu0
  %v3327 = vadd.f32 0.0, %v3326
  %v3328 = vpop.f32.mrb[0].mxu0
  %v3329 = vpop.f32.mrb[0].mxu0
  %3330 = vdwg.mxu0
  %3331 = vmatprep.subr.bf16.mxu0 %v829
  %3332 = vmatpush1.bf16.msra.mxu0 %v828
  %3333 = vmatprep.subr.bf16.mxu0 %v833
  %3334 = vmatpush1.bf16.msra.mxu0 %v832
  %3335 = vmatprep.subr.bf16.mxu0 %v837
  %3336 = vmatpush1.bf16.msra.mxu0 %v836
  %3337 = vmatprep.subr.bf16.mxu0 %v841
  %3338 = vmatpush1.bf16.msra.mxu0 %v840
  %3339 = vmatprep.subr.bf16.mxu0 %v845
  %3340 = vmatpush1.bf16.msra.mxu0 %v844
  %3341 = vmatprep.subr.bf16.mxu0 %v849
  %3342 = vmatpush1.bf16.msra.mxu0 %v848
  %3343 = vmatprep.subr.bf16.mxu0 %v853
  %3344 = vmatpush1.bf16.msra.mxu0 %v852
  %3345 = vmatprep.subr.bf16.mxu0 %v857
  %3346 = vmatpush1.bf16.msra.mxu0 %v856
  %3347 = vmatprep.subr.bf16.mxu0 0
  %3348 = vmatpush1.bf16.msra.mxu0 0
  %3349 = vmatprep.subr.bf16.mxu0 0
  %3350 = vmatpush1.bf16.msra.mxu0 0
  %3351 = vmatprep.subr.bf16.mxu0 0
  %3352 = vmatpush1.bf16.msra.mxu0 0
  %3353 = vmatprep.subr.bf16.mxu0 0
  %3354 = vmatpush1.bf16.msra.mxu0 0
  %3355 = vmatprep.subr.bf16.mxu0 0
  %3356 = vmatpush1.bf16.msra.mxu0 0
  %3357 = vmatprep.subr.bf16.mxu0 0
  %3358 = vmatpush1.bf16.msra.mxu0 0
  %3359 = vmatprep.subr.bf16.mxu0 0
  %3360 = vmatpush1.bf16.msra.mxu0 0
  %3361 = vmatprep.subr.bf16.mxu0 0
  %3362 = vmatpush1.bf16.msra.mxu0 0
  %3363 = vmatprep.mubr.bf16.mxu0 0
  %3364 = vmatmul.mubr.bf16.gmra.mrb[0].mxu0 %v3288
  %v3365 = vpop.f32.mrb[0].mxu0
  %v3366 = vadd.f32 0.0, %v3365
  %v3367 = vpop.f32.mrb[0].mxu0
  %v3368 = vadd.f32 0.0, %v3367
  %v3369 = vpop.f32.mrb[0].mxu0
  %v3370 = vpop.f32.mrb[0].mxu0
  %3371 = vdwg.mxu0
  %v3376 = vcombine.low %v3325, %v3327
  %v3377 = vcombine.low %v3366, %v3368
  %v3379 = vunpack.c.l.s4 1966171168
  %v3380 = vunpack.c.0.s8 %v3379
  %v3381 = vlaneseq
  %v3382 = vshrl.u32 %v3381, 7
  %v3383 = vsub.s32 %v3380, %v3382
  %v3384 = vrot.slane %v3376, %v3383
  %v3386 = vunpack.c.l.s4 1966171168
  %v3387 = vunpack.c.0.s8 %v3386
  %v3388 = vlaneseq
  %v3389 = vshrl.u32 %v3388, 7
  %v3390 = vsub.s32 %v3387, %v3389
  %v3391 = vrot.slane %v3377, %v3390
  %v3392 = vcombine.low %v3384, %v3391
  %v3393 = vcombine.high %v3384, %v3391
  %v3395 = vunpack.c.l.s4 1966171168
  %v3396 = vunpack.c.0.s8 %v3395
  %v3397 = vlaneseq
  %v3398 = vshrl.u32 %v3397, 7
  %v3399 = vsub.s32 %v3396, %v3398
  %v3400 = vrot.slane %v3392, %v3399
  %v3402 = vunpack.c.l.s4 1966171168
  %v3403 = vunpack.c.0.s8 %v3402
  %v3404 = vlaneseq
  %v3405 = vshrl.u32 %v3404, 7
  %v3406 = vsub.s32 %v3403, %v3405
  %v3407 = vrot.slane %v3393, %v3406
  %v3410 = vadd.f32 %v3277, %v3400
  %v3411 = vadd.f32 %v3279, %v3407
  %v3412 = vxor.u32 %v3274, 2147483648
  %v3413 = vxor.u32 %v3275, 2147483648
  %v3414 = vmul.f32 %v3412, 1.442695
  %v3415 = vpow.pop %v3414
  %v3416 = vmul.f32 %v3413, 1.442695
  %v3417 = vpow.pop %v3416
  %v3418 = vadd.f32 %v3415, 1.0
  %v3419 = vadd.f32 %v3417, 1.0
  %v3420 = vrcp.pop %v3418
  %v3421 = vmul.f32 1.0, %v3420
  %v3422 = vrcp.pop %v3419
  %v3423 = vmul.f32 1.0, %v3422
  %v3426 = vrot.slane %v3274, 1
  %v3427 = vrot.slane %v3275, 1
  %v3430 = vxor.u32 %v3426, 2147483648
  %v3431 = vxor.u32 %v3427, 2147483648
  %v3432 = vmul.f32 %v3430, 1.442695
  %v3433 = vpow.pop %v3432
  %v3434 = vmul.f32 %v3431, 1.442695
  %v3435 = vpow.pop %v3434
  %v3436 = vadd.f32 %v3433, 1.0
  %v3437 = vadd.f32 %v3435, 1.0
  %v3438 = vrcp.pop %v3436
  %v3439 = vmul.f32 1.0, %v3438
  %v3440 = vrcp.pop %v3437
  %v3441 = vmul.f32 1.0, %v3440
  %v3442 = vrot.slane %v3274, 2
  %v3443 = vrot.slane %v3275, 2
  %v3446 = vtanh.pop %v3442
  %v3447 = vtanh.pop %v3443
  %v3448 = vrot.slane %v3274, 3
  %v3449 = vrot.slane %v3275, 3
  %v3452 = vxor.u32 %v3448, 2147483648
  %v3453 = vxor.u32 %v3449, 2147483648
  %v3454 = vmul.f32 %v3452, 1.442695
  %v3455 = vpow.pop %v3454
  %v3456 = vmul.f32 %v3453, 1.442695
  %v3457 = vpow.pop %v3456
  %v3458 = vadd.f32 %v3455, 1.0
  %v3459 = vadd.f32 %v3457, 1.0
  %v3460 = vrcp.pop %v3458
  %v3461 = vmul.f32 1.0, %v3460
  %v3462 = vrcp.pop %v3459
  %v3463 = vmul.f32 1.0, %v3462
  %v3464 = vmul.f32 %v3439, %v3068
  %v3465 = vmul.f32 %v3441, %v3069
  %v3466 = vmul.f32 %v3421, %v3446
  %v3467 = vmul.f32 %v3423, %v3447
  %v3468 = vadd.f32 %v3464, %v3466
  %v3469 = vadd.f32 %v3465, %v3467
  %v3470 = vtanh.pop %v3468
  %v3471 = vtanh.pop %v3469
  %v3472 = vmul.f32 %v3461, %v3470
  %v3473 = vmul.f32 %v3463, %v3471
  %v3474 = vxor.u32 %v3410, 2147483648
  %v3475 = vxor.u32 %v3411, 2147483648
  %v3476 = vmul.f32 %v3474, 1.442695
  %v3477 = vpow.pop %v3476
  %v3478 = vmul.f32 %v3475, 1.442695
  %v3479 = vpow.pop %v3478
  %v3480 = vadd.f32 %v3477, 1.0
  %v3481 = vadd.f32 %v3479, 1.0
  %v3482 = vrcp.pop %v3480
  %v3483 = vmul.f32 1.0, %v3482
  %v3484 = vrcp.pop %v3481
  %v3485 = vmul.f32 1.0, %v3484
  %v3488 = vrot.slane %v3410, 1
  %v3489 = vrot.slane %v3411, 1
  %v3492 = vxor.u32 %v3488, 2147483648
  %v3493 = vxor.u32 %v3489, 2147483648
  %v3494 = vmul.f32 %v3492, 1.442695
  %v3495 = vpow.pop %v3494
  %v3496 = vmul.f32 %v3493, 1.442695
  %v3497 = vpow.pop %v3496
  %v3498 = vadd.f32 %v3495, 1.0
  %v3499 = vadd.f32 %v3497, 1.0
  %v3500 = vrcp.pop %v3498
  %v3501 = vmul.f32 1.0, %v3500
  %v3502 = vrcp.pop %v3499
  %v3503 = vmul.f32 1.0, %v3502
  %v3504 = vrot.slane %v3410, 2
  %v3505 = vrot.slane %v3411, 2
  %v3508 = vtanh.pop %v3504
  %v3509 = vtanh.pop %v3505
  %v3510 = vrot.slane %v3410, 3
  %v3511 = vrot.slane %v3411, 3
  %v3514 = vxor.u32 %v3510, 2147483648
  %v3515 = vxor.u32 %v3511, 2147483648
  %v3516 = vmul.f32 %v3514, 1.442695
  %v3517 = vpow.pop %v3516
  %v3518 = vmul.f32 %v3515, 1.442695
  %v3519 = vpow.pop %v3518
  %v3520 = vadd.f32 %v3517, 1.0
  %v3521 = vadd.f32 %v3519, 1.0
  %v3522 = vrcp.pop %v3520
  %v3523 = vmul.f32 1.0, %v3522
  %v3524 = vrcp.pop %v3521
  %v3525 = vmul.f32 1.0, %v3524
  %v3526 = vmul.f32 %v3501, %v3130
  %v3527 = vmul.f32 %v3503, %v3131
  %v3528 = vmul.f32 %v3483, %v3508
  %v3529 = vmul.f32 %v3485, %v3509
  %v3530 = vadd.f32 %v3526, %v3528
  %v3531 = vadd.f32 %v3527, %v3529
  %v3532 = vtanh.pop %v3530
  %v3533 = vtanh.pop %v3531
  %v3534 = vmul.f32 %v3523, %v3532
  %v3535 = vmul.f32 %v3525, %v3533
  %3536 = vst [vmem:[#allocation3 + $0x6] sm:$0x1] %v3472
  %3537 = vst [vmem:[#allocation3 + $0xe] sm:$0x1] %v3473
  %3538 = vst [vmem:[#allocation4 + $0x1] sm:$0x1] %v3534
  %3539 = vst [vmem:[#allocation4 + $0x9] sm:$0x1] %v3535
  %s3540 = scalar_lea.vmem [#allocation2], 7
  %v3541 = vld [vmem:[%s3540] ss:$8 sm:$0xf]
  %s3542 = scalar_lea.vmem [#allocation2], 71
  %v3543 = vld [vmem:[%s3542] ss:$8 sm:$0xf]
  %v3544 = vpack.c.bf16 %v3472, %v3472
  %v3545 = vpack.c.bf16 %v3473, %v3473
  %v3548 = vunpack.c.l.b16 %v3544
  %v3549 = vunpack.c.l.b16 %v3545
  %v3550 = vrot.slane %v3549, 7
  %v3551 = vsel %vm430, %v3550, %v3548
  %v3552 = vpack.c.b16 %v3551, %v3551
  %3554 = vmatprep.subr.bf16.mxu0 %v531
  %3555 = vmatpush1.bf16.msra.mxu0 %v530
  %3556 = vmatprep.subr.bf16.mxu0 %v535
  %3557 = vmatpush1.bf16.msra.mxu0 %v534
  %3558 = vmatprep.subr.bf16.mxu0 %v539
  %3559 = vmatpush1.bf16.msra.mxu0 %v538
  %3560 = vmatprep.subr.bf16.mxu0 %v543
  %3561 = vmatpush1.bf16.msra.mxu0 %v542
  %3562 = vmatprep.subr.bf16.mxu0 %v547
  %3563 = vmatpush1.bf16.msra.mxu0 %v546
  %3564 = vmatprep.subr.bf16.mxu0 %v551
  %3565 = vmatpush1.bf16.msra.mxu0 %v550
  %3566 = vmatprep.subr.bf16.mxu0 %v555
  %3567 = vmatpush1.bf16.msra.mxu0 %v554
  %3568 = vmatprep.subr.bf16.mxu0 %v559
  %3569 = vmatpush1.bf16.msra.mxu0 %v558
  %3570 = vmatprep.subr.bf16.mxu0 0
  %3571 = vmatpush1.bf16.msra.mxu0 0
  %3572 = vmatprep.subr.bf16.mxu0 0
  %3573 = vmatpush1.bf16.msra.mxu0 0
  %3574 = vmatprep.subr.bf16.mxu0 0
  %3575 = vmatpush1.bf16.msra.mxu0 0
  %3576 = vmatprep.subr.bf16.mxu0 0
  %3577 = vmatpush1.bf16.msra.mxu0 0
  %3578 = vmatprep.subr.bf16.mxu0 0
  %3579 = vmatpush1.bf16.msra.mxu0 0
  %3580 = vmatprep.subr.bf16.mxu0 0
  %3581 = vmatpush1.bf16.msra.mxu0 0
  %3582 = vmatprep.subr.bf16.mxu0 0
  %3583 = vmatpush1.bf16.msra.mxu0 0
  %3584 = vmatprep.subr.bf16.mxu0 0
  %3585 = vmatpush1.bf16.msra.mxu0 0
  %3586 = vmatprep.mubr.bf16.mxu0 0
  %3587 = vmatmul.mubr.bf16.gmra.mrb[0].mxu0 %v3552
  %v3588 = vpop.f32.mrb[0].mxu0
  %v3589 = vadd.f32 0.0, %v3588
  %v3590 = vpop.f32.mrb[0].mxu0
  %v3591 = vadd.f32 0.0, %v3590
  %v3592 = vpop.f32.mrb[0].mxu0
  %v3593 = vpop.f32.mrb[0].mxu0
  %3594 = vdwg.mxu0
  %3595 = vmatprep.subr.bf16.mxu0 %v533
  %3596 = vmatpush1.bf16.msra.mxu0 %v532
  %3597 = vmatprep.subr.bf16.mxu0 %v537
  %3598 = vmatpush1.bf16.msra.mxu0 %v536
  %3599 = vmatprep.subr.bf16.mxu0 %v541
  %3600 = vmatpush1.bf16.msra.mxu0 %v540
  %3601 = vmatprep.subr.bf16.mxu0 %v545
  %3602 = vmatpush1.bf16.msra.mxu0 %v544
  %3603 = vmatprep.subr.bf16.mxu0 %v549
  %3604 = vmatpush1.bf16.msra.mxu0 %v548
  %3605 = vmatprep.subr.bf16.mxu0 %v553
  %3606 = vmatpush1.bf16.msra.mxu0 %v552
  %3607 = vmatprep.subr.bf16.mxu0 %v557
  %3608 = vmatpush1.bf16.msra.mxu0 %v556
  %3609 = vmatprep.subr.bf16.mxu0 %v561
  %3610 = vmatpush1.bf16.msra.mxu0 %v560
  %3611 = vmatprep.subr.bf16.mxu0 0
  %3612 = vmatpush1.bf16.msra.mxu0 0
  %3613 = vmatprep.subr.bf16.mxu0 0
  %3614 = vmatpush1.bf16.msra.mxu0 0
  %3615 = vmatprep.subr.bf16.mxu0 0
  %3616 = vmatpush1.bf16.msra.mxu0 0
  %3617 = vmatprep.subr.bf16.mxu0 0
  %3618 = vmatpush1.bf16.msra.mxu0 0
  %3619 = vmatprep.subr.bf16.mxu0 0
  %3620 = vmatpush1.bf16.msra.mxu0 0
  %3621 = vmatprep.subr.bf16.mxu0 0
  %3622 = vmatpush1.bf16.msra.mxu0 0
  %3623 = vmatprep.subr.bf16.mxu0 0
  %3624 = vmatpush1.bf16.msra.mxu0 0
  %3625 = vmatprep.subr.bf16.mxu0 0
  %3626 = vmatpush1.bf16.msra.mxu0 0
  %3627 = vmatprep.mubr.bf16.mxu0 0
  %3628 = vmatmul.mubr.bf16.gmra.mrb[0].mxu0 %v3552
  %v3629 = vpop.f32.mrb[0].mxu0
  %v3630 = vadd.f32 0.0, %v3629
  %v3631 = vpop.f32.mrb[0].mxu0
  %v3632 = vadd.f32 0.0, %v3631
  %v3633 = vpop.f32.mrb[0].mxu0
  %v3634 = vpop.f32.mrb[0].mxu0
  %3635 = vdwg.mxu0
  %v3640 = vcombine.low %v3589, %v3591
  %v3641 = vcombine.low %v3630, %v3632
  %v3643 = vunpack.c.l.s4 1966171168
  %v3644 = vunpack.c.0.s8 %v3643
  %v3645 = vlaneseq
  %v3646 = vshrl.u32 %v3645, 7
  %v3647 = vsub.s32 %v3644, %v3646
  %v3648 = vrot.slane %v3640, %v3647
  %v3650 = vunpack.c.l.s4 1966171168
  %v3651 = vunpack.c.0.s8 %v3650
  %v3652 = vlaneseq
  %v3653 = vshrl.u32 %v3652, 7
  %v3654 = vsub.s32 %v3651, %v3653
  %v3655 = vrot.slane %v3641, %v3654
  %v3656 = vcombine.low %v3648, %v3655
  %v3657 = vcombine.high %v3648, %v3655
  %v3659 = vunpack.c.l.s4 1966171168
  %v3660 = vunpack.c.0.s8 %v3659
  %v3661 = vlaneseq
  %v3662 = vshrl.u32 %v3661, 7
  %v3663 = vsub.s32 %v3660, %v3662
  %v3664 = vrot.slane %v3656, %v3663
  %v3666 = vunpack.c.l.s4 1966171168
  %v3667 = vunpack.c.0.s8 %v3666
  %v3668 = vlaneseq
  %v3669 = vshrl.u32 %v3668, 7
  %v3670 = vsub.s32 %v3667, %v3669
  %v3671 = vrot.slane %v3657, %v3670
  %v3674 = vadd.f32 %v3541, %v3664
  %v3675 = vadd.f32 %v3543, %v3671
  %s3676 = scalar_lea.vmem [#allocation2], 32
  %v3677 = vld [vmem:[%s3676] ss:$8 sm:$0xf]
  %s3678 = scalar_lea.vmem [#allocation2], 96
  %v3679 = vld [vmem:[%s3678] ss:$8 sm:$0xf]
  %v3680 = vpack.c.bf16 %v3534, %v3534
  %v3681 = vpack.c.bf16 %v3535, %v3535
  %v3684 = vunpack.c.l.b16 %v3680
  %v3685 = vunpack.c.l.b16 %v3681
  %v3686 = vrot.slane %v3685, 7
  %v3687 = vsel %vm430, %v3686, %v3684
  %v3688 = vpack.c.b16 %v3687, %v3687
  %3690 = vmatprep.subr.bf16.mxu0 %v827
  %3691 = vmatpush1.bf16.msra.mxu0 %v826
  %3692 = vmatprep.subr.bf16.mxu0 %v831
  %3693 = vmatpush1.bf16.msra.mxu0 %v830
  %3694 = vmatprep.subr.bf16.mxu0 %v835
  %3695 = vmatpush1.bf16.msra.mxu0 %v834
  %3696 = vmatprep.subr.bf16.mxu0 %v839
  %3697 = vmatpush1.bf16.msra.mxu0 %v838
  %3698 = vmatprep.subr.bf16.mxu0 %v843
  %3699 = vmatpush1.bf16.msra.mxu0 %v842
  %3700 = vmatprep.subr.bf16.mxu0 %v847
  %3701 = vmatpush1.bf16.msra.mxu0 %v846
  %3702 = vmatprep.subr.bf16.mxu0 %v851
  %3703 = vmatpush1.bf16.msra.mxu0 %v850
  %3704 = vmatprep.subr.bf16.mxu0 %v855
  %3705 = vmatpush1.bf16.msra.mxu0 %v854
  %3706 = vmatprep.subr.bf16.mxu0 0
  %3707 = vmatpush1.bf16.msra.mxu0 0
  %3708 = vmatprep.subr.bf16.mxu0 0
  %3709 = vmatpush1.bf16.msra.mxu0 0
  %3710 = vmatprep.subr.bf16.mxu0 0
  %3711 = vmatpush1.bf16.msra.mxu0 0
  %3712 = vmatprep.subr.bf16.mxu0 0
  %3713 = vmatpush1.bf16.msra.mxu0 0
  %3714 = vmatprep.subr.bf16.mxu0 0
  %3715 = vmatpush1.bf16.msra.mxu0 0
  %3716 = vmatprep.subr.bf16.mxu0 0
  %3717 = vmatpush1.bf16.msra.mxu0 0
  %3718 = vmatprep.subr.bf16.mxu0 0
  %3719 = vmatpush1.bf16.msra.mxu0 0
  %3720 = vmatprep.subr.bf16.mxu0 0
  %3721 = vmatpush1.bf16.msra.mxu0 0
  %3722 = vmatprep.mubr.bf16.mxu0 0
  %3723 = vmatmul.mubr.bf16.gmra.mrb[0].mxu0 %v3688
  %v3724 = vpop.f32.mrb[0].mxu0
  %v3725 = vadd.f32 0.0, %v3724
  %v3726 = vpop.f32.mrb[0].mxu0
  %v3727 = vadd.f32 0.0, %v3726
  %v3728 = vpop.f32.mrb[0].mxu0
  %v3729 = vpop.f32.mrb[0].mxu0
  %3730 = vdwg.mxu0
  %3731 = vmatprep.subr.bf16.mxu0 %v829
  %3732 = vmatpush1.bf16.msra.mxu0 %v828
  %3733 = vmatprep.subr.bf16.mxu0 %v833
  %3734 = vmatpush1.bf16.msra.mxu0 %v832
  %3735 = vmatprep.subr.bf16.mxu0 %v837
  %3736 = vmatpush1.bf16.msra.mxu0 %v836
  %3737 = vmatprep.subr.bf16.mxu0 %v841
  %3738 = vmatpush1.bf16.msra.mxu0 %v840
  %3739 = vmatprep.subr.bf16.mxu0 %v845
  %3740 = vmatpush1.bf16.msra.mxu0 %v844
  %3741 = vmatprep.subr.bf16.mxu0 %v849
  %3742 = vmatpush1.bf16.msra.mxu0 %v848
  %3743 = vmatprep.subr.bf16.mxu0 %v853
  %3744 = vmatpush1.bf16.msra.mxu0 %v852
  %3745 = vmatprep.subr.bf16.mxu0 %v857
  %3746 = vmatpush1.bf16.msra.mxu0 %v856
  %3747 = vmatprep.subr.bf16.mxu0 0
  %3748 = vmatpush1.bf16.msra.mxu0 0
  %3749 = vmatprep.subr.bf16.mxu0 0
  %3750 = vmatpush1.bf16.msra.mxu0 0
  %3751 = vmatprep.subr.bf16.mxu0 0
  %3752 = vmatpush1.bf16.msra.mxu0 0
  %3753 = vmatprep.subr.bf16.mxu0 0
  %3754 = vmatpush1.bf16.msra.mxu0 0
  %3755 = vmatprep.subr.bf16.mxu0 0
  %3756 = vmatpush1.bf16.msra.mxu0 0
  %3757 = vmatprep.subr.bf16.mxu0 0
  %3758 = vmatpush1.bf16.msra.mxu0 0
  %3759 = vmatprep.subr.bf16.mxu0 0
  %3760 = vmatpush1.bf16.msra.mxu0 0
  %3761 = vmatprep.subr.bf16.mxu0 0
  %3762 = vmatpush1.bf16.msra.mxu0 0
  %3763 = vmatprep.mubr.bf16.mxu0 0
  %3764 = vmatmul.mubr.bf16.gmra.mrb[0].mxu0 %v3688
  %v3765 = vpop.f32.mrb[0].mxu0
  %v3766 = vadd.f32 0.0, %v3765
  %v3767 = vpop.f32.mrb[0].mxu0
  %v3768 = vadd.f32 0.0, %v3767
  %v3769 = vpop.f32.mrb[0].mxu0
  %v3770 = vpop.f32.mrb[0].mxu0
  %3771 = vdwg.mxu0
  %v3776 = vcombine.low %v3725, %v3727
  %v3777 = vcombine.low %v3766, %v3768
  %v3779 = vunpack.c.l.s4 1966171168
  %v3780 = vunpack.c.0.s8 %v3779
  %v3781 = vlaneseq
  %v3782 = vshrl.u32 %v3781, 7
  %v3783 = vsub.s32 %v3780, %v3782
  %v3784 = vrot.slane %v3776, %v3783
  %v3786 = vunpack.c.l.s4 1966171168
  %v3787 = vunpack.c.0.s8 %v3786
  %v3788 = vlaneseq
  %v3789 = vshrl.u32 %v3788, 7
  %v3790 = vsub.s32 %v3787, %v3789
  %v3791 = vrot.slane %v3777, %v3790
  %v3792 = vcombine.low %v3784, %v3791
  %v3793 = vcombine.high %v3784, %v3791
  %v3795 = vunpack.c.l.s4 1966171168
  %v3796 = vunpack.c.0.s8 %v3795
  %v3797 = vlaneseq
  %v3798 = vshrl.u32 %v3797, 7
  %v3799 = vsub.s32 %v3796, %v3798
  %v3800 = vrot.slane %v3792, %v3799
  %v3802 = vunpack.c.l.s4 1966171168
  %v3803 = vunpack.c.0.s8 %v3802
  %v3804 = vlaneseq
  %v3805 = vshrl.u32 %v3804, 7
  %v3806 = vsub.s32 %v3803, %v3805
  %v3807 = vrot.slane %v3793, %v3806
  %v3810 = vadd.f32 %v3677, %v3800
  %v3811 = vadd.f32 %v3679, %v3807
  %v3812 = vxor.u32 %v3674, 2147483648
  %v3813 = vxor.u32 %v3675, 2147483648
  %v3814 = vmul.f32 %v3812, 1.442695
  %v3815 = vpow.pop %v3814
  %v3816 = vmul.f32 %v3813, 1.442695
  %v3817 = vpow.pop %v3816
  %v3818 = vadd.f32 %v3815, 1.0
  %v3819 = vadd.f32 %v3817, 1.0
  %v3820 = vrcp.pop %v3818
  %v3821 = vmul.f32 1.0, %v3820
  %v3822 = vrcp.pop %v3819
  %v3823 = vmul.f32 1.0, %v3822
  %v3826 = vrot.slane %v3674, 1
  %v3827 = vrot.slane %v3675, 1
  %v3830 = vxor.u32 %v3826, 2147483648
  %v3831 = vxor.u32 %v3827, 2147483648
  %v3832 = vmul.f32 %v3830, 1.442695
  %v3833 = vpow.pop %v3832
  %v3834 = vmul.f32 %v3831, 1.442695
  %v3835 = vpow.pop %v3834
  %v3836 = vadd.f32 %v3833, 1.0
  %v3837 = vadd.f32 %v3835, 1.0
  %v3838 = vrcp.pop %v3836
  %v3839 = vmul.f32 1.0, %v3838
  %v3840 = vrcp.pop %v3837
  %v3841 = vmul.f32 1.0, %v3840
  %v3842 = vrot.slane %v3674, 2
  %v3843 = vrot.slane %v3675, 2
  %v3846 = vtanh.pop %v3842
  %v3847 = vtanh.pop %v3843
  %v3848 = vrot.slane %v3674, 3
  %v3849 = vrot.slane %v3675, 3
  %v3852 = vxor.u32 %v3848, 2147483648
  %v3853 = vxor.u32 %v3849, 2147483648
  %v3854 = vmul.f32 %v3852, 1.442695
  %v3855 = vpow.pop %v3854
  %v3856 = vmul.f32 %v3853, 1.442695
  %v3857 = vpow.pop %v3856
  %v3858 = vadd.f32 %v3855, 1.0
  %v3859 = vadd.f32 %v3857, 1.0
  %v3860 = vrcp.pop %v3858
  %v3861 = vmul.f32 1.0, %v3860
  %v3862 = vrcp.pop %v3859
  %v3863 = vmul.f32 1.0, %v3862
  %v3864 = vmul.f32 %v3839, %v3468
  %v3865 = vmul.f32 %v3841, %v3469
  %v3866 = vmul.f32 %v3821, %v3846
  %v3867 = vmul.f32 %v3823, %v3847
  %v3868 = vadd.f32 %v3864, %v3866
  %v3869 = vadd.f32 %v3865, %v3867
  %v3870 = vtanh.pop %v3868
  %v3871 = vtanh.pop %v3869
  %v3872 = vmul.f32 %v3861, %v3870
  %v3873 = vmul.f32 %v3863, %v3871
  %v3874 = vxor.u32 %v3810, 2147483648
  %v3875 = vxor.u32 %v3811, 2147483648
  %v3876 = vmul.f32 %v3874, 1.442695
  %v3877 = vpow.pop %v3876
  %v3878 = vmul.f32 %v3875, 1.442695
  %v3879 = vpow.pop %v3878
  %v3880 = vadd.f32 %v3877, 1.0
  %v3881 = vadd.f32 %v3879, 1.0
  %v3882 = vrcp.pop %v3880
  %v3883 = vmul.f32 1.0, %v3882
  %v3884 = vrcp.pop %v3881
  %v3885 = vmul.f32 1.0, %v3884
  %v3888 = vrot.slane %v3810, 1
  %v3889 = vrot.slane %v3811, 1
  %v3892 = vxor.u32 %v3888, 2147483648
  %v3893 = vxor.u32 %v3889, 2147483648
  %v3894 = vmul.f32 %v3892, 1.442695
  %v3895 = vpow.pop %v3894
  %v3896 = vmul.f32 %v3893, 1.442695
  %v3897 = vpow.pop %v3896
  %v3898 = vadd.f32 %v3895, 1.0
  %v3899 = vadd.f32 %v3897, 1.0
  %v3900 = vrcp.pop %v3898
  %v3901 = vmul.f32 1.0, %v3900
  %v3902 = vrcp.pop %v3899
  %v3903 = vmul.f32 1.0, %v3902
  %v3904 = vrot.slane %v3810, 2
  %v3905 = vrot.slane %v3811, 2
  %v3908 = vtanh.pop %v3904
  %v3909 = vtanh.pop %v3905
  %v3910 = vrot.slane %v3810, 3
  %v3911 = vrot.slane %v3811, 3
  %v3914 = vxor.u32 %v3910, 2147483648
  %v3915 = vxor.u32 %v3911, 2147483648
  %v3916 = vmul.f32 %v3914, 1.442695
  %v3917 = vpow.pop %v3916
  %v3918 = vmul.f32 %v3915, 1.442695
  %v3919 = vpow.pop %v3918
  %v3920 = vadd.f32 %v3917, 1.0
  %v3921 = vadd.f32 %v3919, 1.0
  %v3922 = vrcp.pop %v3920
  %v3923 = vmul.f32 1.0, %v3922
  %v3924 = vrcp.pop %v3921
  %v3925 = vmul.f32 1.0, %v3924
  %v3926 = vmul.f32 %v3901, %v3530
  %v3927 = vmul.f32 %v3903, %v3531
  %v3928 = vmul.f32 %v3883, %v3908
  %v3929 = vmul.f32 %v3885, %v3909
  %v3930 = vadd.f32 %v3926, %v3928
  %v3931 = vadd.f32 %v3927, %v3929
  %v3932 = vtanh.pop %v3930
  %v3933 = vtanh.pop %v3931
  %v3934 = vmul.f32 %v3923, %v3932
  %v3935 = vmul.f32 %v3925, %v3933
  %3936 = vst [vmem:[#allocation3 + $0x7] sm:$0x1] %v3872
  %3937 = vst [vmem:[#allocation3 + $0xf] sm:$0x1] %v3873
  %3938 = vst [vmem:[#allocation4] sm:$0x1] %v3934
  %3939 = vst [vmem:[#allocation4 + $0x8] sm:$0x1] %v3935
  %v3940 = vld [vmem:[#allocation3] sm:$0xff]
  %v3941 = vld [vmem:[#allocation3 + $0x8] sm:$0xff]
  %v3942 = vpack.c.bf16 %v3941, %v3940
  %v3943 = vld [vmem:[#allocation4] sm:$0xff]
  %v3944 = vld [vmem:[#allocation4 + $0x8] sm:$0xff]
  %v3945 = vpack.c.bf16 %v3944, %v3943
  %v3946 = vld [vmem:[%s7] sm:$0xf]
  %v3947 = vld [vmem:[%s7 + $0x4] sm:$0xf]
  %v3948 = vld [vmem:[%s7 + $0x8] sm:$0xf]
  %v3949 = vld [vmem:[%s7 + $0xc] sm:$0xf]
  %v3950 = vld [vmem:[%s7 + $0x10] sm:$0xf]
  %v3951 = vld [vmem:[%s7 + $0x14] sm:$0xf]
  %v3952 = vld [vmem:[%s7 + $0x18] sm:$0xf]
  %v3953 = vld [vmem:[%s7 + $0x1c] sm:$0xf]
  %v3954 = vld [vmem:[%s7 + $0x20] sm:$0xf]
  %v3955 = vld [vmem:[%s7 + $0x24] sm:$0xf]
  %v3956 = vld [vmem:[%s7 + $0x28] sm:$0xf]
  %v3957 = vld [vmem:[%s7 + $0x2c] sm:$0xf]
  %v3958 = vld [vmem:[%s7 + $0x30] sm:$0xf]
  %v3959 = vld [vmem:[%s7 + $0x34] sm:$0xf]
  %v3960 = vld [vmem:[%s7 + $0x38] sm:$0xf]
  %v3961 = vld [vmem:[%s7 + $0x3c] sm:$0xf]
  %v3962 = vld [vmem:[%s8] sm:$0xf]
  %v3963 = vld [vmem:[%s8 + $0x4] sm:$0xf]
  %v3964 = vld [vmem:[%s8 + $0x8] sm:$0xf]
  %v3965 = vld [vmem:[%s8 + $0xc] sm:$0xf]
  %v3966 = vld [vmem:[%s8 + $0x10] sm:$0xf]
  %v3967 = vld [vmem:[%s8 + $0x14] sm:$0xf]
  %v3968 = vld [vmem:[%s8 + $0x18] sm:$0xf]
  %v3969 = vld [vmem:[%s8 + $0x1c] sm:$0xf]
  %v3970 = vld [vmem:[%s8 + $0x20] sm:$0xf]
  %v3971 = vld [vmem:[%s8 + $0x24] sm:$0xf]
  %v3972 = vld [vmem:[%s8 + $0x28] sm:$0xf]
  %v3973 = vld [vmem:[%s8 + $0x2c] sm:$0xf]
  %v3974 = vld [vmem:[%s8 + $0x30] sm:$0xf]
  %v3975 = vld [vmem:[%s8 + $0x34] sm:$0xf]
  %v3976 = vld [vmem:[%s8 + $0x38] sm:$0xf]
  %v3977 = vld [vmem:[%s8 + $0x3c] sm:$0xf]
  %v3994 = vunpack.c.l.b16 %v3962
  %v3995 = vunpack.c.l.b16 %v3963
  %v3996 = vunpack.c.l.b16 %v3964
  %v3997 = vunpack.c.l.b16 %v3965
  %v3998 = vunpack.c.l.b16 %v3966
  %v3999 = vunpack.c.l.b16 %v3967
  %v4000 = vunpack.c.l.b16 %v3968
  %v4001 = vunpack.c.l.b16 %v3969
  %v4002 = vunpack.c.l.b16 %v3970
  %v4003 = vunpack.c.l.b16 %v3971
  %v4004 = vunpack.c.l.b16 %v3972
  %v4005 = vunpack.c.l.b16 %v3973
  %v4006 = vunpack.c.l.b16 %v3974
  %v4007 = vunpack.c.l.b16 %v3975
  %v4008 = vunpack.c.l.b16 %v3976
  %v4009 = vunpack.c.l.b16 %v3977
  %v4010 = vpack.c.b16 %v3995, %v3994
  %v4011 = vpack.c.b16 %v3997, %v3996
  %v4012 = vpack.c.b16 %v3999, %v3998
  %v4013 = vpack.c.b16 %v4001, %v4000
  %v4014 = vpack.c.b16 %v4003, %v4002
  %v4015 = vpack.c.b16 %v4005, %v4004
  %v4016 = vpack.c.b16 %v4007, %v4006
  %v4017 = vpack.c.b16 %v4009, %v4008
  %4026 = vmatprep.subr.bf16.mxu0 0
  %4027 = vmatpush1.bf16.msra.mxu0 %v4010
  %4028 = vmatprep.subr.bf16.mxu0 0
  %4029 = vmatpush1.bf16.msra.mxu0 %v4011
  %4030 = vmatprep.subr.bf16.mxu0 0
  %4031 = vmatpush1.bf16.msra.mxu0 %v4012
  %4032 = vmatprep.subr.bf16.mxu0 0
  %4033 = vmatpush1.bf16.msra.mxu0 %v4013
  %4034 = vmatprep.subr.bf16.mxu0 0
  %4035 = vmatpush1.bf16.msra.mxu0 %v4014
  %4036 = vmatprep.subr.bf16.mxu0 0
  %4037 = vmatpush1.bf16.msra.mxu0 %v4015
  %4038 = vmatprep.subr.bf16.mxu0 0
  %4039 = vmatpush1.bf16.msra.mxu0 %v4016
  %4040 = vmatprep.subr.bf16.mxu0 0
  %4041 = vmatpush1.bf16.msra.mxu0 %v4017
  %4042 = vmatprep.subr.bf16.mxu0 0
  %4043 = vmatpush1.bf16.msra.mxu0 0
  %4044 = vmatprep.subr.bf16.mxu0 0
  %4045 = vmatpush1.bf16.msra.mxu0 0
  %4046 = vmatprep.subr.bf16.mxu0 0
  %4047 = vmatpush1.bf16.msra.mxu0 0
  %4048 = vmatprep.subr.bf16.mxu0 0
  %4049 = vmatpush1.bf16.msra.mxu0 0
  %4050 = vmatprep.subr.bf16.mxu0 0
  %4051 = vmatpush1.bf16.msra.mxu0 0
  %4052 = vmatprep.subr.bf16.mxu0 0
  %4053 = vmatpush1.bf16.msra.mxu0 0
  %4054 = vmatprep.subr.bf16.mxu0 0
  %4055 = vmatpush1.bf16.msra.mxu0 0
  %4056 = vmatprep.subr.bf16.mxu0 0
  %4057 = vmatpush1.bf16.msra.mxu0 0
  %4058 = vmatprep.mubr.bf16.mxu0 0
  %4059 = vmatmul.mubr.bf16.gmra.mrb[0].mxu0 %v3945
  %v4060 = vpop.f32.mrb[0].mxu0
  %v4061 = vadd.f32 0.0, %v4060
  %v4062 = vpop.f32.mrb[0].mxu0
  %v4063 = vpop.f32.mrb[0].mxu0
  %v4064 = vadd.f32 0.0, %v4063
  %v4065 = vpop.f32.mrb[0].mxu0
  %4066 = vdwg.mxu0
  %v4083 = vunpack.c.l.b16 %v3946
  %v4084 = vunpack.c.l.b16 %v3947
  %v4085 = vunpack.c.l.b16 %v3948
  %v4086 = vunpack.c.l.b16 %v3949
  %v4087 = vunpack.c.l.b16 %v3950
  %v4088 = vunpack.c.l.b16 %v3951
  %v4089 = vunpack.c.l.b16 %v3952
  %v4090 = vunpack.c.l.b16 %v3953
  %v4091 = vunpack.c.l.b16 %v3954
  %v4092 = vunpack.c.l.b16 %v3955
  %v4093 = vunpack.c.l.b16 %v3956
  %v4094 = vunpack.c.l.b16 %v3957
  %v4095 = vunpack.c.l.b16 %v3958
  %v4096 = vunpack.c.l.b16 %v3959
  %v4097 = vunpack.c.l.b16 %v3960
  %v4098 = vunpack.c.l.b16 %v3961
  %v4099 = vpack.c.b16 %v4084, %v4083
  %v4100 = vpack.c.b16 %v4086, %v4085
  %v4101 = vpack.c.b16 %v4088, %v4087
  %v4102 = vpack.c.b16 %v4090, %v4089
  %v4103 = vpack.c.b16 %v4092, %v4091
  %v4104 = vpack.c.b16 %v4094, %v4093
  %v4105 = vpack.c.b16 %v4096, %v4095
  %v4106 = vpack.c.b16 %v4098, %v4097
  %4115 = vmatprep.subr.bf16.mxu0 0
  %4116 = vmatpush1.bf16.msra.mxu0 %v4099
  %4117 = vmatprep.subr.bf16.mxu0 0
  %4118 = vmatpush1.bf16.msra.mxu0 %v4100
  %4119 = vmatprep.subr.bf16.mxu0 0
  %4120 = vmatpush1.bf16.msra.mxu0 %v4101
  %4121 = vmatprep.subr.bf16.mxu0 0
  %4122 = vmatpush1.bf16.msra.mxu0 %v4102
  %4123 = vmatprep.subr.bf16.mxu0 0
  %4124 = vmatpush1.bf16.msra.mxu0 %v4103
  %4125 = vmatprep.subr.bf16.mxu0 0
  %4126 = vmatpush1.bf16.msra.mxu0 %v4104
  %4127 = vmatprep.subr.bf16.mxu0 0
  %4128 = vmatpush1.bf16.msra.mxu0 %v4105
  %4129 = vmatprep.subr.bf16.mxu0 0
  %4130 = vmatpush1.bf16.msra.mxu0 %v4106
  %4131 = vmatprep.subr.bf16.mxu0 0
  %4132 = vmatpush1.bf16.msra.mxu0 0
  %4133 = vmatprep.subr.bf16.mxu0 0
  %4134 = vmatpush1.bf16.msra.mxu0 0
  %4135 = vmatprep.subr.bf16.mxu0 0
  %4136 = vmatpush1.bf16.msra.mxu0 0
  %4137 = vmatprep.subr.bf16.mxu0 0
  %4138 = vmatpush1.bf16.msra.mxu0 0
  %4139 = vmatprep.subr.bf16.mxu0 0
  %4140 = vmatpush1.bf16.msra.mxu0 0
  %4141 = vmatprep.subr.bf16.mxu0 0
  %4142 = vmatpush1.bf16.msra.mxu0 0
  %4143 = vmatprep.subr.bf16.mxu0 0
  %4144 = vmatpush1.bf16.msra.mxu0 0
  %4145 = vmatprep.subr.bf16.mxu0 0
  %4146 = vmatpush1.bf16.msra.mxu0 0
  %4147 = vmatprep.mubr.bf16.mxu0 0
  %4148 = vmatmul.mubr.bf16.gmra.mrb[0].mxu0 %v3942
  %v4149 = vpop.f32.mrb[0].mxu0
  %v4150 = vadd.f32 %v4061, %v4149
  %v4151 = vpop.f32.mrb[0].mxu0
  %v4152 = vpop.f32.mrb[0].mxu0
  %v4153 = vadd.f32 %v4064, %v4152
  %v4154 = vpop.f32.mrb[0].mxu0
  %4155 = vdwg.mxu0
  %v4156 = vld [vmem:[%s9] sm:$0x1]
  %v4158 = vlaneseq
  %v4159 = vshrl.u32 %v4158, 7
  %v4160 = vsub.s32 0, %v4159
  %v4161 = vrot.slane %v4156, %v4160
  %v4163 = vadd.f32 %v4150, %v4161
  %v4164 = vadd.f32 %v4153, %v4161
  %4165 = vst [vmem:[#allocation5] sm:$0xff] %v4163
  %4166 = vst [vmem:[#allocation5 + $0x8] sm:$0xff] %v4164
  %v4167 = vld [vmem:[%s10] sm:$0xff]
  %v4168 = vlaneseq
  %v4169 = vshrl.u32 %v4168, 7
  %v4170 = vlaneseq
  %v4171 = vand.u32 %v4170, 127
  %vm4172 = vcmp.eq.s32.totalorder %v4169, %v4171
  %v4173 = vld [vmem:[#allocation5] sm:$0x1]
  %v4174 = vld [vmem:[#allocation5 + $0x8] sm:$0x1]
  %4175 = vst [vmem:[#allocation6] sm:$0x1] 0
  %4176 = vst [vmem:[#allocation6 + $0x8] sm:$0x1] 0
  %v4177 = vsel %vm4172, 1, 0
  %vm4178 = vcmp.eq.s32.totalorder %v4177, 1
  %v4179 = vlaneseq
  %v4180 = vshrl.u32 %v4179, 7
  %v4181 = vsub.s32 0, %v4180
  %v4182 = vrot.slane %v4173, %v4181
  %v4183 = vlaneseq
  %v4184 = vshrl.u32 %v4183, 7
  %v4185 = vsub.s32 0, %v4184
  %v4186 = vrot.slane %v4174, %v4185
  %v4187 = vsel %vm4178, %v4182, -1e+30
  %v4188 = vsel %vm4178, %v4186, -1e+30
  %4189 = vmax.xlane.f32.xlu0 %v4187
  %v4190 = vpop.xlane.xlu0 %4189
  %4191 = vmax.xlane.f32.xlu0 %v4188
  %v4192 = vpop.xlane.xlu0 %4191
  %v4193 = vadd.f32 %v4190, %v4167
  %v4194 = vadd.f32 %v4192, %v4167
  %v4195 = vrot.slane %v4193, 4
  %v4196 = vmax.f32 %v4193, %v4195
  %v4197 = vrot.slane %v4196, 2
  %v4198 = vmax.f32 %v4196, %v4197
  %v4199 = vrot.slane %v4198, 1
  %v4200 = vmax.f32 %v4198, %v4199
  %v4201 = vrot.slane %v4194, 4
  %v4202 = vmax.f32 %v4194, %v4201
  %v4203 = vrot.slane %v4202, 2
  %v4204 = vmax.f32 %v4202, %v4203
  %v4205 = vrot.slane %v4204, 1
  %v4206 = vmax.f32 %v4204, %v4205
  %vm4207 = vcmp.eq.f32.partialorder %v4193, %v4200
  %vm4208 = vcmp.eq.f32.partialorder %v4194, %v4206
  %v4209 = vsel %vm4207, %v4169, 8
  %v4210 = vsel %vm4208, %v4169, 8
  %v4211 = vrot.slane %v4209, 4
  %vm4212 = vcmp.lt.s32.totalorder %v4209, %v4211
  %v4213 = vsel %vm4212, %v4209, %v4211
  %v4214 = vrot.slane %v4213, 2
  %vm4215 = vcmp.lt.s32.totalorder %v4213, %v4214
  %v4216 = vsel %vm4215, %v4213, %v4214
  %v4217 = vrot.slane %v4216, 1
  %vm4218 = vcmp.lt.s32.totalorder %v4216, %v4217
  %v4219 = vsel %vm4218, %v4216, %v4217
  %v4220 = vrot.slane %v4210, 4
  %vm4221 = vcmp.lt.s32.totalorder %v4210, %v4220
  %v4222 = vsel %vm4221, %v4210, %v4220
  %v4223 = vrot.slane %v4222, 2
  %vm4224 = vcmp.lt.s32.totalorder %v4222, %v4223
  %v4225 = vsel %vm4224, %v4222, %v4223
  %v4226 = vrot.slane %v4225, 1
  %vm4227 = vcmp.lt.s32.totalorder %v4225, %v4226
  %v4228 = vsel %vm4227, %v4225, %v4226
  %v4229 = vld [vmem:[#allocation5 + $0x1] sm:$0x1]
  %v4230 = vld [vmem:[#allocation5 + $0x9] sm:$0x1]
  %v4231 = vadd.f32 %v4229, %v4200
  %v4232 = vadd.f32 %v4230, %v4206
  %4233 = vst [vmem:[#allocation6 + $0x1] sm:$0x1] %v4219
  %4234 = vst [vmem:[#allocation6 + $0x9] sm:$0x1] %v4228
  %v4235 = vlaneseq
  %v4236 = vshrl.u32 %v4235, 7
  %v4237 = vsub.s32 0, %v4236
  %v4238 = vrot.slane %v4231, %v4237
  %v4239 = vlaneseq
  %v4240 = vshrl.u32 %v4239, 7
  %v4241 = vsub.s32 0, %v4240
  %v4242 = vrot.slane %v4232, %v4241
  %v4243 = vsel %vm4178, %v4238, -1e+30
  %v4244 = vsel %vm4178, %v4242, -1e+30
  %4245 = vmax.xlane.f32.xlu0 %v4243
  %v4246 = vpop.xlane.xlu0 %4245
  %4247 = vmax.xlane.f32.xlu0 %v4244
  %v4248 = vpop.xlane.xlu0 %4247
  %v4249 = vadd.f32 %v4246, %v4167
  %v4250 = vadd.f32 %v4248, %v4167
  %v4251 = vrot.slane %v4249, 4
  %v4252 = vmax.f32 %v4249, %v4251
  %v4253 = vrot.slane %v4252, 2
  %v4254 = vmax.f32 %v4252, %v4253
  %v4255 = vrot.slane %v4254, 1
  %v4256 = vmax.f32 %v4254, %v4255
  %v4257 = vrot.slane %v4250, 4
  %v4258 = vmax.f32 %v4250, %v4257
  %v4259 = vrot.slane %v4258, 2
  %v4260 = vmax.f32 %v4258, %v4259
  %v4261 = vrot.slane %v4260, 1
  %v4262 = vmax.f32 %v4260, %v4261
  %vm4263 = vcmp.eq.f32.partialorder %v4249, %v4256
  %vm4264 = vcmp.eq.f32.partialorder %v4250, %v4262
  %v4265 = vsel %vm4263, %v4169, 8
  %v4266 = vsel %vm4264, %v4169, 8
  %v4267 = vrot.slane %v4265, 4
  %vm4268 = vcmp.lt.s32.totalorder %v4265, %v4267
  %v4269 = vsel %vm4268, %v4265, %v4267
  %v4270 = vrot.slane %v4269, 2
  %vm4271 = vcmp.lt.s32.totalorder %v4269, %v4270
  %v4272 = vsel %vm4271, %v4269, %v4270
  %v4273 = vrot.slane %v4272, 1
  %vm4274 = vcmp.lt.s32.totalorder %v4272, %v4273
  %v4275 = vsel %vm4274, %v4272, %v4273
  %v4276 = vrot.slane %v4266, 4
  %vm4277 = vcmp.lt.s32.totalorder %v4266, %v4276
  %v4278 = vsel %vm4277, %v4266, %v4276
  %v4279 = vrot.slane %v4278, 2
  %vm4280 = vcmp.lt.s32.totalorder %v4278, %v4279
  %v4281 = vsel %vm4280, %v4278, %v4279
  %v4282 = vrot.slane %v4281, 1
  %vm4283 = vcmp.lt.s32.totalorder %v4281, %v4282
  %v4284 = vsel %vm4283, %v4281, %v4282
  %v4285 = vld [vmem:[#allocation5 + $0x2] sm:$0x1]
  %v4286 = vld [vmem:[#allocation5 + $0xa] sm:$0x1]
  %v4287 = vadd.f32 %v4285, %v4256
  %v4288 = vadd.f32 %v4286, %v4262
  %4289 = vst [vmem:[#allocation6 + $0x2] sm:$0x1] %v4275
  %4290 = vst [vmem:[#allocation6 + $0xa] sm:$0x1] %v4284
  %v4291 = vlaneseq
  %v4292 = vshrl.u32 %v4291, 7
  %v4293 = vsub.s32 0, %v4292
  %v4294 = vrot.slane %v4287, %v4293
  %v4295 = vlaneseq
  %v4296 = vshrl.u32 %v4295, 7
  %v4297 = vsub.s32 0, %v4296
  %v4298 = vrot.slane %v4288, %v4297
  %v4299 = vsel %vm4178, %v4294, -1e+30
  %v4300 = vsel %vm4178, %v4298, -1e+30
  %4301 = vmax.xlane.f32.xlu0 %v4299
  %v4302 = vpop.xlane.xlu0 %4301
  %4303 = vmax.xlane.f32.xlu0 %v4300
  %v4304 = vpop.xlane.xlu0 %4303
  %v4305 = vadd.f32 %v4302, %v4167
  %v4306 = vadd.f32 %v4304, %v4167
  %v4307 = vrot.slane %v4305, 4
  %v4308 = vmax.f32 %v4305, %v4307
  %v4309 = vrot.slane %v4308, 2
  %v4310 = vmax.f32 %v4308, %v4309
  %v4311 = vrot.slane %v4310, 1
  %v4312 = vmax.f32 %v4310, %v4311
  %v4313 = vrot.slane %v4306, 4
  %v4314 = vmax.f32 %v4306, %v4313
  %v4315 = vrot.slane %v4314, 2
  %v4316 = vmax.f32 %v4314, %v4315
  %v4317 = vrot.slane %v4316, 1
  %v4318 = vmax.f32 %v4316, %v4317
  %vm4319 = vcmp.eq.f32.partialorder %v4305, %v4312
  %vm4320 = vcmp.eq.f32.partialorder %v4306, %v4318
  %v4321 = vsel %vm4319, %v4169, 8
  %v4322 = vsel %vm4320, %v4169, 8
  %v4323 = vrot.slane %v4321, 4
  %vm4324 = vcmp.lt.s32.totalorder %v4321, %v4323
  %v4325 = vsel %vm4324, %v4321, %v4323
  %v4326 = vrot.slane %v4325, 2
  %vm4327 = vcmp.lt.s32.totalorder %v4325, %v4326
  %v4328 = vsel %vm4327, %v4325, %v4326
  %v4329 = vrot.slane %v4328, 1
  %vm4330 = vcmp.lt.s32.totalorder %v4328, %v4329
  %v4331 = vsel %vm4330, %v4328, %v4329
  %v4332 = vrot.slane %v4322, 4
  %vm4333 = vcmp.lt.s32.totalorder %v4322, %v4332
  %v4334 = vsel %vm4333, %v4322, %v4332
  %v4335 = vrot.slane %v4334, 2
  %vm4336 = vcmp.lt.s32.totalorder %v4334, %v4335
  %v4337 = vsel %vm4336, %v4334, %v4335
  %v4338 = vrot.slane %v4337, 1
  %vm4339 = vcmp.lt.s32.totalorder %v4337, %v4338
  %v4340 = vsel %vm4339, %v4337, %v4338
  %v4341 = vld [vmem:[#allocation5 + $0x3] sm:$0x1]
  %v4342 = vld [vmem:[#allocation5 + $0xb] sm:$0x1]
  %v4343 = vadd.f32 %v4341, %v4312
  %v4344 = vadd.f32 %v4342, %v4318
  %4345 = vst [vmem:[#allocation6 + $0x3] sm:$0x1] %v4331
  %4346 = vst [vmem:[#allocation6 + $0xb] sm:$0x1] %v4340
  %v4347 = vlaneseq
  %v4348 = vshrl.u32 %v4347, 7
  %v4349 = vsub.s32 0, %v4348
  %v4350 = vrot.slane %v4343, %v4349
  %v4351 = vlaneseq
  %v4352 = vshrl.u32 %v4351, 7
  %v4353 = vsub.s32 0, %v4352
  %v4354 = vrot.slane %v4344, %v4353
  %v4355 = vsel %vm4178, %v4350, -1e+30
  %v4356 = vsel %vm4178, %v4354, -1e+30
  %4357 = vmax.xlane.f32.xlu0 %v4355
  %v4358 = vpop.xlane.xlu0 %4357
  %4359 = vmax.xlane.f32.xlu0 %v4356
  %v4360 = vpop.xlane.xlu0 %4359
  %v4361 = vadd.f32 %v4358, %v4167
  %v4362 = vadd.f32 %v4360, %v4167
  %v4363 = vrot.slane %v4361, 4
  %v4364 = vmax.f32 %v4361, %v4363
  %v4365 = vrot.slane %v4364, 2
  %v4366 = vmax.f32 %v4364, %v4365
  %v4367 = vrot.slane %v4366, 1
  %v4368 = vmax.f32 %v4366, %v4367
  %v4369 = vrot.slane %v4362, 4
  %v4370 = vmax.f32 %v4362, %v4369
  %v4371 = vrot.slane %v4370, 2
  %v4372 = vmax.f32 %v4370, %v4371
  %v4373 = vrot.slane %v4372, 1
  %v4374 = vmax.f32 %v4372, %v4373
  %vm4375 = vcmp.eq.f32.partialorder %v4361, %v4368
  %vm4376 = vcmp.eq.f32.partialorder %v4362, %v4374
  %v4377 = vsel %vm4375, %v4169, 8
  %v4378 = vsel %vm4376, %v4169, 8
  %v4379 = vrot.slane %v4377, 4
  %vm4380 = vcmp.lt.s32.totalorder %v4377, %v4379
  %v4381 = vsel %vm4380, %v4377, %v4379
  %v4382 = vrot.slane %v4381, 2
  %vm4383 = vcmp.lt.s32.totalorder %v4381, %v4382
  %v4384 = vsel %vm4383, %v4381, %v4382
  %v4385 = vrot.slane %v4384, 1
  %vm4386 = vcmp.lt.s32.totalorder %v4384, %v4385
  %v4387 = vsel %vm4386, %v4384, %v4385
  %v4388 = vrot.slane %v4378, 4
  %vm4389 = vcmp.lt.s32.totalorder %v4378, %v4388
  %v4390 = vsel %vm4389, %v4378, %v4388
  %v4391 = vrot.slane %v4390, 2
  %vm4392 = vcmp.lt.s32.totalorder %v4390, %v4391
  %v4393 = vsel %vm4392, %v4390, %v4391
  %v4394 = vrot.slane %v4393, 1
  %vm4395 = vcmp.lt.s32.totalorder %v4393, %v4394
  %v4396 = vsel %vm4395, %v4393, %v4394
  %v4397 = vld [vmem:[#allocation5 + $0x4] sm:$0x1]
  %v4398 = vld [vmem:[#allocation5 + $0xc] sm:$0x1]
  %v4399 = vadd.f32 %v4397, %v4368
  %v4400 = vadd.f32 %v4398, %v4374
  %4401 = vst [vmem:[#allocation6 + $0x4] sm:$0x1] %v4387
  %4402 = vst [vmem:[#allocation6 + $0xc] sm:$0x1] %v4396
  %v4403 = vlaneseq
  %v4404 = vshrl.u32 %v4403, 7
  %v4405 = vsub.s32 0, %v4404
  %v4406 = vrot.slane %v4399, %v4405
  %v4407 = vlaneseq
  %v4408 = vshrl.u32 %v4407, 7
  %v4409 = vsub.s32 0, %v4408
  %v4410 = vrot.slane %v4400, %v4409
  %v4411 = vsel %vm4178, %v4406, -1e+30
  %v4412 = vsel %vm4178, %v4410, -1e+30
  %4413 = vmax.xlane.f32.xlu0 %v4411
  %v4414 = vpop.xlane.xlu0 %4413
  %4415 = vmax.xlane.f32.xlu0 %v4412
  %v4416 = vpop.xlane.xlu0 %4415
  %v4417 = vadd.f32 %v4414, %v4167
  %v4418 = vadd.f32 %v4416, %v4167
  %v4419 = vrot.slane %v4417, 4
  %v4420 = vmax.f32 %v4417, %v4419
  %v4421 = vrot.slane %v4420, 2
  %v4422 = vmax.f32 %v4420, %v4421
  %v4423 = vrot.slane %v4422, 1
  %v4424 = vmax.f32 %v4422, %v4423
  %v4425 = vrot.slane %v4418, 4
  %v4426 = vmax.f32 %v4418, %v4425
  %v4427 = vrot.slane %v4426, 2
  %v4428 = vmax.f32 %v4426, %v4427
  %v4429 = vrot.slane %v4428, 1
  %v4430 = vmax.f32 %v4428, %v4429
  %vm4431 = vcmp.eq.f32.partialorder %v4417, %v4424
  %vm4432 = vcmp.eq.f32.partialorder %v4418, %v4430
  %v4433 = vsel %vm4431, %v4169, 8
  %v4434 = vsel %vm4432, %v4169, 8
  %v4435 = vrot.slane %v4433, 4
  %vm4436 = vcmp.lt.s32.totalorder %v4433, %v4435
  %v4437 = vsel %vm4436, %v4433, %v4435
  %v4438 = vrot.slane %v4437, 2
  %vm4439 = vcmp.lt.s32.totalorder %v4437, %v4438
  %v4440 = vsel %vm4439, %v4437, %v4438
  %v4441 = vrot.slane %v4440, 1
  %vm4442 = vcmp.lt.s32.totalorder %v4440, %v4441
  %v4443 = vsel %vm4442, %v4440, %v4441
  %v4444 = vrot.slane %v4434, 4
  %vm4445 = vcmp.lt.s32.totalorder %v4434, %v4444
  %v4446 = vsel %vm4445, %v4434, %v4444
  %v4447 = vrot.slane %v4446, 2
  %vm4448 = vcmp.lt.s32.totalorder %v4446, %v4447
  %v4449 = vsel %vm4448, %v4446, %v4447
  %v4450 = vrot.slane %v4449, 1
  %vm4451 = vcmp.lt.s32.totalorder %v4449, %v4450
  %v4452 = vsel %vm4451, %v4449, %v4450
  %v4453 = vld [vmem:[#allocation5 + $0x5] sm:$0x1]
  %v4454 = vld [vmem:[#allocation5 + $0xd] sm:$0x1]
  %v4455 = vadd.f32 %v4453, %v4424
  %v4456 = vadd.f32 %v4454, %v4430
  %4457 = vst [vmem:[#allocation6 + $0x5] sm:$0x1] %v4443
  %4458 = vst [vmem:[#allocation6 + $0xd] sm:$0x1] %v4452
  %v4459 = vlaneseq
  %v4460 = vshrl.u32 %v4459, 7
  %v4461 = vsub.s32 0, %v4460
  %v4462 = vrot.slane %v4455, %v4461
  %v4463 = vlaneseq
  %v4464 = vshrl.u32 %v4463, 7
  %v4465 = vsub.s32 0, %v4464
  %v4466 = vrot.slane %v4456, %v4465
  %v4467 = vsel %vm4178, %v4462, -1e+30
  %v4468 = vsel %vm4178, %v4466, -1e+30
  %4469 = vmax.xlane.f32.xlu0 %v4467
  %v4470 = vpop.xlane.xlu0 %4469
  %4471 = vmax.xlane.f32.xlu0 %v4468
  %v4472 = vpop.xlane.xlu0 %4471
  %v4473 = vadd.f32 %v4470, %v4167
  %v4474 = vadd.f32 %v4472, %v4167
  %v4475 = vrot.slane %v4473, 4
  %v4476 = vmax.f32 %v4473, %v4475
  %v4477 = vrot.slane %v4476, 2
  %v4478 = vmax.f32 %v4476, %v4477
  %v4479 = vrot.slane %v4478, 1
  %v4480 = vmax.f32 %v4478, %v4479
  %v4481 = vrot.slane %v4474, 4
  %v4482 = vmax.f32 %v4474, %v4481
  %v4483 = vrot.slane %v4482, 2
  %v4484 = vmax.f32 %v4482, %v4483
  %v4485 = vrot.slane %v4484, 1
  %v4486 = vmax.f32 %v4484, %v4485
  %vm4487 = vcmp.eq.f32.partialorder %v4473, %v4480
  %vm4488 = vcmp.eq.f32.partialorder %v4474, %v4486
  %v4489 = vsel %vm4487, %v4169, 8
  %v4490 = vsel %vm4488, %v4169, 8
  %v4491 = vrot.slane %v4489, 4
  %vm4492 = vcmp.lt.s32.totalorder %v4489, %v4491
  %v4493 = vsel %vm4492, %v4489, %v4491
  %v4494 = vrot.slane %v4493, 2
  %vm4495 = vcmp.lt.s32.totalorder %v4493, %v4494
  %v4496 = vsel %vm4495, %v4493, %v4494
  %v4497 = vrot.slane %v4496, 1
  %vm4498 = vcmp.lt.s32.totalorder %v4496, %v4497
  %v4499 = vsel %vm4498, %v4496, %v4497
  %v4500 = vrot.slane %v4490, 4
  %vm4501 = vcmp.lt.s32.totalorder %v4490, %v4500
  %v4502 = vsel %vm4501, %v4490, %v4500
  %v4503 = vrot.slane %v4502, 2
  %vm4504 = vcmp.lt.s32.totalorder %v4502, %v4503
  %v4505 = vsel %vm4504, %v4502, %v4503
  %v4506 = vrot.slane %v4505, 1
  %vm4507 = vcmp.lt.s32.totalorder %v4505, %v4506
  %v4508 = vsel %vm4507, %v4505, %v4506
  %v4509 = vld [vmem:[#allocation5 + $0x6] sm:$0x1]
  %v4510 = vld [vmem:[#allocation5 + $0xe] sm:$0x1]
  %v4511 = vadd.f32 %v4509, %v4480
  %v4512 = vadd.f32 %v4510, %v4486
  %4513 = vst [vmem:[#allocation6 + $0x6] sm:$0x1] %v4499
  %4514 = vst [vmem:[#allocation6 + $0xe] sm:$0x1] %v4508
  %v4515 = vlaneseq
  %v4516 = vshrl.u32 %v4515, 7
  %v4517 = vsub.s32 0, %v4516
  %v4518 = vrot.slane %v4511, %v4517
  %v4519 = vlaneseq
  %v4520 = vshrl.u32 %v4519, 7
  %v4521 = vsub.s32 0, %v4520
  %v4522 = vrot.slane %v4512, %v4521
  %v4523 = vsel %vm4178, %v4518, -1e+30
  %v4524 = vsel %vm4178, %v4522, -1e+30
  %4525 = vmax.xlane.f32.xlu0 %v4523
  %v4526 = vpop.xlane.xlu0 %4525
  %4527 = vmax.xlane.f32.xlu0 %v4524
  %v4528 = vpop.xlane.xlu0 %4527
  %v4529 = vadd.f32 %v4526, %v4167
  %v4530 = vadd.f32 %v4528, %v4167
  %v4531 = vrot.slane %v4529, 4
  %v4532 = vmax.f32 %v4529, %v4531
  %v4533 = vrot.slane %v4532, 2
  %v4534 = vmax.f32 %v4532, %v4533
  %v4535 = vrot.slane %v4534, 1
  %v4536 = vmax.f32 %v4534, %v4535
  %v4537 = vrot.slane %v4530, 4
  %v4538 = vmax.f32 %v4530, %v4537
  %v4539 = vrot.slane %v4538, 2
  %v4540 = vmax.f32 %v4538, %v4539
  %v4541 = vrot.slane %v4540, 1
  %v4542 = vmax.f32 %v4540, %v4541
  %vm4543 = vcmp.eq.f32.partialorder %v4529, %v4536
  %vm4544 = vcmp.eq.f32.partialorder %v4530, %v4542
  %v4545 = vsel %vm4543, %v4169, 8
  %v4546 = vsel %vm4544, %v4169, 8
  %v4547 = vrot.slane %v4545, 4
  %vm4548 = vcmp.lt.s32.totalorder %v4545, %v4547
  %v4549 = vsel %vm4548, %v4545, %v4547
  %v4550 = vrot.slane %v4549, 2
  %vm4551 = vcmp.lt.s32.totalorder %v4549, %v4550
  %v4552 = vsel %vm4551, %v4549, %v4550
  %v4553 = vrot.slane %v4552, 1
  %vm4554 = vcmp.lt.s32.totalorder %v4552, %v4553
  %v4555 = vsel %vm4554, %v4552, %v4553
  %v4556 = vrot.slane %v4546, 4
  %vm4557 = vcmp.lt.s32.totalorder %v4546, %v4556
  %v4558 = vsel %vm4557, %v4546, %v4556
  %v4559 = vrot.slane %v4558, 2
  %vm4560 = vcmp.lt.s32.totalorder %v4558, %v4559
  %v4561 = vsel %vm4560, %v4558, %v4559
  %v4562 = vrot.slane %v4561, 1
  %vm4563 = vcmp.lt.s32.totalorder %v4561, %v4562
  %v4564 = vsel %vm4563, %v4561, %v4562
  %v4565 = vld [vmem:[#allocation5 + $0x7] sm:$0x1]
  %v4566 = vld [vmem:[#allocation5 + $0xf] sm:$0x1]
  %v4567 = vadd.f32 %v4565, %v4536
  %v4568 = vadd.f32 %v4566, %v4542
  %4569 = vst [vmem:[#allocation6 + $0x7] sm:$0x1] %v4555
  %4570 = vst [vmem:[#allocation6 + $0xf] sm:$0x1] %v4564
  %v4573 = vrot.slane %v4568, 7
  %v4574 = vsel %vm430, %v4573, %v4567
  %4576 = vst [vmem:[%s11] sm:$0x3] %v4574
  %v4577 = vld [vmem:[#allocation6] sm:$0xff]
  %v4578 = vld [vmem:[#allocation6 + $0x8] sm:$0xff]
  %v4579 = vpack.c.b16 %v4577, %v4577
  %v4580 = vpack.c.b8 %v4579, %v4579
  %v4581 = vpack.c.b16 %v4578, %v4578
  %v4582 = vpack.c.b8 %v4581, %v4581
  %4583 = vst [vmem:[%s12] sm:$0x3] %v4580
  %4584 = vst [vmem:[%s12 + $0x2] sm:$0x3] %v4582
  // Predicated region
  $region46: #{forward.1} parent=0 // pred_check
    _
  $region47: #{forward.1} parent=0 // pred_check_branch
    %4586 = sbr.rel (0) target = $region49
  $region48: #{forward.1} parent=0 // pred_region
    _
  $region49: #{forward.1} parent=0 // pred_fallthru
    _
  // Predicated region
  $region50: #{forward.1} parent=0 // pred_check
    _
  $region51: #{forward.1} parent=0 // pred_check_branch
    %4588 = sbr.rel (0) target = $region53
  $region52: #{forward.1} parent=0 // pred_region
    _
  $region53: #{forward.1} parent=0 // pred_fallthru
    _
  // Predicated region
  $region54: #{forward.1} parent=0 // pred_check
    _
  $region55: #{forward.1} parent=0 // pred_check_branch
    %4590 = sbr.rel (0) target = $region57
  $region56: #{forward.1} parent=0 // pred_region
    _
  $region57: #{forward.1} parent=0 // pred_fallthru
    _
  // Predicated region
  $region58: #{forward.1} parent=0 // pred_check
    _
  $region59: #{forward.1} parent=0 // pred_check_branch
    %4592 = sbr.rel (0) target = $region61
  $region60: #{forward.1} parent=0 // pred_region
    _
  $region61: #{forward.1} parent=0 // pred_fallthru
    _

</llo_original>
